<compile_context>
chip_gen: v7x
topology: tpu7x:2x2x1
jax: 0.10.0
libtpu: 0.0.40
codegen_flags: <defaults>
</compile_context>

<pallas_src>
import functools

import jax
import jax.numpy as jnp
from jax.experimental import pallas as pl
from jax.experimental.pallas import tpu as pltpu


def _simple_conv_kernel(x_ref, w1_ref, b1_ref, w2_ref, b2_ref, o_ref,
                        xp_ref, yp_ref, *, negative_slope: float):
    """Fused conv3x3 -> LeakyReLU -> conv3x3 for one NCHW image.

    x_ref : (1, C, H, W)   input image tile              (VMEM)
    w*_ref: (C*C*9,)       flattened (O, I, kh, kw) weights (SMEM)
    b*_ref: (C,)           biases                        (SMEM)
    o_ref : (1, C, H, W)   output tile                   (VMEM)
    xp_ref: (C, H+2, W+2)  zero-padded input scratch     (VMEM)
    yp_ref: (C, H+2, W+2)  zero-padded intermediate act  (VMEM)
    """
    C, Hp, Wp = xp_ref.shape
    H, W = Hp - 2, Wp - 2

    # In-kernel zero padding: halo stays zero, interior is overwritten below.
    # (Re-zero every grid step: with a "parallel" batch axis each core has its
    #  own scratch, so a program_id==0 guard would be unsafe on v7x.)
    xp_ref[...] = jnp.zeros(xp_ref.shape, xp_ref.dtype)
    yp_ref[...] = jnp.zeros(yp_ref.shape, yp_ref.dtype)
    xp_ref[:, pl.ds(1, H), pl.ds(1, W)] = x_ref[0].astype(jnp.float32)

    def conv3x3(src_ref, w_ref, b_ref, apply_act):
        # Bias-initialized accumulators, one lane-dense (H, W) plane per out-channel.
        accs = [jnp.full((H, W), b_ref[o], dtype=jnp.float32) for o in range(C)]
        # 9 taps x C input channels; each shifted patch is loaded once and reused
        # for all output channels (C*C*9 broadcast VPU FMAs total).
        for i in range(C):
            for dh in range(3):
                for dw in range(3):
                    patch = src_ref[i, pl.ds(dh, H), pl.ds(dw, W)]
                    for o in range(C):
                        wk = w_ref[((o * C + i) * 3 + dh) * 3 + dw]
                        accs[o] = accs[o] + wk * patch
        if apply_act:
            accs = [jnp.where(a >= 0, a, negative_slope * a) for a in accs]
        return accs

    # conv1 + LeakyReLU -> padded VMEM intermediate (never hits HBM).
    y = conv3x3(xp_ref, w1_ref, b1_ref, apply_act=True)
    for o in range(C):
        yp_ref[o, pl.ds(1, H), pl.ds(1, W)] = y[o]

    # conv2 -> output tile.
    z = conv3x3(yp_ref, w2_ref, b2_ref, apply_act=False)
    for o in range(C):
        o_ref[0, o, :, :] = z[o].astype(o_ref.dtype)


def simple_conv_forward(feature_nchw, params):
    """Equivalent of SimpleConv.forward. Input/output are NCHW like PyTorch."""
    x = feature_nchw
    N, C, H, W = x.shape
    w1, b1, w2, b2 = params["w1"], params["b1"], params["w2"], params["b2"]
    assert w1.shape == (C, C, 3, 3) and w2.shape == (C, C, 3, 3), (
        "SimpleConv requires in_channel == out_channel (as the PyTorch module "
        "implicitly does)")
    assert b1.shape == (C,) and b2.shape == (C,)

    kernel = functools.partial(_simple_conv_kernel, negative_slope=0.2)
    smem_spec = lambda: pl.BlockSpec(memory_space=pltpu.MemorySpace.SMEM)

    return pl.pallas_call(
        kernel,
        out_shape=jax.ShapeDtypeStruct((N, C, H, W), jnp.float32),
        grid_spec=pltpu.PrefetchScalarGridSpec(
            num_scalar_prefetch=0,
            grid=(N,),
            in_specs=[
                pl.BlockSpec((1, C, H, W), lambda n: (n, 0, 0, 0)),  # x (VMEM)
                smem_spec(),   # w1 flat (SMEM)
                smem_spec(),   # b1      (SMEM)
                smem_spec(),   # w2 flat (SMEM)
                smem_spec(),   # b2      (SMEM)
            ],
            out_specs=pl.BlockSpec((1, C, H, W), lambda n: (n, 0, 0, 0)),
            scratch_shapes=[
                pltpu.VMEM((C, H + 2, W + 2), jnp.float32),  # padded input
                pltpu.VMEM((C, H + 2, W + 2), jnp.float32),  # padded intermediate
            ],
        ),
        compiler_params=pltpu.CompilerParams(
            # batch axis: parallel -> uses both TensorCores on v7x; on single-TC
            # v5e/v6e it is just N cheap pipeline steps of one launch.
            dimension_semantics=("parallel",),
        ),
    )(x, w1.reshape(-1), b1, w2.reshape(-1), b2)
    # TODO(synk): for large H/W (>~512) tile H on a halo'd grid axis instead of
    # whole-image blocks and set vmem_limit_bytes (v7x has only 64 MiB VMEM).


def init_params(key, in_channel, out_channel):
    assert in_channel == out_channel, "SimpleConv forward requires Cin == Cout"
    k1, k2, k3, k4 = jax.random.split(key, 4)
    # PyTorch Conv2d layout: (Cout, Cin, kh, kw)
    w1 = jax.random.normal(k1, (out_channel, in_channel, 3, 3), jnp.float32) * 0.1
    b1 = jax.random.normal(k2, (out_channel,), jnp.float32) * 0.1
    w2 = jax.random.normal(k3, (out_channel, out_channel, 3, 3), jnp.float32) * 0.1
    b2 = jax.random.normal(k4, (out_channel,), jnp.float32) * 0.1
    return {"w1": w1, "b1": b1, "w2": w2, "b2": b2}


def _reference(feature_nchw, params):
    """Pure-JAX reference (lax.conv) for a sanity check."""
    def conv(x, w, b):
        y = jax.lax.conv_general_dilated(
            x, w, window_strides=(1, 1), padding="SAME",
            dimension_numbers=("NCHW", "OIHW", "NCHW"))
        return y + b[None, :, None, None]

    y = conv(feature_nchw, params["w1"], params["b1"])
    y = jnp.where(y >= 0, y, 0.2 * y)
    return conv(y, params["w2"], params["b2"])


if __name__ == "__main__":
    key = jax.random.PRNGKey(0)
    k_x, k_p = jax.random.split(key)

    N, C, H, W = 2, 4, 16, 16  # in_channel == out_channel == 4
    x = jax.random.normal(k_x, (N, C, H, W), jnp.float32)
    params = init_params(k_p, C, C)

    out = jax.block_until_ready(simple_conv_forward(x, params))
    ref = jax.block_until_ready(_reference(x, params))

    assert out.shape == (N, C, H, W)
    assert jnp.allclose(out, ref, atol=1e-4, rtol=1e-4)

    print("KERNEL_OK")
</pallas_src>

<mosaic_0001>
module attributes {stable_mosaic.version = 11 : i64} {
  func.func @_simple_conv_kernel(%arg0: i32, %arg1: memref<1x4x16x16xf32, #tpu.memory_space<vmem>>, %arg2: memref<144xf32, #tpu.memory_space<smem>>, %arg3: memref<4xf32, #tpu.memory_space<smem>>, %arg4: memref<144xf32, #tpu.memory_space<smem>>, %arg5: memref<4xf32, #tpu.memory_space<smem>>, %arg6: memref<1x4x16x16xf32, #tpu.memory_space<vmem>>, %arg7: memref<4x18x18xf32, #tpu.memory_space<vmem>>, %arg8: memref<4x18x18xf32, #tpu.memory_space<vmem>>) attributes {dimension_semantics = [#tpu.dimension_semantics<parallel>], iteration_bounds = array<i64: 2>, scalar_prefetch = 0 : i64, scratch_operands = 2 : i64, tpu.core_type = #tpu.core_type<tc>, window_params = [{transform_indices = @transform_0, window_bounds = array<i64: 1, 4, 16, 16>}, {transform_indices = @transform_1, window_bounds = array<i64: 144>}, {transform_indices = @transform_2, window_bounds = array<i64: 4>}, {transform_indices = @transform_3, window_bounds = array<i64: 144>}, {transform_indices = @transform_4, window_bounds = array<i64: 4>}, {transform_indices = @transform_5, window_bounds = array<i64: 1, 4, 16, 16>}]} {
    %cst = arith.constant 0.000000e+00 : f32
    %0 = vector.broadcast %cst : f32 to vector<4x18x18xf32>
    %c0 = arith.constant 0 : index
    %c0_0 = arith.constant 0 : index
    %c0_1 = arith.constant 0 : index
    %1 = vector.load %arg7[%c0, %c0_0, %c0_1] : memref<4x18x18xf32, #tpu.memory_space<vmem>>, vector<4x18x18xf32>
    tpu.vector_store %arg7[%c0, %c0_0, %c0_1], %0 {strides = array<i32>} : memref<4x18x18xf32, #tpu.memory_space<vmem>>, vector<4x18x18xf32>,
    %cst_2 = arith.constant 0.000000e+00 : f32
    %2 = vector.broadcast %cst_2 : f32 to vector<4x18x18xf32>
    %c0_3 = arith.constant 0 : index
    %c0_4 = arith.constant 0 : index
    %c0_5 = arith.constant 0 : index
    %3 = vector.load %arg8[%c0_3, %c0_4, %c0_5] : memref<4x18x18xf32, #tpu.memory_space<vmem>>, vector<4x18x18xf32>
    tpu.vector_store %arg8[%c0_3, %c0_4, %c0_5], %2 {strides = array<i32>} : memref<4x18x18xf32, #tpu.memory_space<vmem>>, vector<4x18x18xf32>,
    %c0_6 = arith.constant 0 : index
    %c0_7 = arith.constant 0 : index
    %c0_8 = arith.constant 0 : index
    %c0_9 = arith.constant 0 : index
    %4 = vector.load %arg1[%c0_6, %c0_7, %c0_8, %c0_9] : memref<1x4x16x16xf32, #tpu.memory_space<vmem>>, vector<1x4x16x16xf32>
    %5 = vector.shape_cast %4 : vector<1x4x16x16xf32> to vector<4x16x16xf32>
    %c0_10 = arith.constant 0 : index
    %c1 = arith.constant 1 : index
    %c1_11 = arith.constant 1 : index
    %6 = vector.load %arg7[%c0_10, %c1, %c1_11] : memref<4x18x18xf32, #tpu.memory_space<vmem>>, vector<4x16x16xf32>
    tpu.vector_store %arg7[%c0_10, %c1, %c1_11], %5 {strides = array<i32>} : memref<4x18x18xf32, #tpu.memory_space<vmem>>, vector<4x16x16xf32>,
    %c0_12 = arith.constant 0 : index
    %7 = memref.load %arg3[%c0_12] : memref<4xf32, #tpu.memory_space<smem>>
    %8 = vector.broadcast %7 : f32 to vector<16x16xf32>
    %c1_13 = arith.constant 1 : index
    %9 = memref.load %arg3[%c1_13] : memref<4xf32, #tpu.memory_space<smem>>
    %10 = vector.broadcast %9 : f32 to vector<16x16xf32>
    %c2 = arith.constant 2 : index
    %11 = memref.load %arg3[%c2] : memref<4xf32, #tpu.memory_space<smem>>
    %12 = vector.broadcast %11 : f32 to vector<16x16xf32>
    %c3 = arith.constant 3 : index
    %13 = memref.load %arg3[%c3] : memref<4xf32, #tpu.memory_space<smem>>
    %14 = vector.broadcast %13 : f32 to vector<16x16xf32>
    %c0_14 = arith.constant 0 : index
    %c0_15 = arith.constant 0 : index
    %c0_16 = arith.constant 0 : index
    %15 = vector.load %arg7[%c0_14, %c0_15, %c0_16] : memref<4x18x18xf32, #tpu.memory_space<vmem>>, vector<1x16x16xf32>
    %16 = vector.shape_cast %15 : vector<1x16x16xf32> to vector<16x16xf32>
    %c0_17 = arith.constant 0 : index
    %17 = memref.load %arg2[%c0_17] : memref<144xf32, #tpu.memory_space<smem>>
    %18 = vector.broadcast %17 : f32 to vector<16x16xf32>
    %19 = arith.mulf %18, %16 : vector<16x16xf32>
    %20 = arith.addf %8, %19 : vector<16x16xf32>
    %c36 = arith.constant 36 : index
    %21 = memref.load %arg2[%c36] : memref<144xf32, #tpu.memory_space<smem>>
    %22 = vector.broadcast %21 : f32 to vector<16x16xf32>
    %23 = arith.mulf %22, %16 : vector<16x16xf32>
    %24 = arith.addf %10, %23 : vector<16x16xf32>
    %c72 = arith.constant 72 : index
    %25 = memref.load %arg2[%c72] : memref<144xf32, #tpu.memory_space<smem>>
    %26 = vector.broadcast %25 : f32 to vector<16x16xf32>
    %27 = arith.mulf %26, %16 : vector<16x16xf32>
    %28 = arith.addf %12, %27 : vector<16x16xf32>
    %c108 = arith.constant 108 : index
    %29 = memref.load %arg2[%c108] : memref<144xf32, #tpu.memory_space<smem>>
    %30 = vector.broadcast %29 : f32 to vector<16x16xf32>
    %31 = arith.mulf %30, %16 : vector<16x16xf32>
    %32 = arith.addf %14, %31 : vector<16x16xf32>
    %c0_18 = arith.constant 0 : index
    %c0_19 = arith.constant 0 : index
    %c1_20 = arith.constant 1 : index
    %33 = vector.load %arg7[%c0_18, %c0_19, %c1_20] : memref<4x18x18xf32, #tpu.memory_space<vmem>>, vector<1x16x16xf32>
    %34 = vector.shape_cast %33 : vector<1x16x16xf32> to vector<16x16xf32>
    %c1_21 = arith.constant 1 : index
    %35 = memref.load %arg2[%c1_21] : memref<144xf32, #tpu.memory_space<smem>>
    %36 = vector.broadcast %35 : f32 to vector<16x16xf32>
    %37 = arith.mulf %36, %34 : vector<16x16xf32>
    %38 = arith.addf %20, %37 : vector<16x16xf32>
    %c37 = arith.constant 37 : index
    %39 = memref.load %arg2[%c37] : memref<144xf32, #tpu.memory_space<smem>>
    %40 = vector.broadcast %39 : f32 to vector<16x16xf32>
    %41 = arith.mulf %40, %34 : vector<16x16xf32>
    %42 = arith.addf %24, %41 : vector<16x16xf32>
    %c73 = arith.constant 73 : index
    %43 = memref.load %arg2[%c73] : memref<144xf32, #tpu.memory_space<smem>>
    %44 = vector.broadcast %43 : f32 to vector<16x16xf32>
    %45 = arith.mulf %44, %34 : vector<16x16xf32>
    %46 = arith.addf %28, %45 : vector<16x16xf32>
    %c109 = arith.constant 109 : index
    %47 = memref.load %arg2[%c109] : memref<144xf32, #tpu.memory_space<smem>>
    %48 = vector.broadcast %47 : f32 to vector<16x16xf32>
    %49 = arith.mulf %48, %34 : vector<16x16xf32>
    %50 = arith.addf %32, %49 : vector<16x16xf32>
    %c0_22 = arith.constant 0 : index
    %c0_23 = arith.constant 0 : index
    %c2_24 = arith.constant 2 : index
    %51 = vector.load %arg7[%c0_22, %c0_23, %c2_24] : memref<4x18x18xf32, #tpu.memory_space<vmem>>, vector<1x16x16xf32>
    %52 = vector.shape_cast %51 : vector<1x16x16xf32> to vector<16x16xf32>
    %c2_25 = arith.constant 2 : index
    %53 = memref.load %arg2[%c2_25] : memref<144xf32, #tpu.memory_space<smem>>
    %54 = vector.broadcast %53 : f32 to vector<16x16xf32>
    %55 = arith.mulf %54, %52 : vector<16x16xf32>
    %56 = arith.addf %38, %55 : vector<16x16xf32>
    %c38 = arith.constant 38 : index
    %57 = memref.load %arg2[%c38] : memref<144xf32, #tpu.memory_space<smem>>
    %58 = vector.broadcast %57 : f32 to vector<16x16xf32>
    %59 = arith.mulf %58, %52 : vector<16x16xf32>
    %60 = arith.addf %42, %59 : vector<16x16xf32>
    %c74 = arith.constant 74 : index
    %61 = memref.load %arg2[%c74] : memref<144xf32, #tpu.memory_space<smem>>
    %62 = vector.broadcast %61 : f32 to vector<16x16xf32>
    %63 = arith.mulf %62, %52 : vector<16x16xf32>
    %64 = arith.addf %46, %63 : vector<16x16xf32>
    %c110 = arith.constant 110 : index
    %65 = memref.load %arg2[%c110] : memref<144xf32, #tpu.memory_space<smem>>
    %66 = vector.broadcast %65 : f32 to vector<16x16xf32>
    %67 = arith.mulf %66, %52 : vector<16x16xf32>
    %68 = arith.addf %50, %67 : vector<16x16xf32>
    %c0_26 = arith.constant 0 : index
    %c1_27 = arith.constant 1 : index
    %c0_28 = arith.constant 0 : index
    %69 = vector.load %arg7[%c0_26, %c1_27, %c0_28] : memref<4x18x18xf32, #tpu.memory_space<vmem>>, vector<1x16x16xf32>
    %70 = vector.shape_cast %69 : vector<1x16x16xf32> to vector<16x16xf32>
    %c3_29 = arith.constant 3 : index
    %71 = memref.load %arg2[%c3_29] : memref<144xf32, #tpu.memory_space<smem>>
    %72 = vector.broadcast %71 : f32 to vector<16x16xf32>
    %73 = arith.mulf %72, %70 : vector<16x16xf32>
    %74 = arith.addf %56, %73 : vector<16x16xf32>
    %c39 = arith.constant 39 : index
    %75 = memref.load %arg2[%c39] : memref<144xf32, #tpu.memory_space<smem>>
    %76 = vector.broadcast %75 : f32 to vector<16x16xf32>
    %77 = arith.mulf %76, %70 : vector<16x16xf32>
    %78 = arith.addf %60, %77 : vector<16x16xf32>
    %c75 = arith.constant 75 : index
    %79 = memref.load %arg2[%c75] : memref<144xf32, #tpu.memory_space<smem>>
    %80 = vector.broadcast %79 : f32 to vector<16x16xf32>
    %81 = arith.mulf %80, %70 : vector<16x16xf32>
    %82 = arith.addf %64, %81 : vector<16x16xf32>
    %c111 = arith.constant 111 : index
    %83 = memref.load %arg2[%c111] : memref<144xf32, #tpu.memory_space<smem>>
    %84 = vector.broadcast %83 : f32 to vector<16x16xf32>
    %85 = arith.mulf %84, %70 : vector<16x16xf32>
    %86 = arith.addf %68, %85 : vector<16x16xf32>
    %c0_30 = arith.constant 0 : index
    %c1_31 = arith.constant 1 : index
    %c1_32 = arith.constant 1 : index
    %87 = vector.load %arg7[%c0_30, %c1_31, %c1_32] : memref<4x18x18xf32, #tpu.memory_space<vmem>>, vector<1x16x16xf32>
    %88 = vector.shape_cast %87 : vector<1x16x16xf32> to vector<16x16xf32>
    %c4 = arith.constant 4 : index
    %89 = memref.load %arg2[%c4] : memref<144xf32, #tpu.memory_space<smem>>
    %90 = vector.broadcast %89 : f32 to vector<16x16xf32>
    %91 = arith.mulf %90, %88 : vector<16x16xf32>
    %92 = arith.addf %74, %91 : vector<16x16xf32>
    %c40 = arith.constant 40 : index
    %93 = memref.load %arg2[%c40] : memref<144xf32, #tpu.memory_space<smem>>
    %94 = vector.broadcast %93 : f32 to vector<16x16xf32>
    %95 = arith.mulf %94, %88 : vector<16x16xf32>
    %96 = arith.addf %78, %95 : vector<16x16xf32>
    %c76 = arith.constant 76 : index
    %97 = memref.load %arg2[%c76] : memref<144xf32, #tpu.memory_space<smem>>
    %98 = vector.broadcast %97 : f32 to vector<16x16xf32>
    %99 = arith.mulf %98, %88 : vector<16x16xf32>
    %100 = arith.addf %82, %99 : vector<16x16xf32>
    %c112 = arith.constant 112 : index
    %101 = memref.load %arg2[%c112] : memref<144xf32, #tpu.memory_space<smem>>
    %102 = vector.broadcast %101 : f32 to vector<16x16xf32>
    %103 = arith.mulf %102, %88 : vector<16x16xf32>
    %104 = arith.addf %86, %103 : vector<16x16xf32>
    %c0_33 = arith.constant 0 : index
    %c1_34 = arith.constant 1 : index
    %c2_35 = arith.constant 2 : index
    %105 = vector.load %arg7[%c0_33, %c1_34, %c2_35] : memref<4x18x18xf32, #tpu.memory_space<vmem>>, vector<1x16x16xf32>
    %106 = vector.shape_cast %105 : vector<1x16x16xf32> to vector<16x16xf32>
    %c5 = arith.constant 5 : index
    %107 = memref.load %arg2[%c5] : memref<144xf32, #tpu.memory_space<smem>>
    %108 = vector.broadcast %107 : f32 to vector<16x16xf32>
    %109 = arith.mulf %108, %106 : vector<16x16xf32>
    %110 = arith.addf %92, %109 : vector<16x16xf32>
    %c41 = arith.constant 41 : index
    %111 = memref.load %arg2[%c41] : memref<144xf32, #tpu.memory_space<smem>>
    %112 = vector.broadcast %111 : f32 to vector<16x16xf32>
    %113 = arith.mulf %112, %106 : vector<16x16xf32>
    %114 = arith.addf %96, %113 : vector<16x16xf32>
    %c77 = arith.constant 77 : index
    %115 = memref.load %arg2[%c77] : memref<144xf32, #tpu.memory_space<smem>>
    %116 = vector.broadcast %115 : f32 to vector<16x16xf32>
    %117 = arith.mulf %116, %106 : vector<16x16xf32>
    %118 = arith.addf %100, %117 : vector<16x16xf32>
    %c113 = arith.constant 113 : index
    %119 = memref.load %arg2[%c113] : memref<144xf32, #tpu.memory_space<smem>>
    %120 = vector.broadcast %119 : f32 to vector<16x16xf32>
    %121 = arith.mulf %120, %106 : vector<16x16xf32>
    %122 = arith.addf %104, %121 : vector<16x16xf32>
    %c0_36 = arith.constant 0 : index
    %c2_37 = arith.constant 2 : index
    %c0_38 = arith.constant 0 : index
    %123 = vector.load %arg7[%c0_36, %c2_37, %c0_38] : memref<4x18x18xf32, #tpu.memory_space<vmem>>, vector<1x16x16xf32>
    %124 = vector.shape_cast %123 : vector<1x16x16xf32> to vector<16x16xf32>
    %c6 = arith.constant 6 : index
    %125 = memref.load %arg2[%c6] : memref<144xf32, #tpu.memory_space<smem>>
    %126 = vector.broadcast %125 : f32 to vector<16x16xf32>
    %127 = arith.mulf %126, %124 : vector<16x16xf32>
    %128 = arith.addf %110, %127 : vector<16x16xf32>
    %c42 = arith.constant 42 : index
    %129 = memref.load %arg2[%c42] : memref<144xf32, #tpu.memory_space<smem>>
    %130 = vector.broadcast %129 : f32 to vector<16x16xf32>
    %131 = arith.mulf %130, %124 : vector<16x16xf32>
    %132 = arith.addf %114, %131 : vector<16x16xf32>
    %c78 = arith.constant 78 : index
    %133 = memref.load %arg2[%c78] : memref<144xf32, #tpu.memory_space<smem>>
    %134 = vector.broadcast %133 : f32 to vector<16x16xf32>
    %135 = arith.mulf %134, %124 : vector<16x16xf32>
    %136 = arith.addf %118, %135 : vector<16x16xf32>
    %c114 = arith.constant 114 : index
    %137 = memref.load %arg2[%c114] : memref<144xf32, #tpu.memory_space<smem>>
    %138 = vector.broadcast %137 : f32 to vector<16x16xf32>
    %139 = arith.mulf %138, %124 : vector<16x16xf32>
    %140 = arith.addf %122, %139 : vector<16x16xf32>
    %c0_39 = arith.constant 0 : index
    %c2_40 = arith.constant 2 : index
    %c1_41 = arith.constant 1 : index
    %141 = vector.load %arg7[%c0_39, %c2_40, %c1_41] : memref<4x18x18xf32, #tpu.memory_space<vmem>>, vector<1x16x16xf32>
    %142 = vector.shape_cast %141 : vector<1x16x16xf32> to vector<16x16xf32>
    %c7 = arith.constant 7 : index
    %143 = memref.load %arg2[%c7] : memref<144xf32, #tpu.memory_space<smem>>
    %144 = vector.broadcast %143 : f32 to vector<16x16xf32>
    %145 = arith.mulf %144, %142 : vector<16x16xf32>
    %146 = arith.addf %128, %145 : vector<16x16xf32>
    %c43 = arith.constant 43 : index
    %147 = memref.load %arg2[%c43] : memref<144xf32, #tpu.memory_space<smem>>
    %148 = vector.broadcast %147 : f32 to vector<16x16xf32>
    %149 = arith.mulf %148, %142 : vector<16x16xf32>
    %150 = arith.addf %132, %149 : vector<16x16xf32>
    %c79 = arith.constant 79 : index
    %151 = memref.load %arg2[%c79] : memref<144xf32, #tpu.memory_space<smem>>
    %152 = vector.broadcast %151 : f32 to vector<16x16xf32>
    %153 = arith.mulf %152, %142 : vector<16x16xf32>
    %154 = arith.addf %136, %153 : vector<16x16xf32>
    %c115 = arith.constant 115 : index
    %155 = memref.load %arg2[%c115] : memref<144xf32, #tpu.memory_space<smem>>
    %156 = vector.broadcast %155 : f32 to vector<16x16xf32>
    %157 = arith.mulf %156, %142 : vector<16x16xf32>
    %158 = arith.addf %140, %157 : vector<16x16xf32>
    %c0_42 = arith.constant 0 : index
    %c2_43 = arith.constant 2 : index
    %c2_44 = arith.constant 2 : index
    %159 = vector.load %arg7[%c0_42, %c2_43, %c2_44] : memref<4x18x18xf32, #tpu.memory_space<vmem>>, vector<1x16x16xf32>
    %160 = vector.shape_cast %159 : vector<1x16x16xf32> to vector<16x16xf32>
    %c8 = arith.constant 8 : index
    %161 = memref.load %arg2[%c8] : memref<144xf32, #tpu.memory_space<smem>>
    %162 = vector.broadcast %161 : f32 to vector<16x16xf32>
    %163 = arith.mulf %162, %160 : vector<16x16xf32>
    %164 = arith.addf %146, %163 : vector<16x16xf32>
    %c44 = arith.constant 44 : index
    %165 = memref.load %arg2[%c44] : memref<144xf32, #tpu.memory_space<smem>>
    %166 = vector.broadcast %165 : f32 to vector<16x16xf32>
    %167 = arith.mulf %166, %160 : vector<16x16xf32>
    %168 = arith.addf %150, %167 : vector<16x16xf32>
    %c80 = arith.constant 80 : index
    %169 = memref.load %arg2[%c80] : memref<144xf32, #tpu.memory_space<smem>>
    %170 = vector.broadcast %169 : f32 to vector<16x16xf32>
    %171 = arith.mulf %170, %160 : vector<16x16xf32>
    %172 = arith.addf %154, %171 : vector<16x16xf32>
    %c116 = arith.constant 116 : index
    %173 = memref.load %arg2[%c116] : memref<144xf32, #tpu.memory_space<smem>>
    %174 = vector.broadcast %173 : f32 to vector<16x16xf32>
    %175 = arith.mulf %174, %160 : vector<16x16xf32>
    %176 = arith.addf %158, %175 : vector<16x16xf32>
    %c1_45 = arith.constant 1 : index
    %c0_46 = arith.constant 0 : index
    %c0_47 = arith.constant 0 : index
    %177 = vector.load %arg7[%c1_45, %c0_46, %c0_47] : memref<4x18x18xf32, #tpu.memory_space<vmem>>, vector<1x16x16xf32>
    %178 = vector.shape_cast %177 : vector<1x16x16xf32> to vector<16x16xf32>
    %c9 = arith.constant 9 : index
    %179 = memref.load %arg2[%c9] : memref<144xf32, #tpu.memory_space<smem>>
    %180 = vector.broadcast %179 : f32 to vector<16x16xf32>
    %181 = arith.mulf %180, %178 : vector<16x16xf32>
    %182 = arith.addf %164, %181 : vector<16x16xf32>
    %c45 = arith.constant 45 : index
    %183 = memref.load %arg2[%c45] : memref<144xf32, #tpu.memory_space<smem>>
    %184 = vector.broadcast %183 : f32 to vector<16x16xf32>
    %185 = arith.mulf %184, %178 : vector<16x16xf32>
    %186 = arith.addf %168, %185 : vector<16x16xf32>
    %c81 = arith.constant 81 : index
    %187 = memref.load %arg2[%c81] : memref<144xf32, #tpu.memory_space<smem>>
    %188 = vector.broadcast %187 : f32 to vector<16x16xf32>
    %189 = arith.mulf %188, %178 : vector<16x16xf32>
    %190 = arith.addf %172, %189 : vector<16x16xf32>
    %c117 = arith.constant 117 : index
    %191 = memref.load %arg2[%c117] : memref<144xf32, #tpu.memory_space<smem>>
    %192 = vector.broadcast %191 : f32 to vector<16x16xf32>
    %193 = arith.mulf %192, %178 : vector<16x16xf32>
    %194 = arith.addf %176, %193 : vector<16x16xf32>
    %c1_48 = arith.constant 1 : index
    %c0_49 = arith.constant 0 : index
    %c1_50 = arith.constant 1 : index
    %195 = vector.load %arg7[%c1_48, %c0_49, %c1_50] : memref<4x18x18xf32, #tpu.memory_space<vmem>>, vector<1x16x16xf32>
    %196 = vector.shape_cast %195 : vector<1x16x16xf32> to vector<16x16xf32>
    %c10 = arith.constant 10 : index
    %197 = memref.load %arg2[%c10] : memref<144xf32, #tpu.memory_space<smem>>
    %198 = vector.broadcast %197 : f32 to vector<16x16xf32>
    %199 = arith.mulf %198, %196 : vector<16x16xf32>
    %200 = arith.addf %182, %199 : vector<16x16xf32>
    %c46 = arith.constant 46 : index
    %201 = memref.load %arg2[%c46] : memref<144xf32, #tpu.memory_space<smem>>
    %202 = vector.broadcast %201 : f32 to vector<16x16xf32>
    %203 = arith.mulf %202, %196 : vector<16x16xf32>
    %204 = arith.addf %186, %203 : vector<16x16xf32>
    %c82 = arith.constant 82 : index
    %205 = memref.load %arg2[%c82] : memref<144xf32, #tpu.memory_space<smem>>
    %206 = vector.broadcast %205 : f32 to vector<16x16xf32>
    %207 = arith.mulf %206, %196 : vector<16x16xf32>
    %208 = arith.addf %190, %207 : vector<16x16xf32>
    %c118 = arith.constant 118 : index
    %209 = memref.load %arg2[%c118] : memref<144xf32, #tpu.memory_space<smem>>
    %210 = vector.broadcast %209 : f32 to vector<16x16xf32>
    %211 = arith.mulf %210, %196 : vector<16x16xf32>
    %212 = arith.addf %194, %211 : vector<16x16xf32>
    %c1_51 = arith.constant 1 : index
    %c0_52 = arith.constant 0 : index
    %c2_53 = arith.constant 2 : index
    %213 = vector.load %arg7[%c1_51, %c0_52, %c2_53] : memref<4x18x18xf32, #tpu.memory_space<vmem>>, vector<1x16x16xf32>
    %214 = vector.shape_cast %213 : vector<1x16x16xf32> to vector<16x16xf32>
    %c11 = arith.constant 11 : index
    %215 = memref.load %arg2[%c11] : memref<144xf32, #tpu.memory_space<smem>>
    %216 = vector.broadcast %215 : f32 to vector<16x16xf32>
    %217 = arith.mulf %216, %214 : vector<16x16xf32>
    %218 = arith.addf %200, %217 : vector<16x16xf32>
    %c47 = arith.constant 47 : index
    %219 = memref.load %arg2[%c47] : memref<144xf32, #tpu.memory_space<smem>>
    %220 = vector.broadcast %219 : f32 to vector<16x16xf32>
    %221 = arith.mulf %220, %214 : vector<16x16xf32>
    %222 = arith.addf %204, %221 : vector<16x16xf32>
    %c83 = arith.constant 83 : index
    %223 = memref.load %arg2[%c83] : memref<144xf32, #tpu.memory_space<smem>>
    %224 = vector.broadcast %223 : f32 to vector<16x16xf32>
    %225 = arith.mulf %224, %214 : vector<16x16xf32>
    %226 = arith.addf %208, %225 : vector<16x16xf32>
    %c119 = arith.constant 119 : index
    %227 = memref.load %arg2[%c119] : memref<144xf32, #tpu.memory_space<smem>>
    %228 = vector.broadcast %227 : f32 to vector<16x16xf32>
    %229 = arith.mulf %228, %214 : vector<16x16xf32>
    %230 = arith.addf %212, %229 : vector<16x16xf32>
    %c1_54 = arith.constant 1 : index
    %c1_55 = arith.constant 1 : index
    %c0_56 = arith.constant 0 : index
    %231 = vector.load %arg7[%c1_54, %c1_55, %c0_56] : memref<4x18x18xf32, #tpu.memory_space<vmem>>, vector<1x16x16xf32>
    %232 = vector.shape_cast %231 : vector<1x16x16xf32> to vector<16x16xf32>
    %c12 = arith.constant 12 : index
    %233 = memref.load %arg2[%c12] : memref<144xf32, #tpu.memory_space<smem>>
    %234 = vector.broadcast %233 : f32 to vector<16x16xf32>
    %235 = arith.mulf %234, %232 : vector<16x16xf32>
    %236 = arith.addf %218, %235 : vector<16x16xf32>
    %c48 = arith.constant 48 : index
    %237 = memref.load %arg2[%c48] : memref<144xf32, #tpu.memory_space<smem>>
    %238 = vector.broadcast %237 : f32 to vector<16x16xf32>
    %239 = arith.mulf %238, %232 : vector<16x16xf32>
    %240 = arith.addf %222, %239 : vector<16x16xf32>
    %c84 = arith.constant 84 : index
    %241 = memref.load %arg2[%c84] : memref<144xf32, #tpu.memory_space<smem>>
    %242 = vector.broadcast %241 : f32 to vector<16x16xf32>
    %243 = arith.mulf %242, %232 : vector<16x16xf32>
    %244 = arith.addf %226, %243 : vector<16x16xf32>
    %c120 = arith.constant 120 : index
    %245 = memref.load %arg2[%c120] : memref<144xf32, #tpu.memory_space<smem>>
    %246 = vector.broadcast %245 : f32 to vector<16x16xf32>
    %247 = arith.mulf %246, %232 : vector<16x16xf32>
    %248 = arith.addf %230, %247 : vector<16x16xf32>
    %c1_57 = arith.constant 1 : index
    %c1_58 = arith.constant 1 : index
    %c1_59 = arith.constant 1 : index
    %249 = vector.load %arg7[%c1_57, %c1_58, %c1_59] : memref<4x18x18xf32, #tpu.memory_space<vmem>>, vector<1x16x16xf32>
    %250 = vector.shape_cast %249 : vector<1x16x16xf32> to vector<16x16xf32>
    %c13 = arith.constant 13 : index
    %251 = memref.load %arg2[%c13] : memref<144xf32, #tpu.memory_space<smem>>
    %252 = vector.broadcast %251 : f32 to vector<16x16xf32>
    %253 = arith.mulf %252, %250 : vector<16x16xf32>
    %254 = arith.addf %236, %253 : vector<16x16xf32>
    %c49 = arith.constant 49 : index
    %255 = memref.load %arg2[%c49] : memref<144xf32, #tpu.memory_space<smem>>
    %256 = vector.broadcast %255 : f32 to vector<16x16xf32>
    %257 = arith.mulf %256, %250 : vector<16x16xf32>
    %258 = arith.addf %240, %257 : vector<16x16xf32>
    %c85 = arith.constant 85 : index
    %259 = memref.load %arg2[%c85] : memref<144xf32, #tpu.memory_space<smem>>
    %260 = vector.broadcast %259 : f32 to vector<16x16xf32>
    %261 = arith.mulf %260, %250 : vector<16x16xf32>
    %262 = arith.addf %244, %261 : vector<16x16xf32>
    %c121 = arith.constant 121 : index
    %263 = memref.load %arg2[%c121] : memref<144xf32, #tpu.memory_space<smem>>
    %264 = vector.broadcast %263 : f32 to vector<16x16xf32>
    %265 = arith.mulf %264, %250 : vector<16x16xf32>
    %266 = arith.addf %248, %265 : vector<16x16xf32>
    %c1_60 = arith.constant 1 : index
    %c1_61 = arith.constant 1 : index
    %c2_62 = arith.constant 2 : index
    %267 = vector.load %arg7[%c1_60, %c1_61, %c2_62] : memref<4x18x18xf32, #tpu.memory_space<vmem>>, vector<1x16x16xf32>
    %268 = vector.shape_cast %267 : vector<1x16x16xf32> to vector<16x16xf32>
    %c14 = arith.constant 14 : index
    %269 = memref.load %arg2[%c14] : memref<144xf32, #tpu.memory_space<smem>>
    %270 = vector.broadcast %269 : f32 to vector<16x16xf32>
    %271 = arith.mulf %270, %268 : vector<16x16xf32>
    %272 = arith.addf %254, %271 : vector<16x16xf32>
    %c50 = arith.constant 50 : index
    %273 = memref.load %arg2[%c50] : memref<144xf32, #tpu.memory_space<smem>>
    %274 = vector.broadcast %273 : f32 to vector<16x16xf32>
    %275 = arith.mulf %274, %268 : vector<16x16xf32>
    %276 = arith.addf %258, %275 : vector<16x16xf32>
    %c86 = arith.constant 86 : index
    %277 = memref.load %arg2[%c86] : memref<144xf32, #tpu.memory_space<smem>>
    %278 = vector.broadcast %277 : f32 to vector<16x16xf32>
    %279 = arith.mulf %278, %268 : vector<16x16xf32>
    %280 = arith.addf %262, %279 : vector<16x16xf32>
    %c122 = arith.constant 122 : index
    %281 = memref.load %arg2[%c122] : memref<144xf32, #tpu.memory_space<smem>>
    %282 = vector.broadcast %281 : f32 to vector<16x16xf32>
    %283 = arith.mulf %282, %268 : vector<16x16xf32>
    %284 = arith.addf %266, %283 : vector<16x16xf32>
    %c1_63 = arith.constant 1 : index
    %c2_64 = arith.constant 2 : index
    %c0_65 = arith.constant 0 : index
    %285 = vector.load %arg7[%c1_63, %c2_64, %c0_65] : memref<4x18x18xf32, #tpu.memory_space<vmem>>, vector<1x16x16xf32>
    %286 = vector.shape_cast %285 : vector<1x16x16xf32> to vector<16x16xf32>
    %c15 = arith.constant 15 : index
    %287 = memref.load %arg2[%c15] : memref<144xf32, #tpu.memory_space<smem>>
    %288 = vector.broadcast %287 : f32 to vector<16x16xf32>
    %289 = arith.mulf %288, %286 : vector<16x16xf32>
    %290 = arith.addf %272, %289 : vector<16x16xf32>
    %c51 = arith.constant 51 : index
    %291 = memref.load %arg2[%c51] : memref<144xf32, #tpu.memory_space<smem>>
    %292 = vector.broadcast %291 : f32 to vector<16x16xf32>
    %293 = arith.mulf %292, %286 : vector<16x16xf32>
    %294 = arith.addf %276, %293 : vector<16x16xf32>
    %c87 = arith.constant 87 : index
    %295 = memref.load %arg2[%c87] : memref<144xf32, #tpu.memory_space<smem>>
    %296 = vector.broadcast %295 : f32 to vector<16x16xf32>
    %297 = arith.mulf %296, %286 : vector<16x16xf32>
    %298 = arith.addf %280, %297 : vector<16x16xf32>
    %c123 = arith.constant 123 : index
    %299 = memref.load %arg2[%c123] : memref<144xf32, #tpu.memory_space<smem>>
    %300 = vector.broadcast %299 : f32 to vector<16x16xf32>
    %301 = arith.mulf %300, %286 : vector<16x16xf32>
    %302 = arith.addf %284, %301 : vector<16x16xf32>
    %c1_66 = arith.constant 1 : index
    %c2_67 = arith.constant 2 : index
    %c1_68 = arith.constant 1 : index
    %303 = vector.load %arg7[%c1_66, %c2_67, %c1_68] : memref<4x18x18xf32, #tpu.memory_space<vmem>>, vector<1x16x16xf32>
    %304 = vector.shape_cast %303 : vector<1x16x16xf32> to vector<16x16xf32>
    %c16 = arith.constant 16 : index
    %305 = memref.load %arg2[%c16] : memref<144xf32, #tpu.memory_space<smem>>
    %306 = vector.broadcast %305 : f32 to vector<16x16xf32>
    %307 = arith.mulf %306, %304 : vector<16x16xf32>
    %308 = arith.addf %290, %307 : vector<16x16xf32>
    %c52 = arith.constant 52 : index
    %309 = memref.load %arg2[%c52] : memref<144xf32, #tpu.memory_space<smem>>
    %310 = vector.broadcast %309 : f32 to vector<16x16xf32>
    %311 = arith.mulf %310, %304 : vector<16x16xf32>
    %312 = arith.addf %294, %311 : vector<16x16xf32>
    %c88 = arith.constant 88 : index
    %313 = memref.load %arg2[%c88] : memref<144xf32, #tpu.memory_space<smem>>
    %314 = vector.broadcast %313 : f32 to vector<16x16xf32>
    %315 = arith.mulf %314, %304 : vector<16x16xf32>
    %316 = arith.addf %298, %315 : vector<16x16xf32>
    %c124 = arith.constant 124 : index
    %317 = memref.load %arg2[%c124] : memref<144xf32, #tpu.memory_space<smem>>
    %318 = vector.broadcast %317 : f32 to vector<16x16xf32>
    %319 = arith.mulf %318, %304 : vector<16x16xf32>
    %320 = arith.addf %302, %319 : vector<16x16xf32>
    %c1_69 = arith.constant 1 : index
    %c2_70 = arith.constant 2 : index
    %c2_71 = arith.constant 2 : index
    %321 = vector.load %arg7[%c1_69, %c2_70, %c2_71] : memref<4x18x18xf32, #tpu.memory_space<vmem>>, vector<1x16x16xf32>
    %322 = vector.shape_cast %321 : vector<1x16x16xf32> to vector<16x16xf32>
    %c17 = arith.constant 17 : index
    %323 = memref.load %arg2[%c17] : memref<144xf32, #tpu.memory_space<smem>>
    %324 = vector.broadcast %323 : f32 to vector<16x16xf32>
    %325 = arith.mulf %324, %322 : vector<16x16xf32>
    %326 = arith.addf %308, %325 : vector<16x16xf32>
    %c53 = arith.constant 53 : index
    %327 = memref.load %arg2[%c53] : memref<144xf32, #tpu.memory_space<smem>>
    %328 = vector.broadcast %327 : f32 to vector<16x16xf32>
    %329 = arith.mulf %328, %322 : vector<16x16xf32>
    %330 = arith.addf %312, %329 : vector<16x16xf32>
    %c89 = arith.constant 89 : index
    %331 = memref.load %arg2[%c89] : memref<144xf32, #tpu.memory_space<smem>>
    %332 = vector.broadcast %331 : f32 to vector<16x16xf32>
    %333 = arith.mulf %332, %322 : vector<16x16xf32>
    %334 = arith.addf %316, %333 : vector<16x16xf32>
    %c125 = arith.constant 125 : index
    %335 = memref.load %arg2[%c125] : memref<144xf32, #tpu.memory_space<smem>>
    %336 = vector.broadcast %335 : f32 to vector<16x16xf32>
    %337 = arith.mulf %336, %322 : vector<16x16xf32>
    %338 = arith.addf %320, %337 : vector<16x16xf32>
    %c2_72 = arith.constant 2 : index
    %c0_73 = arith.constant 0 : index
    %c0_74 = arith.constant 0 : index
    %339 = vector.load %arg7[%c2_72, %c0_73, %c0_74] : memref<4x18x18xf32, #tpu.memory_space<vmem>>, vector<1x16x16xf32>
    %340 = vector.shape_cast %339 : vector<1x16x16xf32> to vector<16x16xf32>
    %c18 = arith.constant 18 : index
    %341 = memref.load %arg2[%c18] : memref<144xf32, #tpu.memory_space<smem>>
    %342 = vector.broadcast %341 : f32 to vector<16x16xf32>
    %343 = arith.mulf %342, %340 : vector<16x16xf32>
    %344 = arith.addf %326, %343 : vector<16x16xf32>
    %c54 = arith.constant 54 : index
    %345 = memref.load %arg2[%c54] : memref<144xf32, #tpu.memory_space<smem>>
    %346 = vector.broadcast %345 : f32 to vector<16x16xf32>
    %347 = arith.mulf %346, %340 : vector<16x16xf32>
    %348 = arith.addf %330, %347 : vector<16x16xf32>
    %c90 = arith.constant 90 : index
    %349 = memref.load %arg2[%c90] : memref<144xf32, #tpu.memory_space<smem>>
    %350 = vector.broadcast %349 : f32 to vector<16x16xf32>
    %351 = arith.mulf %350, %340 : vector<16x16xf32>
    %352 = arith.addf %334, %351 : vector<16x16xf32>
    %c126 = arith.constant 126 : index
    %353 = memref.load %arg2[%c126] : memref<144xf32, #tpu.memory_space<smem>>
    %354 = vector.broadcast %353 : f32 to vector<16x16xf32>
    %355 = arith.mulf %354, %340 : vector<16x16xf32>
    %356 = arith.addf %338, %355 : vector<16x16xf32>
    %c2_75 = arith.constant 2 : index
    %c0_76 = arith.constant 0 : index
    %c1_77 = arith.constant 1 : index
    %357 = vector.load %arg7[%c2_75, %c0_76, %c1_77] : memref<4x18x18xf32, #tpu.memory_space<vmem>>, vector<1x16x16xf32>
    %358 = vector.shape_cast %357 : vector<1x16x16xf32> to vector<16x16xf32>
    %c19 = arith.constant 19 : index
    %359 = memref.load %arg2[%c19] : memref<144xf32, #tpu.memory_space<smem>>
    %360 = vector.broadcast %359 : f32 to vector<16x16xf32>
    %361 = arith.mulf %360, %358 : vector<16x16xf32>
    %362 = arith.addf %344, %361 : vector<16x16xf32>
    %c55 = arith.constant 55 : index
    %363 = memref.load %arg2[%c55] : memref<144xf32, #tpu.memory_space<smem>>
    %364 = vector.broadcast %363 : f32 to vector<16x16xf32>
    %365 = arith.mulf %364, %358 : vector<16x16xf32>
    %366 = arith.addf %348, %365 : vector<16x16xf32>
    %c91 = arith.constant 91 : index
    %367 = memref.load %arg2[%c91] : memref<144xf32, #tpu.memory_space<smem>>
    %368 = vector.broadcast %367 : f32 to vector<16x16xf32>
    %369 = arith.mulf %368, %358 : vector<16x16xf32>
    %370 = arith.addf %352, %369 : vector<16x16xf32>
    %c127 = arith.constant 127 : index
    %371 = memref.load %arg2[%c127] : memref<144xf32, #tpu.memory_space<smem>>
    %372 = vector.broadcast %371 : f32 to vector<16x16xf32>
    %373 = arith.mulf %372, %358 : vector<16x16xf32>
    %374 = arith.addf %356, %373 : vector<16x16xf32>
    %c2_78 = arith.constant 2 : index
    %c0_79 = arith.constant 0 : index
    %c2_80 = arith.constant 2 : index
    %375 = vector.load %arg7[%c2_78, %c0_79, %c2_80] : memref<4x18x18xf32, #tpu.memory_space<vmem>>, vector<1x16x16xf32>
    %376 = vector.shape_cast %375 : vector<1x16x16xf32> to vector<16x16xf32>
    %c20 = arith.constant 20 : index
    %377 = memref.load %arg2[%c20] : memref<144xf32, #tpu.memory_space<smem>>
    %378 = vector.broadcast %377 : f32 to vector<16x16xf32>
    %379 = arith.mulf %378, %376 : vector<16x16xf32>
    %380 = arith.addf %362, %379 : vector<16x16xf32>
    %c56 = arith.constant 56 : index
    %381 = memref.load %arg2[%c56] : memref<144xf32, #tpu.memory_space<smem>>
    %382 = vector.broadcast %381 : f32 to vector<16x16xf32>
    %383 = arith.mulf %382, %376 : vector<16x16xf32>
    %384 = arith.addf %366, %383 : vector<16x16xf32>
    %c92 = arith.constant 92 : index
    %385 = memref.load %arg2[%c92] : memref<144xf32, #tpu.memory_space<smem>>
    %386 = vector.broadcast %385 : f32 to vector<16x16xf32>
    %387 = arith.mulf %386, %376 : vector<16x16xf32>
    %388 = arith.addf %370, %387 : vector<16x16xf32>
    %c128 = arith.constant 128 : index
    %389 = memref.load %arg2[%c128] : memref<144xf32, #tpu.memory_space<smem>>
    %390 = vector.broadcast %389 : f32 to vector<16x16xf32>
    %391 = arith.mulf %390, %376 : vector<16x16xf32>
    %392 = arith.addf %374, %391 : vector<16x16xf32>
    %c2_81 = arith.constant 2 : index
    %c1_82 = arith.constant 1 : index
    %c0_83 = arith.constant 0 : index
    %393 = vector.load %arg7[%c2_81, %c1_82, %c0_83] : memref<4x18x18xf32, #tpu.memory_space<vmem>>, vector<1x16x16xf32>
    %394 = vector.shape_cast %393 : vector<1x16x16xf32> to vector<16x16xf32>
    %c21 = arith.constant 21 : index
    %395 = memref.load %arg2[%c21] : memref<144xf32, #tpu.memory_space<smem>>
    %396 = vector.broadcast %395 : f32 to vector<16x16xf32>
    %397 = arith.mulf %396, %394 : vector<16x16xf32>
    %398 = arith.addf %380, %397 : vector<16x16xf32>
    %c57 = arith.constant 57 : index
    %399 = memref.load %arg2[%c57] : memref<144xf32, #tpu.memory_space<smem>>
    %400 = vector.broadcast %399 : f32 to vector<16x16xf32>
    %401 = arith.mulf %400, %394 : vector<16x16xf32>
    %402 = arith.addf %384, %401 : vector<16x16xf32>
    %c93 = arith.constant 93 : index
    %403 = memref.load %arg2[%c93] : memref<144xf32, #tpu.memory_space<smem>>
    %404 = vector.broadcast %403 : f32 to vector<16x16xf32>
    %405 = arith.mulf %404, %394 : vector<16x16xf32>
    %406 = arith.addf %388, %405 : vector<16x16xf32>
    %c129 = arith.constant 129 : index
    %407 = memref.load %arg2[%c129] : memref<144xf32, #tpu.memory_space<smem>>
    %408 = vector.broadcast %407 : f32 to vector<16x16xf32>
    %409 = arith.mulf %408, %394 : vector<16x16xf32>
    %410 = arith.addf %392, %409 : vector<16x16xf32>
    %c2_84 = arith.constant 2 : index
    %c1_85 = arith.constant 1 : index
    %c1_86 = arith.constant 1 : index
    %411 = vector.load %arg7[%c2_84, %c1_85, %c1_86] : memref<4x18x18xf32, #tpu.memory_space<vmem>>, vector<1x16x16xf32>
    %412 = vector.shape_cast %411 : vector<1x16x16xf32> to vector<16x16xf32>
    %c22 = arith.constant 22 : index
    %413 = memref.load %arg2[%c22] : memref<144xf32, #tpu.memory_space<smem>>
    %414 = vector.broadcast %413 : f32 to vector<16x16xf32>
    %415 = arith.mulf %414, %412 : vector<16x16xf32>
    %416 = arith.addf %398, %415 : vector<16x16xf32>
    %c58 = arith.constant 58 : index
    %417 = memref.load %arg2[%c58] : memref<144xf32, #tpu.memory_space<smem>>
    %418 = vector.broadcast %417 : f32 to vector<16x16xf32>
    %419 = arith.mulf %418, %412 : vector<16x16xf32>
    %420 = arith.addf %402, %419 : vector<16x16xf32>
    %c94 = arith.constant 94 : index
    %421 = memref.load %arg2[%c94] : memref<144xf32, #tpu.memory_space<smem>>
    %422 = vector.broadcast %421 : f32 to vector<16x16xf32>
    %423 = arith.mulf %422, %412 : vector<16x16xf32>
    %424 = arith.addf %406, %423 : vector<16x16xf32>
    %c130 = arith.constant 130 : index
    %425 = memref.load %arg2[%c130] : memref<144xf32, #tpu.memory_space<smem>>
    %426 = vector.broadcast %425 : f32 to vector<16x16xf32>
    %427 = arith.mulf %426, %412 : vector<16x16xf32>
    %428 = arith.addf %410, %427 : vector<16x16xf32>
    %c2_87 = arith.constant 2 : index
    %c1_88 = arith.constant 1 : index
    %c2_89 = arith.constant 2 : index
    %429 = vector.load %arg7[%c2_87, %c1_88, %c2_89] : memref<4x18x18xf32, #tpu.memory_space<vmem>>, vector<1x16x16xf32>
    %430 = vector.shape_cast %429 : vector<1x16x16xf32> to vector<16x16xf32>
    %c23 = arith.constant 23 : index
    %431 = memref.load %arg2[%c23] : memref<144xf32, #tpu.memory_space<smem>>
    %432 = vector.broadcast %431 : f32 to vector<16x16xf32>
    %433 = arith.mulf %432, %430 : vector<16x16xf32>
    %434 = arith.addf %416, %433 : vector<16x16xf32>
    %c59 = arith.constant 59 : index
    %435 = memref.load %arg2[%c59] : memref<144xf32, #tpu.memory_space<smem>>
    %436 = vector.broadcast %435 : f32 to vector<16x16xf32>
    %437 = arith.mulf %436, %430 : vector<16x16xf32>
    %438 = arith.addf %420, %437 : vector<16x16xf32>
    %c95 = arith.constant 95 : index
    %439 = memref.load %arg2[%c95] : memref<144xf32, #tpu.memory_space<smem>>
    %440 = vector.broadcast %439 : f32 to vector<16x16xf32>
    %441 = arith.mulf %440, %430 : vector<16x16xf32>
    %442 = arith.addf %424, %441 : vector<16x16xf32>
    %c131 = arith.constant 131 : index
    %443 = memref.load %arg2[%c131] : memref<144xf32, #tpu.memory_space<smem>>
    %444 = vector.broadcast %443 : f32 to vector<16x16xf32>
    %445 = arith.mulf %444, %430 : vector<16x16xf32>
    %446 = arith.addf %428, %445 : vector<16x16xf32>
    %c2_90 = arith.constant 2 : index
    %c2_91 = arith.constant 2 : index
    %c0_92 = arith.constant 0 : index
    %447 = vector.load %arg7[%c2_90, %c2_91, %c0_92] : memref<4x18x18xf32, #tpu.memory_space<vmem>>, vector<1x16x16xf32>
    %448 = vector.shape_cast %447 : vector<1x16x16xf32> to vector<16x16xf32>
    %c24 = arith.constant 24 : index
    %449 = memref.load %arg2[%c24] : memref<144xf32, #tpu.memory_space<smem>>
    %450 = vector.broadcast %449 : f32 to vector<16x16xf32>
    %451 = arith.mulf %450, %448 : vector<16x16xf32>
    %452 = arith.addf %434, %451 : vector<16x16xf32>
    %c60 = arith.constant 60 : index
    %453 = memref.load %arg2[%c60] : memref<144xf32, #tpu.memory_space<smem>>
    %454 = vector.broadcast %453 : f32 to vector<16x16xf32>
    %455 = arith.mulf %454, %448 : vector<16x16xf32>
    %456 = arith.addf %438, %455 : vector<16x16xf32>
    %c96 = arith.constant 96 : index
    %457 = memref.load %arg2[%c96] : memref<144xf32, #tpu.memory_space<smem>>
    %458 = vector.broadcast %457 : f32 to vector<16x16xf32>
    %459 = arith.mulf %458, %448 : vector<16x16xf32>
    %460 = arith.addf %442, %459 : vector<16x16xf32>
    %c132 = arith.constant 132 : index
    %461 = memref.load %arg2[%c132] : memref<144xf32, #tpu.memory_space<smem>>
    %462 = vector.broadcast %461 : f32 to vector<16x16xf32>
    %463 = arith.mulf %462, %448 : vector<16x16xf32>
    %464 = arith.addf %446, %463 : vector<16x16xf32>
    %c2_93 = arith.constant 2 : index
    %c2_94 = arith.constant 2 : index
    %c1_95 = arith.constant 1 : index
    %465 = vector.load %arg7[%c2_93, %c2_94, %c1_95] : memref<4x18x18xf32, #tpu.memory_space<vmem>>, vector<1x16x16xf32>
    %466 = vector.shape_cast %465 : vector<1x16x16xf32> to vector<16x16xf32>
    %c25 = arith.constant 25 : index
    %467 = memref.load %arg2[%c25] : memref<144xf32, #tpu.memory_space<smem>>
    %468 = vector.broadcast %467 : f32 to vector<16x16xf32>
    %469 = arith.mulf %468, %466 : vector<16x16xf32>
    %470 = arith.addf %452, %469 : vector<16x16xf32>
    %c61 = arith.constant 61 : index
    %471 = memref.load %arg2[%c61] : memref<144xf32, #tpu.memory_space<smem>>
    %472 = vector.broadcast %471 : f32 to vector<16x16xf32>
    %473 = arith.mulf %472, %466 : vector<16x16xf32>
    %474 = arith.addf %456, %473 : vector<16x16xf32>
    %c97 = arith.constant 97 : index
    %475 = memref.load %arg2[%c97] : memref<144xf32, #tpu.memory_space<smem>>
    %476 = vector.broadcast %475 : f32 to vector<16x16xf32>
    %477 = arith.mulf %476, %466 : vector<16x16xf32>
    %478 = arith.addf %460, %477 : vector<16x16xf32>
    %c133 = arith.constant 133 : index
    %479 = memref.load %arg2[%c133] : memref<144xf32, #tpu.memory_space<smem>>
    %480 = vector.broadcast %479 : f32 to vector<16x16xf32>
    %481 = arith.mulf %480, %466 : vector<16x16xf32>
    %482 = arith.addf %464, %481 : vector<16x16xf32>
    %c2_96 = arith.constant 2 : index
    %c2_97 = arith.constant 2 : index
    %c2_98 = arith.constant 2 : index
    %483 = vector.load %arg7[%c2_96, %c2_97, %c2_98] : memref<4x18x18xf32, #tpu.memory_space<vmem>>, vector<1x16x16xf32>
    %484 = vector.shape_cast %483 : vector<1x16x16xf32> to vector<16x16xf32>
    %c26 = arith.constant 26 : index
    %485 = memref.load %arg2[%c26] : memref<144xf32, #tpu.memory_space<smem>>
    %486 = vector.broadcast %485 : f32 to vector<16x16xf32>
    %487 = arith.mulf %486, %484 : vector<16x16xf32>
    %488 = arith.addf %470, %487 : vector<16x16xf32>
    %c62 = arith.constant 62 : index
    %489 = memref.load %arg2[%c62] : memref<144xf32, #tpu.memory_space<smem>>
    %490 = vector.broadcast %489 : f32 to vector<16x16xf32>
    %491 = arith.mulf %490, %484 : vector<16x16xf32>
    %492 = arith.addf %474, %491 : vector<16x16xf32>
    %c98 = arith.constant 98 : index
    %493 = memref.load %arg2[%c98] : memref<144xf32, #tpu.memory_space<smem>>
    %494 = vector.broadcast %493 : f32 to vector<16x16xf32>
    %495 = arith.mulf %494, %484 : vector<16x16xf32>
    %496 = arith.addf %478, %495 : vector<16x16xf32>
    %c134 = arith.constant 134 : index
    %497 = memref.load %arg2[%c134] : memref<144xf32, #tpu.memory_space<smem>>
    %498 = vector.broadcast %497 : f32 to vector<16x16xf32>
    %499 = arith.mulf %498, %484 : vector<16x16xf32>
    %500 = arith.addf %482, %499 : vector<16x16xf32>
    %c3_99 = arith.constant 3 : index
    %c0_100 = arith.constant 0 : index
    %c0_101 = arith.constant 0 : index
    %501 = vector.load %arg7[%c3_99, %c0_100, %c0_101] : memref<4x18x18xf32, #tpu.memory_space<vmem>>, vector<1x16x16xf32>
    %502 = vector.shape_cast %501 : vector<1x16x16xf32> to vector<16x16xf32>
    %c27 = arith.constant 27 : index
    %503 = memref.load %arg2[%c27] : memref<144xf32, #tpu.memory_space<smem>>
    %504 = vector.broadcast %503 : f32 to vector<16x16xf32>
    %505 = arith.mulf %504, %502 : vector<16x16xf32>
    %506 = arith.addf %488, %505 : vector<16x16xf32>
    %c63 = arith.constant 63 : index
    %507 = memref.load %arg2[%c63] : memref<144xf32, #tpu.memory_space<smem>>
    %508 = vector.broadcast %507 : f32 to vector<16x16xf32>
    %509 = arith.mulf %508, %502 : vector<16x16xf32>
    %510 = arith.addf %492, %509 : vector<16x16xf32>
    %c99 = arith.constant 99 : index
    %511 = memref.load %arg2[%c99] : memref<144xf32, #tpu.memory_space<smem>>
    %512 = vector.broadcast %511 : f32 to vector<16x16xf32>
    %513 = arith.mulf %512, %502 : vector<16x16xf32>
    %514 = arith.addf %496, %513 : vector<16x16xf32>
    %c135 = arith.constant 135 : index
    %515 = memref.load %arg2[%c135] : memref<144xf32, #tpu.memory_space<smem>>
    %516 = vector.broadcast %515 : f32 to vector<16x16xf32>
    %517 = arith.mulf %516, %502 : vector<16x16xf32>
    %518 = arith.addf %500, %517 : vector<16x16xf32>
    %c3_102 = arith.constant 3 : index
    %c0_103 = arith.constant 0 : index
    %c1_104 = arith.constant 1 : index
    %519 = vector.load %arg7[%c3_102, %c0_103, %c1_104] : memref<4x18x18xf32, #tpu.memory_space<vmem>>, vector<1x16x16xf32>
    %520 = vector.shape_cast %519 : vector<1x16x16xf32> to vector<16x16xf32>
    %c28 = arith.constant 28 : index
    %521 = memref.load %arg2[%c28] : memref<144xf32, #tpu.memory_space<smem>>
    %522 = vector.broadcast %521 : f32 to vector<16x16xf32>
    %523 = arith.mulf %522, %520 : vector<16x16xf32>
    %524 = arith.addf %506, %523 : vector<16x16xf32>
    %c64 = arith.constant 64 : index
    %525 = memref.load %arg2[%c64] : memref<144xf32, #tpu.memory_space<smem>>
    %526 = vector.broadcast %525 : f32 to vector<16x16xf32>
    %527 = arith.mulf %526, %520 : vector<16x16xf32>
    %528 = arith.addf %510, %527 : vector<16x16xf32>
    %c100 = arith.constant 100 : index
    %529 = memref.load %arg2[%c100] : memref<144xf32, #tpu.memory_space<smem>>
    %530 = vector.broadcast %529 : f32 to vector<16x16xf32>
    %531 = arith.mulf %530, %520 : vector<16x16xf32>
    %532 = arith.addf %514, %531 : vector<16x16xf32>
    %c136 = arith.constant 136 : index
    %533 = memref.load %arg2[%c136] : memref<144xf32, #tpu.memory_space<smem>>
    %534 = vector.broadcast %533 : f32 to vector<16x16xf32>
    %535 = arith.mulf %534, %520 : vector<16x16xf32>
    %536 = arith.addf %518, %535 : vector<16x16xf32>
    %c3_105 = arith.constant 3 : index
    %c0_106 = arith.constant 0 : index
    %c2_107 = arith.constant 2 : index
    %537 = vector.load %arg7[%c3_105, %c0_106, %c2_107] : memref<4x18x18xf32, #tpu.memory_space<vmem>>, vector<1x16x16xf32>
    %538 = vector.shape_cast %537 : vector<1x16x16xf32> to vector<16x16xf32>
    %c29 = arith.constant 29 : index
    %539 = memref.load %arg2[%c29] : memref<144xf32, #tpu.memory_space<smem>>
    %540 = vector.broadcast %539 : f32 to vector<16x16xf32>
    %541 = arith.mulf %540, %538 : vector<16x16xf32>
    %542 = arith.addf %524, %541 : vector<16x16xf32>
    %c65 = arith.constant 65 : index
    %543 = memref.load %arg2[%c65] : memref<144xf32, #tpu.memory_space<smem>>
    %544 = vector.broadcast %543 : f32 to vector<16x16xf32>
    %545 = arith.mulf %544, %538 : vector<16x16xf32>
    %546 = arith.addf %528, %545 : vector<16x16xf32>
    %c101 = arith.constant 101 : index
    %547 = memref.load %arg2[%c101] : memref<144xf32, #tpu.memory_space<smem>>
    %548 = vector.broadcast %547 : f32 to vector<16x16xf32>
    %549 = arith.mulf %548, %538 : vector<16x16xf32>
    %550 = arith.addf %532, %549 : vector<16x16xf32>
    %c137 = arith.constant 137 : index
    %551 = memref.load %arg2[%c137] : memref<144xf32, #tpu.memory_space<smem>>
    %552 = vector.broadcast %551 : f32 to vector<16x16xf32>
    %553 = arith.mulf %552, %538 : vector<16x16xf32>
    %554 = arith.addf %536, %553 : vector<16x16xf32>
    %c3_108 = arith.constant 3 : index
    %c1_109 = arith.constant 1 : index
    %c0_110 = arith.constant 0 : index
    %555 = vector.load %arg7[%c3_108, %c1_109, %c0_110] : memref<4x18x18xf32, #tpu.memory_space<vmem>>, vector<1x16x16xf32>
    %556 = vector.shape_cast %555 : vector<1x16x16xf32> to vector<16x16xf32>
    %c30 = arith.constant 30 : index
    %557 = memref.load %arg2[%c30] : memref<144xf32, #tpu.memory_space<smem>>
    %558 = vector.broadcast %557 : f32 to vector<16x16xf32>
    %559 = arith.mulf %558, %556 : vector<16x16xf32>
    %560 = arith.addf %542, %559 : vector<16x16xf32>
    %c66 = arith.constant 66 : index
    %561 = memref.load %arg2[%c66] : memref<144xf32, #tpu.memory_space<smem>>
    %562 = vector.broadcast %561 : f32 to vector<16x16xf32>
    %563 = arith.mulf %562, %556 : vector<16x16xf32>
    %564 = arith.addf %546, %563 : vector<16x16xf32>
    %c102 = arith.constant 102 : index
    %565 = memref.load %arg2[%c102] : memref<144xf32, #tpu.memory_space<smem>>
    %566 = vector.broadcast %565 : f32 to vector<16x16xf32>
    %567 = arith.mulf %566, %556 : vector<16x16xf32>
    %568 = arith.addf %550, %567 : vector<16x16xf32>
    %c138 = arith.constant 138 : index
    %569 = memref.load %arg2[%c138] : memref<144xf32, #tpu.memory_space<smem>>
    %570 = vector.broadcast %569 : f32 to vector<16x16xf32>
    %571 = arith.mulf %570, %556 : vector<16x16xf32>
    %572 = arith.addf %554, %571 : vector<16x16xf32>
    %c3_111 = arith.constant 3 : index
    %c1_112 = arith.constant 1 : index
    %c1_113 = arith.constant 1 : index
    %573 = vector.load %arg7[%c3_111, %c1_112, %c1_113] : memref<4x18x18xf32, #tpu.memory_space<vmem>>, vector<1x16x16xf32>
    %574 = vector.shape_cast %573 : vector<1x16x16xf32> to vector<16x16xf32>
    %c31 = arith.constant 31 : index
    %575 = memref.load %arg2[%c31] : memref<144xf32, #tpu.memory_space<smem>>
    %576 = vector.broadcast %575 : f32 to vector<16x16xf32>
    %577 = arith.mulf %576, %574 : vector<16x16xf32>
    %578 = arith.addf %560, %577 : vector<16x16xf32>
    %c67 = arith.constant 67 : index
    %579 = memref.load %arg2[%c67] : memref<144xf32, #tpu.memory_space<smem>>
    %580 = vector.broadcast %579 : f32 to vector<16x16xf32>
    %581 = arith.mulf %580, %574 : vector<16x16xf32>
    %582 = arith.addf %564, %581 : vector<16x16xf32>
    %c103 = arith.constant 103 : index
    %583 = memref.load %arg2[%c103] : memref<144xf32, #tpu.memory_space<smem>>
    %584 = vector.broadcast %583 : f32 to vector<16x16xf32>
    %585 = arith.mulf %584, %574 : vector<16x16xf32>
    %586 = arith.addf %568, %585 : vector<16x16xf32>
    %c139 = arith.constant 139 : index
    %587 = memref.load %arg2[%c139] : memref<144xf32, #tpu.memory_space<smem>>
    %588 = vector.broadcast %587 : f32 to vector<16x16xf32>
    %589 = arith.mulf %588, %574 : vector<16x16xf32>
    %590 = arith.addf %572, %589 : vector<16x16xf32>
    %c3_114 = arith.constant 3 : index
    %c1_115 = arith.constant 1 : index
    %c2_116 = arith.constant 2 : index
    %591 = vector.load %arg7[%c3_114, %c1_115, %c2_116] : memref<4x18x18xf32, #tpu.memory_space<vmem>>, vector<1x16x16xf32>
    %592 = vector.shape_cast %591 : vector<1x16x16xf32> to vector<16x16xf32>
    %c32 = arith.constant 32 : index
    %593 = memref.load %arg2[%c32] : memref<144xf32, #tpu.memory_space<smem>>
    %594 = vector.broadcast %593 : f32 to vector<16x16xf32>
    %595 = arith.mulf %594, %592 : vector<16x16xf32>
    %596 = arith.addf %578, %595 : vector<16x16xf32>
    %c68 = arith.constant 68 : index
    %597 = memref.load %arg2[%c68] : memref<144xf32, #tpu.memory_space<smem>>
    %598 = vector.broadcast %597 : f32 to vector<16x16xf32>
    %599 = arith.mulf %598, %592 : vector<16x16xf32>
    %600 = arith.addf %582, %599 : vector<16x16xf32>
    %c104 = arith.constant 104 : index
    %601 = memref.load %arg2[%c104] : memref<144xf32, #tpu.memory_space<smem>>
    %602 = vector.broadcast %601 : f32 to vector<16x16xf32>
    %603 = arith.mulf %602, %592 : vector<16x16xf32>
    %604 = arith.addf %586, %603 : vector<16x16xf32>
    %c140 = arith.constant 140 : index
    %605 = memref.load %arg2[%c140] : memref<144xf32, #tpu.memory_space<smem>>
    %606 = vector.broadcast %605 : f32 to vector<16x16xf32>
    %607 = arith.mulf %606, %592 : vector<16x16xf32>
    %608 = arith.addf %590, %607 : vector<16x16xf32>
    %c3_117 = arith.constant 3 : index
    %c2_118 = arith.constant 2 : index
    %c0_119 = arith.constant 0 : index
    %609 = vector.load %arg7[%c3_117, %c2_118, %c0_119] : memref<4x18x18xf32, #tpu.memory_space<vmem>>, vector<1x16x16xf32>
    %610 = vector.shape_cast %609 : vector<1x16x16xf32> to vector<16x16xf32>
    %c33 = arith.constant 33 : index
    %611 = memref.load %arg2[%c33] : memref<144xf32, #tpu.memory_space<smem>>
    %612 = vector.broadcast %611 : f32 to vector<16x16xf32>
    %613 = arith.mulf %612, %610 : vector<16x16xf32>
    %614 = arith.addf %596, %613 : vector<16x16xf32>
    %c69 = arith.constant 69 : index
    %615 = memref.load %arg2[%c69] : memref<144xf32, #tpu.memory_space<smem>>
    %616 = vector.broadcast %615 : f32 to vector<16x16xf32>
    %617 = arith.mulf %616, %610 : vector<16x16xf32>
    %618 = arith.addf %600, %617 : vector<16x16xf32>
    %c105 = arith.constant 105 : index
    %619 = memref.load %arg2[%c105] : memref<144xf32, #tpu.memory_space<smem>>
    %620 = vector.broadcast %619 : f32 to vector<16x16xf32>
    %621 = arith.mulf %620, %610 : vector<16x16xf32>
    %622 = arith.addf %604, %621 : vector<16x16xf32>
    %c141 = arith.constant 141 : index
    %623 = memref.load %arg2[%c141] : memref<144xf32, #tpu.memory_space<smem>>
    %624 = vector.broadcast %623 : f32 to vector<16x16xf32>
    %625 = arith.mulf %624, %610 : vector<16x16xf32>
    %626 = arith.addf %608, %625 : vector<16x16xf32>
    %c3_120 = arith.constant 3 : index
    %c2_121 = arith.constant 2 : index
    %c1_122 = arith.constant 1 : index
    %627 = vector.load %arg7[%c3_120, %c2_121, %c1_122] : memref<4x18x18xf32, #tpu.memory_space<vmem>>, vector<1x16x16xf32>
    %628 = vector.shape_cast %627 : vector<1x16x16xf32> to vector<16x16xf32>
    %c34 = arith.constant 34 : index
    %629 = memref.load %arg2[%c34] : memref<144xf32, #tpu.memory_space<smem>>
    %630 = vector.broadcast %629 : f32 to vector<16x16xf32>
    %631 = arith.mulf %630, %628 : vector<16x16xf32>
    %632 = arith.addf %614, %631 : vector<16x16xf32>
    %c70 = arith.constant 70 : index
    %633 = memref.load %arg2[%c70] : memref<144xf32, #tpu.memory_space<smem>>
    %634 = vector.broadcast %633 : f32 to vector<16x16xf32>
    %635 = arith.mulf %634, %628 : vector<16x16xf32>
    %636 = arith.addf %618, %635 : vector<16x16xf32>
    %c106 = arith.constant 106 : index
    %637 = memref.load %arg2[%c106] : memref<144xf32, #tpu.memory_space<smem>>
    %638 = vector.broadcast %637 : f32 to vector<16x16xf32>
    %639 = arith.mulf %638, %628 : vector<16x16xf32>
    %640 = arith.addf %622, %639 : vector<16x16xf32>
    %c142 = arith.constant 142 : index
    %641 = memref.load %arg2[%c142] : memref<144xf32, #tpu.memory_space<smem>>
    %642 = vector.broadcast %641 : f32 to vector<16x16xf32>
    %643 = arith.mulf %642, %628 : vector<16x16xf32>
    %644 = arith.addf %626, %643 : vector<16x16xf32>
    %c3_123 = arith.constant 3 : index
    %c2_124 = arith.constant 2 : index
    %c2_125 = arith.constant 2 : index
    %645 = vector.load %arg7[%c3_123, %c2_124, %c2_125] : memref<4x18x18xf32, #tpu.memory_space<vmem>>, vector<1x16x16xf32>
    %646 = vector.shape_cast %645 : vector<1x16x16xf32> to vector<16x16xf32>
    %c35 = arith.constant 35 : index
    %647 = memref.load %arg2[%c35] : memref<144xf32, #tpu.memory_space<smem>>
    %648 = vector.broadcast %647 : f32 to vector<16x16xf32>
    %649 = arith.mulf %648, %646 : vector<16x16xf32>
    %650 = arith.addf %632, %649 : vector<16x16xf32>
    %c71 = arith.constant 71 : index
    %651 = memref.load %arg2[%c71] : memref<144xf32, #tpu.memory_space<smem>>
    %652 = vector.broadcast %651 : f32 to vector<16x16xf32>
    %653 = arith.mulf %652, %646 : vector<16x16xf32>
    %654 = arith.addf %636, %653 : vector<16x16xf32>
    %c107 = arith.constant 107 : index
    %655 = memref.load %arg2[%c107] : memref<144xf32, #tpu.memory_space<smem>>
    %656 = vector.broadcast %655 : f32 to vector<16x16xf32>
    %657 = arith.mulf %656, %646 : vector<16x16xf32>
    %658 = arith.addf %640, %657 : vector<16x16xf32>
    %c143 = arith.constant 143 : index
    %659 = memref.load %arg2[%c143] : memref<144xf32, #tpu.memory_space<smem>>
    %660 = vector.broadcast %659 : f32 to vector<16x16xf32>
    %661 = arith.mulf %660, %646 : vector<16x16xf32>
    %662 = arith.addf %644, %661 : vector<16x16xf32>
    %cst_126 = arith.constant 0.000000e+00 : f32
    %663 = vector.broadcast %cst_126 : f32 to vector<16x16xf32>
    %664 = arith.cmpf oge, %650, %663 : vector<16x16xf32>
    %cst_127 = arith.constant 2.000000e-01 : f32
    %665 = vector.broadcast %cst_127 : f32 to vector<16x16xf32>
    %666 = arith.mulf %665, %650 : vector<16x16xf32>
    %667 = arith.select %664, %650, %666 : vector<16x16xi1>, vector<16x16xf32>
    %cst_128 = arith.constant 0.000000e+00 : f32
    %668 = vector.broadcast %cst_128 : f32 to vector<16x16xf32>
    %669 = arith.cmpf oge, %654, %668 : vector<16x16xf32>
    %cst_129 = arith.constant 2.000000e-01 : f32
    %670 = vector.broadcast %cst_129 : f32 to vector<16x16xf32>
    %671 = arith.mulf %670, %654 : vector<16x16xf32>
    %672 = arith.select %669, %654, %671 : vector<16x16xi1>, vector<16x16xf32>
    %cst_130 = arith.constant 0.000000e+00 : f32
    %673 = vector.broadcast %cst_130 : f32 to vector<16x16xf32>
    %674 = arith.cmpf oge, %658, %673 : vector<16x16xf32>
    %cst_131 = arith.constant 2.000000e-01 : f32
    %675 = vector.broadcast %cst_131 : f32 to vector<16x16xf32>
    %676 = arith.mulf %675, %658 : vector<16x16xf32>
    %677 = arith.select %674, %658, %676 : vector<16x16xi1>, vector<16x16xf32>
    %cst_132 = arith.constant 0.000000e+00 : f32
    %678 = vector.broadcast %cst_132 : f32 to vector<16x16xf32>
    %679 = arith.cmpf oge, %662, %678 : vector<16x16xf32>
    %cst_133 = arith.constant 2.000000e-01 : f32
    %680 = vector.broadcast %cst_133 : f32 to vector<16x16xf32>
    %681 = arith.mulf %680, %662 : vector<16x16xf32>
    %682 = arith.select %679, %662, %681 : vector<16x16xi1>, vector<16x16xf32>
    %c0_134 = arith.constant 0 : index
    %c1_135 = arith.constant 1 : index
    %c1_136 = arith.constant 1 : index
    %683 = vector.load %arg8[%c0_134, %c1_135, %c1_136] : memref<4x18x18xf32, #tpu.memory_space<vmem>>, vector<1x16x16xf32>
    %684 = vector.shape_cast %683 : vector<1x16x16xf32> to vector<16x16xf32>
    %685 = vector.shape_cast %667 : vector<16x16xf32> to vector<1x16x16xf32>
    tpu.vector_store %arg8[%c0_134, %c1_135, %c1_136], %685 {strides = array<i32>} : memref<4x18x18xf32, #tpu.memory_space<vmem>>, vector<1x16x16xf32>,
    %c1_137 = arith.constant 1 : index
    %c1_138 = arith.constant 1 : index
    %c1_139 = arith.constant 1 : index
    %686 = vector.load %arg8[%c1_137, %c1_138, %c1_139] : memref<4x18x18xf32, #tpu.memory_space<vmem>>, vector<1x16x16xf32>
    %687 = vector.shape_cast %686 : vector<1x16x16xf32> to vector<16x16xf32>
    %688 = vector.shape_cast %672 : vector<16x16xf32> to vector<1x16x16xf32>
    tpu.vector_store %arg8[%c1_137, %c1_138, %c1_139], %688 {strides = array<i32>} : memref<4x18x18xf32, #tpu.memory_space<vmem>>, vector<1x16x16xf32>,
    %c2_140 = arith.constant 2 : index
    %c1_141 = arith.constant 1 : index
    %c1_142 = arith.constant 1 : index
    %689 = vector.load %arg8[%c2_140, %c1_141, %c1_142] : memref<4x18x18xf32, #tpu.memory_space<vmem>>, vector<1x16x16xf32>
    %690 = vector.shape_cast %689 : vector<1x16x16xf32> to vector<16x16xf32>
    %691 = vector.shape_cast %677 : vector<16x16xf32> to vector<1x16x16xf32>
    tpu.vector_store %arg8[%c2_140, %c1_141, %c1_142], %691 {strides = array<i32>} : memref<4x18x18xf32, #tpu.memory_space<vmem>>, vector<1x16x16xf32>,
    %c3_143 = arith.constant 3 : index
    %c1_144 = arith.constant 1 : index
    %c1_145 = arith.constant 1 : index
    %692 = vector.load %arg8[%c3_143, %c1_144, %c1_145] : memref<4x18x18xf32, #tpu.memory_space<vmem>>, vector<1x16x16xf32>
    %693 = vector.shape_cast %692 : vector<1x16x16xf32> to vector<16x16xf32>
    %694 = vector.shape_cast %682 : vector<16x16xf32> to vector<1x16x16xf32>
    tpu.vector_store %arg8[%c3_143, %c1_144, %c1_145], %694 {strides = array<i32>} : memref<4x18x18xf32, #tpu.memory_space<vmem>>, vector<1x16x16xf32>,
    %c0_146 = arith.constant 0 : index
    %695 = memref.load %arg5[%c0_146] : memref<4xf32, #tpu.memory_space<smem>>
    %696 = vector.broadcast %695 : f32 to vector<16x16xf32>
    %c1_147 = arith.constant 1 : index
    %697 = memref.load %arg5[%c1_147] : memref<4xf32, #tpu.memory_space<smem>>
    %698 = vector.broadcast %697 : f32 to vector<16x16xf32>
    %c2_148 = arith.constant 2 : index
    %699 = memref.load %arg5[%c2_148] : memref<4xf32, #tpu.memory_space<smem>>
    %700 = vector.broadcast %699 : f32 to vector<16x16xf32>
    %c3_149 = arith.constant 3 : index
    %701 = memref.load %arg5[%c3_149] : memref<4xf32, #tpu.memory_space<smem>>
    %702 = vector.broadcast %701 : f32 to vector<16x16xf32>
    %c0_150 = arith.constant 0 : index
    %c0_151 = arith.constant 0 : index
    %c0_152 = arith.constant 0 : index
    %703 = vector.load %arg8[%c0_150, %c0_151, %c0_152] : memref<4x18x18xf32, #tpu.memory_space<vmem>>, vector<1x16x16xf32>
    %704 = vector.shape_cast %703 : vector<1x16x16xf32> to vector<16x16xf32>
    %c0_153 = arith.constant 0 : index
    %705 = memref.load %arg4[%c0_153] : memref<144xf32, #tpu.memory_space<smem>>
    %706 = vector.broadcast %705 : f32 to vector<16x16xf32>
    %707 = arith.mulf %706, %704 : vector<16x16xf32>
    %708 = arith.addf %696, %707 : vector<16x16xf32>
    %c36_154 = arith.constant 36 : index
    %709 = memref.load %arg4[%c36_154] : memref<144xf32, #tpu.memory_space<smem>>
    %710 = vector.broadcast %709 : f32 to vector<16x16xf32>
    %711 = arith.mulf %710, %704 : vector<16x16xf32>
    %712 = arith.addf %698, %711 : vector<16x16xf32>
    %c72_155 = arith.constant 72 : index
    %713 = memref.load %arg4[%c72_155] : memref<144xf32, #tpu.memory_space<smem>>
    %714 = vector.broadcast %713 : f32 to vector<16x16xf32>
    %715 = arith.mulf %714, %704 : vector<16x16xf32>
    %716 = arith.addf %700, %715 : vector<16x16xf32>
    %c108_156 = arith.constant 108 : index
    %717 = memref.load %arg4[%c108_156] : memref<144xf32, #tpu.memory_space<smem>>
    %718 = vector.broadcast %717 : f32 to vector<16x16xf32>
    %719 = arith.mulf %718, %704 : vector<16x16xf32>
    %720 = arith.addf %702, %719 : vector<16x16xf32>
    %c0_157 = arith.constant 0 : index
    %c0_158 = arith.constant 0 : index
    %c1_159 = arith.constant 1 : index
    %721 = vector.load %arg8[%c0_157, %c0_158, %c1_159] : memref<4x18x18xf32, #tpu.memory_space<vmem>>, vector<1x16x16xf32>
    %722 = vector.shape_cast %721 : vector<1x16x16xf32> to vector<16x16xf32>
    %c1_160 = arith.constant 1 : index
    %723 = memref.load %arg4[%c1_160] : memref<144xf32, #tpu.memory_space<smem>>
    %724 = vector.broadcast %723 : f32 to vector<16x16xf32>
    %725 = arith.mulf %724, %722 : vector<16x16xf32>
    %726 = arith.addf %708, %725 : vector<16x16xf32>
    %c37_161 = arith.constant 37 : index
    %727 = memref.load %arg4[%c37_161] : memref<144xf32, #tpu.memory_space<smem>>
    %728 = vector.broadcast %727 : f32 to vector<16x16xf32>
    %729 = arith.mulf %728, %722 : vector<16x16xf32>
    %730 = arith.addf %712, %729 : vector<16x16xf32>
    %c73_162 = arith.constant 73 : index
    %731 = memref.load %arg4[%c73_162] : memref<144xf32, #tpu.memory_space<smem>>
    %732 = vector.broadcast %731 : f32 to vector<16x16xf32>
    %733 = arith.mulf %732, %722 : vector<16x16xf32>
    %734 = arith.addf %716, %733 : vector<16x16xf32>
    %c109_163 = arith.constant 109 : index
    %735 = memref.load %arg4[%c109_163] : memref<144xf32, #tpu.memory_space<smem>>
    %736 = vector.broadcast %735 : f32 to vector<16x16xf32>
    %737 = arith.mulf %736, %722 : vector<16x16xf32>
    %738 = arith.addf %720, %737 : vector<16x16xf32>
    %c0_164 = arith.constant 0 : index
    %c0_165 = arith.constant 0 : index
    %c2_166 = arith.constant 2 : index
    %739 = vector.load %arg8[%c0_164, %c0_165, %c2_166] : memref<4x18x18xf32, #tpu.memory_space<vmem>>, vector<1x16x16xf32>
    %740 = vector.shape_cast %739 : vector<1x16x16xf32> to vector<16x16xf32>
    %c2_167 = arith.constant 2 : index
    %741 = memref.load %arg4[%c2_167] : memref<144xf32, #tpu.memory_space<smem>>
    %742 = vector.broadcast %741 : f32 to vector<16x16xf32>
    %743 = arith.mulf %742, %740 : vector<16x16xf32>
    %744 = arith.addf %726, %743 : vector<16x16xf32>
    %c38_168 = arith.constant 38 : index
    %745 = memref.load %arg4[%c38_168] : memref<144xf32, #tpu.memory_space<smem>>
    %746 = vector.broadcast %745 : f32 to vector<16x16xf32>
    %747 = arith.mulf %746, %740 : vector<16x16xf32>
    %748 = arith.addf %730, %747 : vector<16x16xf32>
    %c74_169 = arith.constant 74 : index
    %749 = memref.load %arg4[%c74_169] : memref<144xf32, #tpu.memory_space<smem>>
    %750 = vector.broadcast %749 : f32 to vector<16x16xf32>
    %751 = arith.mulf %750, %740 : vector<16x16xf32>
    %752 = arith.addf %734, %751 : vector<16x16xf32>
    %c110_170 = arith.constant 110 : index
    %753 = memref.load %arg4[%c110_170] : memref<144xf32, #tpu.memory_space<smem>>
    %754 = vector.broadcast %753 : f32 to vector<16x16xf32>
    %755 = arith.mulf %754, %740 : vector<16x16xf32>
    %756 = arith.addf %738, %755 : vector<16x16xf32>
    %c0_171 = arith.constant 0 : index
    %c1_172 = arith.constant 1 : index
    %c0_173 = arith.constant 0 : index
    %757 = vector.load %arg8[%c0_171, %c1_172, %c0_173] : memref<4x18x18xf32, #tpu.memory_space<vmem>>, vector<1x16x16xf32>
    %758 = vector.shape_cast %757 : vector<1x16x16xf32> to vector<16x16xf32>
    %c3_174 = arith.constant 3 : index
    %759 = memref.load %arg4[%c3_174] : memref<144xf32, #tpu.memory_space<smem>>
    %760 = vector.broadcast %759 : f32 to vector<16x16xf32>
    %761 = arith.mulf %760, %758 : vector<16x16xf32>
    %762 = arith.addf %744, %761 : vector<16x16xf32>
    %c39_175 = arith.constant 39 : index
    %763 = memref.load %arg4[%c39_175] : memref<144xf32, #tpu.memory_space<smem>>
    %764 = vector.broadcast %763 : f32 to vector<16x16xf32>
    %765 = arith.mulf %764, %758 : vector<16x16xf32>
    %766 = arith.addf %748, %765 : vector<16x16xf32>
    %c75_176 = arith.constant 75 : index
    %767 = memref.load %arg4[%c75_176] : memref<144xf32, #tpu.memory_space<smem>>
    %768 = vector.broadcast %767 : f32 to vector<16x16xf32>
    %769 = arith.mulf %768, %758 : vector<16x16xf32>
    %770 = arith.addf %752, %769 : vector<16x16xf32>
    %c111_177 = arith.constant 111 : index
    %771 = memref.load %arg4[%c111_177] : memref<144xf32, #tpu.memory_space<smem>>
    %772 = vector.broadcast %771 : f32 to vector<16x16xf32>
    %773 = arith.mulf %772, %758 : vector<16x16xf32>
    %774 = arith.addf %756, %773 : vector<16x16xf32>
    %c0_178 = arith.constant 0 : index
    %c1_179 = arith.constant 1 : index
    %c1_180 = arith.constant 1 : index
    %775 = vector.load %arg8[%c0_178, %c1_179, %c1_180] : memref<4x18x18xf32, #tpu.memory_space<vmem>>, vector<1x16x16xf32>
    %776 = vector.shape_cast %775 : vector<1x16x16xf32> to vector<16x16xf32>
    %c4_181 = arith.constant 4 : index
    %777 = memref.load %arg4[%c4_181] : memref<144xf32, #tpu.memory_space<smem>>
    %778 = vector.broadcast %777 : f32 to vector<16x16xf32>
    %779 = arith.mulf %778, %776 : vector<16x16xf32>
    %780 = arith.addf %762, %779 : vector<16x16xf32>
    %c40_182 = arith.constant 40 : index
    %781 = memref.load %arg4[%c40_182] : memref<144xf32, #tpu.memory_space<smem>>
    %782 = vector.broadcast %781 : f32 to vector<16x16xf32>
    %783 = arith.mulf %782, %776 : vector<16x16xf32>
    %784 = arith.addf %766, %783 : vector<16x16xf32>
    %c76_183 = arith.constant 76 : index
    %785 = memref.load %arg4[%c76_183] : memref<144xf32, #tpu.memory_space<smem>>
    %786 = vector.broadcast %785 : f32 to vector<16x16xf32>
    %787 = arith.mulf %786, %776 : vector<16x16xf32>
    %788 = arith.addf %770, %787 : vector<16x16xf32>
    %c112_184 = arith.constant 112 : index
    %789 = memref.load %arg4[%c112_184] : memref<144xf32, #tpu.memory_space<smem>>
    %790 = vector.broadcast %789 : f32 to vector<16x16xf32>
    %791 = arith.mulf %790, %776 : vector<16x16xf32>
    %792 = arith.addf %774, %791 : vector<16x16xf32>
    %c0_185 = arith.constant 0 : index
    %c1_186 = arith.constant 1 : index
    %c2_187 = arith.constant 2 : index
    %793 = vector.load %arg8[%c0_185, %c1_186, %c2_187] : memref<4x18x18xf32, #tpu.memory_space<vmem>>, vector<1x16x16xf32>
    %794 = vector.shape_cast %793 : vector<1x16x16xf32> to vector<16x16xf32>
    %c5_188 = arith.constant 5 : index
    %795 = memref.load %arg4[%c5_188] : memref<144xf32, #tpu.memory_space<smem>>
    %796 = vector.broadcast %795 : f32 to vector<16x16xf32>
    %797 = arith.mulf %796, %794 : vector<16x16xf32>
    %798 = arith.addf %780, %797 : vector<16x16xf32>
    %c41_189 = arith.constant 41 : index
    %799 = memref.load %arg4[%c41_189] : memref<144xf32, #tpu.memory_space<smem>>
    %800 = vector.broadcast %799 : f32 to vector<16x16xf32>
    %801 = arith.mulf %800, %794 : vector<16x16xf32>
    %802 = arith.addf %784, %801 : vector<16x16xf32>
    %c77_190 = arith.constant 77 : index
    %803 = memref.load %arg4[%c77_190] : memref<144xf32, #tpu.memory_space<smem>>
    %804 = vector.broadcast %803 : f32 to vector<16x16xf32>
    %805 = arith.mulf %804, %794 : vector<16x16xf32>
    %806 = arith.addf %788, %805 : vector<16x16xf32>
    %c113_191 = arith.constant 113 : index
    %807 = memref.load %arg4[%c113_191] : memref<144xf32, #tpu.memory_space<smem>>
    %808 = vector.broadcast %807 : f32 to vector<16x16xf32>
    %809 = arith.mulf %808, %794 : vector<16x16xf32>
    %810 = arith.addf %792, %809 : vector<16x16xf32>
    %c0_192 = arith.constant 0 : index
    %c2_193 = arith.constant 2 : index
    %c0_194 = arith.constant 0 : index
    %811 = vector.load %arg8[%c0_192, %c2_193, %c0_194] : memref<4x18x18xf32, #tpu.memory_space<vmem>>, vector<1x16x16xf32>
    %812 = vector.shape_cast %811 : vector<1x16x16xf32> to vector<16x16xf32>
    %c6_195 = arith.constant 6 : index
    %813 = memref.load %arg4[%c6_195] : memref<144xf32, #tpu.memory_space<smem>>
    %814 = vector.broadcast %813 : f32 to vector<16x16xf32>
    %815 = arith.mulf %814, %812 : vector<16x16xf32>
    %816 = arith.addf %798, %815 : vector<16x16xf32>
    %c42_196 = arith.constant 42 : index
    %817 = memref.load %arg4[%c42_196] : memref<144xf32, #tpu.memory_space<smem>>
    %818 = vector.broadcast %817 : f32 to vector<16x16xf32>
    %819 = arith.mulf %818, %812 : vector<16x16xf32>
    %820 = arith.addf %802, %819 : vector<16x16xf32>
    %c78_197 = arith.constant 78 : index
    %821 = memref.load %arg4[%c78_197] : memref<144xf32, #tpu.memory_space<smem>>
    %822 = vector.broadcast %821 : f32 to vector<16x16xf32>
    %823 = arith.mulf %822, %812 : vector<16x16xf32>
    %824 = arith.addf %806, %823 : vector<16x16xf32>
    %c114_198 = arith.constant 114 : index
    %825 = memref.load %arg4[%c114_198] : memref<144xf32, #tpu.memory_space<smem>>
    %826 = vector.broadcast %825 : f32 to vector<16x16xf32>
    %827 = arith.mulf %826, %812 : vector<16x16xf32>
    %828 = arith.addf %810, %827 : vector<16x16xf32>
    %c0_199 = arith.constant 0 : index
    %c2_200 = arith.constant 2 : index
    %c1_201 = arith.constant 1 : index
    %829 = vector.load %arg8[%c0_199, %c2_200, %c1_201] : memref<4x18x18xf32, #tpu.memory_space<vmem>>, vector<1x16x16xf32>
    %830 = vector.shape_cast %829 : vector<1x16x16xf32> to vector<16x16xf32>
    %c7_202 = arith.constant 7 : index
    %831 = memref.load %arg4[%c7_202] : memref<144xf32, #tpu.memory_space<smem>>
    %832 = vector.broadcast %831 : f32 to vector<16x16xf32>
    %833 = arith.mulf %832, %830 : vector<16x16xf32>
    %834 = arith.addf %816, %833 : vector<16x16xf32>
    %c43_203 = arith.constant 43 : index
    %835 = memref.load %arg4[%c43_203] : memref<144xf32, #tpu.memory_space<smem>>
    %836 = vector.broadcast %835 : f32 to vector<16x16xf32>
    %837 = arith.mulf %836, %830 : vector<16x16xf32>
    %838 = arith.addf %820, %837 : vector<16x16xf32>
    %c79_204 = arith.constant 79 : index
    %839 = memref.load %arg4[%c79_204] : memref<144xf32, #tpu.memory_space<smem>>
    %840 = vector.broadcast %839 : f32 to vector<16x16xf32>
    %841 = arith.mulf %840, %830 : vector<16x16xf32>
    %842 = arith.addf %824, %841 : vector<16x16xf32>
    %c115_205 = arith.constant 115 : index
    %843 = memref.load %arg4[%c115_205] : memref<144xf32, #tpu.memory_space<smem>>
    %844 = vector.broadcast %843 : f32 to vector<16x16xf32>
    %845 = arith.mulf %844, %830 : vector<16x16xf32>
    %846 = arith.addf %828, %845 : vector<16x16xf32>
    %c0_206 = arith.constant 0 : index
    %c2_207 = arith.constant 2 : index
    %c2_208 = arith.constant 2 : index
    %847 = vector.load %arg8[%c0_206, %c2_207, %c2_208] : memref<4x18x18xf32, #tpu.memory_space<vmem>>, vector<1x16x16xf32>
    %848 = vector.shape_cast %847 : vector<1x16x16xf32> to vector<16x16xf32>
    %c8_209 = arith.constant 8 : index
    %849 = memref.load %arg4[%c8_209] : memref<144xf32, #tpu.memory_space<smem>>
    %850 = vector.broadcast %849 : f32 to vector<16x16xf32>
    %851 = arith.mulf %850, %848 : vector<16x16xf32>
    %852 = arith.addf %834, %851 : vector<16x16xf32>
    %c44_210 = arith.constant 44 : index
    %853 = memref.load %arg4[%c44_210] : memref<144xf32, #tpu.memory_space<smem>>
    %854 = vector.broadcast %853 : f32 to vector<16x16xf32>
    %855 = arith.mulf %854, %848 : vector<16x16xf32>
    %856 = arith.addf %838, %855 : vector<16x16xf32>
    %c80_211 = arith.constant 80 : index
    %857 = memref.load %arg4[%c80_211] : memref<144xf32, #tpu.memory_space<smem>>
    %858 = vector.broadcast %857 : f32 to vector<16x16xf32>
    %859 = arith.mulf %858, %848 : vector<16x16xf32>
    %860 = arith.addf %842, %859 : vector<16x16xf32>
    %c116_212 = arith.constant 116 : index
    %861 = memref.load %arg4[%c116_212] : memref<144xf32, #tpu.memory_space<smem>>
    %862 = vector.broadcast %861 : f32 to vector<16x16xf32>
    %863 = arith.mulf %862, %848 : vector<16x16xf32>
    %864 = arith.addf %846, %863 : vector<16x16xf32>
    %c1_213 = arith.constant 1 : index
    %c0_214 = arith.constant 0 : index
    %c0_215 = arith.constant 0 : index
    %865 = vector.load %arg8[%c1_213, %c0_214, %c0_215] : memref<4x18x18xf32, #tpu.memory_space<vmem>>, vector<1x16x16xf32>
    %866 = vector.shape_cast %865 : vector<1x16x16xf32> to vector<16x16xf32>
    %c9_216 = arith.constant 9 : index
    %867 = memref.load %arg4[%c9_216] : memref<144xf32, #tpu.memory_space<smem>>
    %868 = vector.broadcast %867 : f32 to vector<16x16xf32>
    %869 = arith.mulf %868, %866 : vector<16x16xf32>
    %870 = arith.addf %852, %869 : vector<16x16xf32>
    %c45_217 = arith.constant 45 : index
    %871 = memref.load %arg4[%c45_217] : memref<144xf32, #tpu.memory_space<smem>>
    %872 = vector.broadcast %871 : f32 to vector<16x16xf32>
    %873 = arith.mulf %872, %866 : vector<16x16xf32>
    %874 = arith.addf %856, %873 : vector<16x16xf32>
    %c81_218 = arith.constant 81 : index
    %875 = memref.load %arg4[%c81_218] : memref<144xf32, #tpu.memory_space<smem>>
    %876 = vector.broadcast %875 : f32 to vector<16x16xf32>
    %877 = arith.mulf %876, %866 : vector<16x16xf32>
    %878 = arith.addf %860, %877 : vector<16x16xf32>
    %c117_219 = arith.constant 117 : index
    %879 = memref.load %arg4[%c117_219] : memref<144xf32, #tpu.memory_space<smem>>
    %880 = vector.broadcast %879 : f32 to vector<16x16xf32>
    %881 = arith.mulf %880, %866 : vector<16x16xf32>
    %882 = arith.addf %864, %881 : vector<16x16xf32>
    %c1_220 = arith.constant 1 : index
    %c0_221 = arith.constant 0 : index
    %c1_222 = arith.constant 1 : index
    %883 = vector.load %arg8[%c1_220, %c0_221, %c1_222] : memref<4x18x18xf32, #tpu.memory_space<vmem>>, vector<1x16x16xf32>
    %884 = vector.shape_cast %883 : vector<1x16x16xf32> to vector<16x16xf32>
    %c10_223 = arith.constant 10 : index
    %885 = memref.load %arg4[%c10_223] : memref<144xf32, #tpu.memory_space<smem>>
    %886 = vector.broadcast %885 : f32 to vector<16x16xf32>
    %887 = arith.mulf %886, %884 : vector<16x16xf32>
    %888 = arith.addf %870, %887 : vector<16x16xf32>
    %c46_224 = arith.constant 46 : index
    %889 = memref.load %arg4[%c46_224] : memref<144xf32, #tpu.memory_space<smem>>
    %890 = vector.broadcast %889 : f32 to vector<16x16xf32>
    %891 = arith.mulf %890, %884 : vector<16x16xf32>
    %892 = arith.addf %874, %891 : vector<16x16xf32>
    %c82_225 = arith.constant 82 : index
    %893 = memref.load %arg4[%c82_225] : memref<144xf32, #tpu.memory_space<smem>>
    %894 = vector.broadcast %893 : f32 to vector<16x16xf32>
    %895 = arith.mulf %894, %884 : vector<16x16xf32>
    %896 = arith.addf %878, %895 : vector<16x16xf32>
    %c118_226 = arith.constant 118 : index
    %897 = memref.load %arg4[%c118_226] : memref<144xf32, #tpu.memory_space<smem>>
    %898 = vector.broadcast %897 : f32 to vector<16x16xf32>
    %899 = arith.mulf %898, %884 : vector<16x16xf32>
    %900 = arith.addf %882, %899 : vector<16x16xf32>
    %c1_227 = arith.constant 1 : index
    %c0_228 = arith.constant 0 : index
    %c2_229 = arith.constant 2 : index
    %901 = vector.load %arg8[%c1_227, %c0_228, %c2_229] : memref<4x18x18xf32, #tpu.memory_space<vmem>>, vector<1x16x16xf32>
    %902 = vector.shape_cast %901 : vector<1x16x16xf32> to vector<16x16xf32>
    %c11_230 = arith.constant 11 : index
    %903 = memref.load %arg4[%c11_230] : memref<144xf32, #tpu.memory_space<smem>>
    %904 = vector.broadcast %903 : f32 to vector<16x16xf32>
    %905 = arith.mulf %904, %902 : vector<16x16xf32>
    %906 = arith.addf %888, %905 : vector<16x16xf32>
    %c47_231 = arith.constant 47 : index
    %907 = memref.load %arg4[%c47_231] : memref<144xf32, #tpu.memory_space<smem>>
    %908 = vector.broadcast %907 : f32 to vector<16x16xf32>
    %909 = arith.mulf %908, %902 : vector<16x16xf32>
    %910 = arith.addf %892, %909 : vector<16x16xf32>
    %c83_232 = arith.constant 83 : index
    %911 = memref.load %arg4[%c83_232] : memref<144xf32, #tpu.memory_space<smem>>
    %912 = vector.broadcast %911 : f32 to vector<16x16xf32>
    %913 = arith.mulf %912, %902 : vector<16x16xf32>
    %914 = arith.addf %896, %913 : vector<16x16xf32>
    %c119_233 = arith.constant 119 : index
    %915 = memref.load %arg4[%c119_233] : memref<144xf32, #tpu.memory_space<smem>>
    %916 = vector.broadcast %915 : f32 to vector<16x16xf32>
    %917 = arith.mulf %916, %902 : vector<16x16xf32>
    %918 = arith.addf %900, %917 : vector<16x16xf32>
    %c1_234 = arith.constant 1 : index
    %c1_235 = arith.constant 1 : index
    %c0_236 = arith.constant 0 : index
    %919 = vector.load %arg8[%c1_234, %c1_235, %c0_236] : memref<4x18x18xf32, #tpu.memory_space<vmem>>, vector<1x16x16xf32>
    %920 = vector.shape_cast %919 : vector<1x16x16xf32> to vector<16x16xf32>
    %c12_237 = arith.constant 12 : index
    %921 = memref.load %arg4[%c12_237] : memref<144xf32, #tpu.memory_space<smem>>
    %922 = vector.broadcast %921 : f32 to vector<16x16xf32>
    %923 = arith.mulf %922, %920 : vector<16x16xf32>
    %924 = arith.addf %906, %923 : vector<16x16xf32>
    %c48_238 = arith.constant 48 : index
    %925 = memref.load %arg4[%c48_238] : memref<144xf32, #tpu.memory_space<smem>>
    %926 = vector.broadcast %925 : f32 to vector<16x16xf32>
    %927 = arith.mulf %926, %920 : vector<16x16xf32>
    %928 = arith.addf %910, %927 : vector<16x16xf32>
    %c84_239 = arith.constant 84 : index
    %929 = memref.load %arg4[%c84_239] : memref<144xf32, #tpu.memory_space<smem>>
    %930 = vector.broadcast %929 : f32 to vector<16x16xf32>
    %931 = arith.mulf %930, %920 : vector<16x16xf32>
    %932 = arith.addf %914, %931 : vector<16x16xf32>
    %c120_240 = arith.constant 120 : index
    %933 = memref.load %arg4[%c120_240] : memref<144xf32, #tpu.memory_space<smem>>
    %934 = vector.broadcast %933 : f32 to vector<16x16xf32>
    %935 = arith.mulf %934, %920 : vector<16x16xf32>
    %936 = arith.addf %918, %935 : vector<16x16xf32>
    %c1_241 = arith.constant 1 : index
    %c1_242 = arith.constant 1 : index
    %c1_243 = arith.constant 1 : index
    %937 = vector.load %arg8[%c1_241, %c1_242, %c1_243] : memref<4x18x18xf32, #tpu.memory_space<vmem>>, vector<1x16x16xf32>
    %938 = vector.shape_cast %937 : vector<1x16x16xf32> to vector<16x16xf32>
    %c13_244 = arith.constant 13 : index
    %939 = memref.load %arg4[%c13_244] : memref<144xf32, #tpu.memory_space<smem>>
    %940 = vector.broadcast %939 : f32 to vector<16x16xf32>
    %941 = arith.mulf %940, %938 : vector<16x16xf32>
    %942 = arith.addf %924, %941 : vector<16x16xf32>
    %c49_245 = arith.constant 49 : index
    %943 = memref.load %arg4[%c49_245] : memref<144xf32, #tpu.memory_space<smem>>
    %944 = vector.broadcast %943 : f32 to vector<16x16xf32>
    %945 = arith.mulf %944, %938 : vector<16x16xf32>
    %946 = arith.addf %928, %945 : vector<16x16xf32>
    %c85_246 = arith.constant 85 : index
    %947 = memref.load %arg4[%c85_246] : memref<144xf32, #tpu.memory_space<smem>>
    %948 = vector.broadcast %947 : f32 to vector<16x16xf32>
    %949 = arith.mulf %948, %938 : vector<16x16xf32>
    %950 = arith.addf %932, %949 : vector<16x16xf32>
    %c121_247 = arith.constant 121 : index
    %951 = memref.load %arg4[%c121_247] : memref<144xf32, #tpu.memory_space<smem>>
    %952 = vector.broadcast %951 : f32 to vector<16x16xf32>
    %953 = arith.mulf %952, %938 : vector<16x16xf32>
    %954 = arith.addf %936, %953 : vector<16x16xf32>
    %c1_248 = arith.constant 1 : index
    %c1_249 = arith.constant 1 : index
    %c2_250 = arith.constant 2 : index
    %955 = vector.load %arg8[%c1_248, %c1_249, %c2_250] : memref<4x18x18xf32, #tpu.memory_space<vmem>>, vector<1x16x16xf32>
    %956 = vector.shape_cast %955 : vector<1x16x16xf32> to vector<16x16xf32>
    %c14_251 = arith.constant 14 : index
    %957 = memref.load %arg4[%c14_251] : memref<144xf32, #tpu.memory_space<smem>>
    %958 = vector.broadcast %957 : f32 to vector<16x16xf32>
    %959 = arith.mulf %958, %956 : vector<16x16xf32>
    %960 = arith.addf %942, %959 : vector<16x16xf32>
    %c50_252 = arith.constant 50 : index
    %961 = memref.load %arg4[%c50_252] : memref<144xf32, #tpu.memory_space<smem>>
    %962 = vector.broadcast %961 : f32 to vector<16x16xf32>
    %963 = arith.mulf %962, %956 : vector<16x16xf32>
    %964 = arith.addf %946, %963 : vector<16x16xf32>
    %c86_253 = arith.constant 86 : index
    %965 = memref.load %arg4[%c86_253] : memref<144xf32, #tpu.memory_space<smem>>
    %966 = vector.broadcast %965 : f32 to vector<16x16xf32>
    %967 = arith.mulf %966, %956 : vector<16x16xf32>
    %968 = arith.addf %950, %967 : vector<16x16xf32>
    %c122_254 = arith.constant 122 : index
    %969 = memref.load %arg4[%c122_254] : memref<144xf32, #tpu.memory_space<smem>>
    %970 = vector.broadcast %969 : f32 to vector<16x16xf32>
    %971 = arith.mulf %970, %956 : vector<16x16xf32>
    %972 = arith.addf %954, %971 : vector<16x16xf32>
    %c1_255 = arith.constant 1 : index
    %c2_256 = arith.constant 2 : index
    %c0_257 = arith.constant 0 : index
    %973 = vector.load %arg8[%c1_255, %c2_256, %c0_257] : memref<4x18x18xf32, #tpu.memory_space<vmem>>, vector<1x16x16xf32>
    %974 = vector.shape_cast %973 : vector<1x16x16xf32> to vector<16x16xf32>
    %c15_258 = arith.constant 15 : index
    %975 = memref.load %arg4[%c15_258] : memref<144xf32, #tpu.memory_space<smem>>
    %976 = vector.broadcast %975 : f32 to vector<16x16xf32>
    %977 = arith.mulf %976, %974 : vector<16x16xf32>
    %978 = arith.addf %960, %977 : vector<16x16xf32>
    %c51_259 = arith.constant 51 : index
    %979 = memref.load %arg4[%c51_259] : memref<144xf32, #tpu.memory_space<smem>>
    %980 = vector.broadcast %979 : f32 to vector<16x16xf32>
    %981 = arith.mulf %980, %974 : vector<16x16xf32>
    %982 = arith.addf %964, %981 : vector<16x16xf32>
    %c87_260 = arith.constant 87 : index
    %983 = memref.load %arg4[%c87_260] : memref<144xf32, #tpu.memory_space<smem>>
    %984 = vector.broadcast %983 : f32 to vector<16x16xf32>
    %985 = arith.mulf %984, %974 : vector<16x16xf32>
    %986 = arith.addf %968, %985 : vector<16x16xf32>
    %c123_261 = arith.constant 123 : index
    %987 = memref.load %arg4[%c123_261] : memref<144xf32, #tpu.memory_space<smem>>
    %988 = vector.broadcast %987 : f32 to vector<16x16xf32>
    %989 = arith.mulf %988, %974 : vector<16x16xf32>
    %990 = arith.addf %972, %989 : vector<16x16xf32>
    %c1_262 = arith.constant 1 : index
    %c2_263 = arith.constant 2 : index
    %c1_264 = arith.constant 1 : index
    %991 = vector.load %arg8[%c1_262, %c2_263, %c1_264] : memref<4x18x18xf32, #tpu.memory_space<vmem>>, vector<1x16x16xf32>
    %992 = vector.shape_cast %991 : vector<1x16x16xf32> to vector<16x16xf32>
    %c16_265 = arith.constant 16 : index
    %993 = memref.load %arg4[%c16_265] : memref<144xf32, #tpu.memory_space<smem>>
    %994 = vector.broadcast %993 : f32 to vector<16x16xf32>
    %995 = arith.mulf %994, %992 : vector<16x16xf32>
    %996 = arith.addf %978, %995 : vector<16x16xf32>
    %c52_266 = arith.constant 52 : index
    %997 = memref.load %arg4[%c52_266] : memref<144xf32, #tpu.memory_space<smem>>
    %998 = vector.broadcast %997 : f32 to vector<16x16xf32>
    %999 = arith.mulf %998, %992 : vector<16x16xf32>
    %1000 = arith.addf %982, %999 : vector<16x16xf32>
    %c88_267 = arith.constant 88 : index
    %1001 = memref.load %arg4[%c88_267] : memref<144xf32, #tpu.memory_space<smem>>
    %1002 = vector.broadcast %1001 : f32 to vector<16x16xf32>
    %1003 = arith.mulf %1002, %992 : vector<16x16xf32>
    %1004 = arith.addf %986, %1003 : vector<16x16xf32>
    %c124_268 = arith.constant 124 : index
    %1005 = memref.load %arg4[%c124_268] : memref<144xf32, #tpu.memory_space<smem>>
    %1006 = vector.broadcast %1005 : f32 to vector<16x16xf32>
    %1007 = arith.mulf %1006, %992 : vector<16x16xf32>
    %1008 = arith.addf %990, %1007 : vector<16x16xf32>
    %c1_269 = arith.constant 1 : index
    %c2_270 = arith.constant 2 : index
    %c2_271 = arith.constant 2 : index
    %1009 = vector.load %arg8[%c1_269, %c2_270, %c2_271] : memref<4x18x18xf32, #tpu.memory_space<vmem>>, vector<1x16x16xf32>
    %1010 = vector.shape_cast %1009 : vector<1x16x16xf32> to vector<16x16xf32>
    %c17_272 = arith.constant 17 : index
    %1011 = memref.load %arg4[%c17_272] : memref<144xf32, #tpu.memory_space<smem>>
    %1012 = vector.broadcast %1011 : f32 to vector<16x16xf32>
    %1013 = arith.mulf %1012, %1010 : vector<16x16xf32>
    %1014 = arith.addf %996, %1013 : vector<16x16xf32>
    %c53_273 = arith.constant 53 : index
    %1015 = memref.load %arg4[%c53_273] : memref<144xf32, #tpu.memory_space<smem>>
    %1016 = vector.broadcast %1015 : f32 to vector<16x16xf32>
    %1017 = arith.mulf %1016, %1010 : vector<16x16xf32>
    %1018 = arith.addf %1000, %1017 : vector<16x16xf32>
    %c89_274 = arith.constant 89 : index
    %1019 = memref.load %arg4[%c89_274] : memref<144xf32, #tpu.memory_space<smem>>
    %1020 = vector.broadcast %1019 : f32 to vector<16x16xf32>
    %1021 = arith.mulf %1020, %1010 : vector<16x16xf32>
    %1022 = arith.addf %1004, %1021 : vector<16x16xf32>
    %c125_275 = arith.constant 125 : index
    %1023 = memref.load %arg4[%c125_275] : memref<144xf32, #tpu.memory_space<smem>>
    %1024 = vector.broadcast %1023 : f32 to vector<16x16xf32>
    %1025 = arith.mulf %1024, %1010 : vector<16x16xf32>
    %1026 = arith.addf %1008, %1025 : vector<16x16xf32>
    %c2_276 = arith.constant 2 : index
    %c0_277 = arith.constant 0 : index
    %c0_278 = arith.constant 0 : index
    %1027 = vector.load %arg8[%c2_276, %c0_277, %c0_278] : memref<4x18x18xf32, #tpu.memory_space<vmem>>, vector<1x16x16xf32>
    %1028 = vector.shape_cast %1027 : vector<1x16x16xf32> to vector<16x16xf32>
    %c18_279 = arith.constant 18 : index
    %1029 = memref.load %arg4[%c18_279] : memref<144xf32, #tpu.memory_space<smem>>
    %1030 = vector.broadcast %1029 : f32 to vector<16x16xf32>
    %1031 = arith.mulf %1030, %1028 : vector<16x16xf32>
    %1032 = arith.addf %1014, %1031 : vector<16x16xf32>
    %c54_280 = arith.constant 54 : index
    %1033 = memref.load %arg4[%c54_280] : memref<144xf32, #tpu.memory_space<smem>>
    %1034 = vector.broadcast %1033 : f32 to vector<16x16xf32>
    %1035 = arith.mulf %1034, %1028 : vector<16x16xf32>
    %1036 = arith.addf %1018, %1035 : vector<16x16xf32>
    %c90_281 = arith.constant 90 : index
    %1037 = memref.load %arg4[%c90_281] : memref<144xf32, #tpu.memory_space<smem>>
    %1038 = vector.broadcast %1037 : f32 to vector<16x16xf32>
    %1039 = arith.mulf %1038, %1028 : vector<16x16xf32>
    %1040 = arith.addf %1022, %1039 : vector<16x16xf32>
    %c126_282 = arith.constant 126 : index
    %1041 = memref.load %arg4[%c126_282] : memref<144xf32, #tpu.memory_space<smem>>
    %1042 = vector.broadcast %1041 : f32 to vector<16x16xf32>
    %1043 = arith.mulf %1042, %1028 : vector<16x16xf32>
    %1044 = arith.addf %1026, %1043 : vector<16x16xf32>
    %c2_283 = arith.constant 2 : index
    %c0_284 = arith.constant 0 : index
    %c1_285 = arith.constant 1 : index
    %1045 = vector.load %arg8[%c2_283, %c0_284, %c1_285] : memref<4x18x18xf32, #tpu.memory_space<vmem>>, vector<1x16x16xf32>
    %1046 = vector.shape_cast %1045 : vector<1x16x16xf32> to vector<16x16xf32>
    %c19_286 = arith.constant 19 : index
    %1047 = memref.load %arg4[%c19_286] : memref<144xf32, #tpu.memory_space<smem>>
    %1048 = vector.broadcast %1047 : f32 to vector<16x16xf32>
    %1049 = arith.mulf %1048, %1046 : vector<16x16xf32>
    %1050 = arith.addf %1032, %1049 : vector<16x16xf32>
    %c55_287 = arith.constant 55 : index
    %1051 = memref.load %arg4[%c55_287] : memref<144xf32, #tpu.memory_space<smem>>
    %1052 = vector.broadcast %1051 : f32 to vector<16x16xf32>
    %1053 = arith.mulf %1052, %1046 : vector<16x16xf32>
    %1054 = arith.addf %1036, %1053 : vector<16x16xf32>
    %c91_288 = arith.constant 91 : index
    %1055 = memref.load %arg4[%c91_288] : memref<144xf32, #tpu.memory_space<smem>>
    %1056 = vector.broadcast %1055 : f32 to vector<16x16xf32>
    %1057 = arith.mulf %1056, %1046 : vector<16x16xf32>
    %1058 = arith.addf %1040, %1057 : vector<16x16xf32>
    %c127_289 = arith.constant 127 : index
    %1059 = memref.load %arg4[%c127_289] : memref<144xf32, #tpu.memory_space<smem>>
    %1060 = vector.broadcast %1059 : f32 to vector<16x16xf32>
    %1061 = arith.mulf %1060, %1046 : vector<16x16xf32>
    %1062 = arith.addf %1044, %1061 : vector<16x16xf32>
    %c2_290 = arith.constant 2 : index
    %c0_291 = arith.constant 0 : index
    %c2_292 = arith.constant 2 : index
    %1063 = vector.load %arg8[%c2_290, %c0_291, %c2_292] : memref<4x18x18xf32, #tpu.memory_space<vmem>>, vector<1x16x16xf32>
    %1064 = vector.shape_cast %1063 : vector<1x16x16xf32> to vector<16x16xf32>
    %c20_293 = arith.constant 20 : index
    %1065 = memref.load %arg4[%c20_293] : memref<144xf32, #tpu.memory_space<smem>>
    %1066 = vector.broadcast %1065 : f32 to vector<16x16xf32>
    %1067 = arith.mulf %1066, %1064 : vector<16x16xf32>
    %1068 = arith.addf %1050, %1067 : vector<16x16xf32>
    %c56_294 = arith.constant 56 : index
    %1069 = memref.load %arg4[%c56_294] : memref<144xf32, #tpu.memory_space<smem>>
    %1070 = vector.broadcast %1069 : f32 to vector<16x16xf32>
    %1071 = arith.mulf %1070, %1064 : vector<16x16xf32>
    %1072 = arith.addf %1054, %1071 : vector<16x16xf32>
    %c92_295 = arith.constant 92 : index
    %1073 = memref.load %arg4[%c92_295] : memref<144xf32, #tpu.memory_space<smem>>
    %1074 = vector.broadcast %1073 : f32 to vector<16x16xf32>
    %1075 = arith.mulf %1074, %1064 : vector<16x16xf32>
    %1076 = arith.addf %1058, %1075 : vector<16x16xf32>
    %c128_296 = arith.constant 128 : index
    %1077 = memref.load %arg4[%c128_296] : memref<144xf32, #tpu.memory_space<smem>>
    %1078 = vector.broadcast %1077 : f32 to vector<16x16xf32>
    %1079 = arith.mulf %1078, %1064 : vector<16x16xf32>
    %1080 = arith.addf %1062, %1079 : vector<16x16xf32>
    %c2_297 = arith.constant 2 : index
    %c1_298 = arith.constant 1 : index
    %c0_299 = arith.constant 0 : index
    %1081 = vector.load %arg8[%c2_297, %c1_298, %c0_299] : memref<4x18x18xf32, #tpu.memory_space<vmem>>, vector<1x16x16xf32>
    %1082 = vector.shape_cast %1081 : vector<1x16x16xf32> to vector<16x16xf32>
    %c21_300 = arith.constant 21 : index
    %1083 = memref.load %arg4[%c21_300] : memref<144xf32, #tpu.memory_space<smem>>
    %1084 = vector.broadcast %1083 : f32 to vector<16x16xf32>
    %1085 = arith.mulf %1084, %1082 : vector<16x16xf32>
    %1086 = arith.addf %1068, %1085 : vector<16x16xf32>
    %c57_301 = arith.constant 57 : index
    %1087 = memref.load %arg4[%c57_301] : memref<144xf32, #tpu.memory_space<smem>>
    %1088 = vector.broadcast %1087 : f32 to vector<16x16xf32>
    %1089 = arith.mulf %1088, %1082 : vector<16x16xf32>
    %1090 = arith.addf %1072, %1089 : vector<16x16xf32>
    %c93_302 = arith.constant 93 : index
    %1091 = memref.load %arg4[%c93_302] : memref<144xf32, #tpu.memory_space<smem>>
    %1092 = vector.broadcast %1091 : f32 to vector<16x16xf32>
    %1093 = arith.mulf %1092, %1082 : vector<16x16xf32>
    %1094 = arith.addf %1076, %1093 : vector<16x16xf32>
    %c129_303 = arith.constant 129 : index
    %1095 = memref.load %arg4[%c129_303] : memref<144xf32, #tpu.memory_space<smem>>
    %1096 = vector.broadcast %1095 : f32 to vector<16x16xf32>
    %1097 = arith.mulf %1096, %1082 : vector<16x16xf32>
    %1098 = arith.addf %1080, %1097 : vector<16x16xf32>
    %c2_304 = arith.constant 2 : index
    %c1_305 = arith.constant 1 : index
    %c1_306 = arith.constant 1 : index
    %1099 = vector.load %arg8[%c2_304, %c1_305, %c1_306] : memref<4x18x18xf32, #tpu.memory_space<vmem>>, vector<1x16x16xf32>
    %1100 = vector.shape_cast %1099 : vector<1x16x16xf32> to vector<16x16xf32>
    %c22_307 = arith.constant 22 : index
    %1101 = memref.load %arg4[%c22_307] : memref<144xf32, #tpu.memory_space<smem>>
    %1102 = vector.broadcast %1101 : f32 to vector<16x16xf32>
    %1103 = arith.mulf %1102, %1100 : vector<16x16xf32>
    %1104 = arith.addf %1086, %1103 : vector<16x16xf32>
    %c58_308 = arith.constant 58 : index
    %1105 = memref.load %arg4[%c58_308] : memref<144xf32, #tpu.memory_space<smem>>
    %1106 = vector.broadcast %1105 : f32 to vector<16x16xf32>
    %1107 = arith.mulf %1106, %1100 : vector<16x16xf32>
    %1108 = arith.addf %1090, %1107 : vector<16x16xf32>
    %c94_309 = arith.constant 94 : index
    %1109 = memref.load %arg4[%c94_309] : memref<144xf32, #tpu.memory_space<smem>>
    %1110 = vector.broadcast %1109 : f32 to vector<16x16xf32>
    %1111 = arith.mulf %1110, %1100 : vector<16x16xf32>
    %1112 = arith.addf %1094, %1111 : vector<16x16xf32>
    %c130_310 = arith.constant 130 : index
    %1113 = memref.load %arg4[%c130_310] : memref<144xf32, #tpu.memory_space<smem>>
    %1114 = vector.broadcast %1113 : f32 to vector<16x16xf32>
    %1115 = arith.mulf %1114, %1100 : vector<16x16xf32>
    %1116 = arith.addf %1098, %1115 : vector<16x16xf32>
    %c2_311 = arith.constant 2 : index
    %c1_312 = arith.constant 1 : index
    %c2_313 = arith.constant 2 : index
    %1117 = vector.load %arg8[%c2_311, %c1_312, %c2_313] : memref<4x18x18xf32, #tpu.memory_space<vmem>>, vector<1x16x16xf32>
    %1118 = vector.shape_cast %1117 : vector<1x16x16xf32> to vector<16x16xf32>
    %c23_314 = arith.constant 23 : index
    %1119 = memref.load %arg4[%c23_314] : memref<144xf32, #tpu.memory_space<smem>>
    %1120 = vector.broadcast %1119 : f32 to vector<16x16xf32>
    %1121 = arith.mulf %1120, %1118 : vector<16x16xf32>
    %1122 = arith.addf %1104, %1121 : vector<16x16xf32>
    %c59_315 = arith.constant 59 : index
    %1123 = memref.load %arg4[%c59_315] : memref<144xf32, #tpu.memory_space<smem>>
    %1124 = vector.broadcast %1123 : f32 to vector<16x16xf32>
    %1125 = arith.mulf %1124, %1118 : vector<16x16xf32>
    %1126 = arith.addf %1108, %1125 : vector<16x16xf32>
    %c95_316 = arith.constant 95 : index
    %1127 = memref.load %arg4[%c95_316] : memref<144xf32, #tpu.memory_space<smem>>
    %1128 = vector.broadcast %1127 : f32 to vector<16x16xf32>
    %1129 = arith.mulf %1128, %1118 : vector<16x16xf32>
    %1130 = arith.addf %1112, %1129 : vector<16x16xf32>
    %c131_317 = arith.constant 131 : index
    %1131 = memref.load %arg4[%c131_317] : memref<144xf32, #tpu.memory_space<smem>>
    %1132 = vector.broadcast %1131 : f32 to vector<16x16xf32>
    %1133 = arith.mulf %1132, %1118 : vector<16x16xf32>
    %1134 = arith.addf %1116, %1133 : vector<16x16xf32>
    %c2_318 = arith.constant 2 : index
    %c2_319 = arith.constant 2 : index
    %c0_320 = arith.constant 0 : index
    %1135 = vector.load %arg8[%c2_318, %c2_319, %c0_320] : memref<4x18x18xf32, #tpu.memory_space<vmem>>, vector<1x16x16xf32>
    %1136 = vector.shape_cast %1135 : vector<1x16x16xf32> to vector<16x16xf32>
    %c24_321 = arith.constant 24 : index
    %1137 = memref.load %arg4[%c24_321] : memref<144xf32, #tpu.memory_space<smem>>
    %1138 = vector.broadcast %1137 : f32 to vector<16x16xf32>
    %1139 = arith.mulf %1138, %1136 : vector<16x16xf32>
    %1140 = arith.addf %1122, %1139 : vector<16x16xf32>
    %c60_322 = arith.constant 60 : index
    %1141 = memref.load %arg4[%c60_322] : memref<144xf32, #tpu.memory_space<smem>>
    %1142 = vector.broadcast %1141 : f32 to vector<16x16xf32>
    %1143 = arith.mulf %1142, %1136 : vector<16x16xf32>
    %1144 = arith.addf %1126, %1143 : vector<16x16xf32>
    %c96_323 = arith.constant 96 : index
    %1145 = memref.load %arg4[%c96_323] : memref<144xf32, #tpu.memory_space<smem>>
    %1146 = vector.broadcast %1145 : f32 to vector<16x16xf32>
    %1147 = arith.mulf %1146, %1136 : vector<16x16xf32>
    %1148 = arith.addf %1130, %1147 : vector<16x16xf32>
    %c132_324 = arith.constant 132 : index
    %1149 = memref.load %arg4[%c132_324] : memref<144xf32, #tpu.memory_space<smem>>
    %1150 = vector.broadcast %1149 : f32 to vector<16x16xf32>
    %1151 = arith.mulf %1150, %1136 : vector<16x16xf32>
    %1152 = arith.addf %1134, %1151 : vector<16x16xf32>
    %c2_325 = arith.constant 2 : index
    %c2_326 = arith.constant 2 : index
    %c1_327 = arith.constant 1 : index
    %1153 = vector.load %arg8[%c2_325, %c2_326, %c1_327] : memref<4x18x18xf32, #tpu.memory_space<vmem>>, vector<1x16x16xf32>
    %1154 = vector.shape_cast %1153 : vector<1x16x16xf32> to vector<16x16xf32>
    %c25_328 = arith.constant 25 : index
    %1155 = memref.load %arg4[%c25_328] : memref<144xf32, #tpu.memory_space<smem>>
    %1156 = vector.broadcast %1155 : f32 to vector<16x16xf32>
    %1157 = arith.mulf %1156, %1154 : vector<16x16xf32>
    %1158 = arith.addf %1140, %1157 : vector<16x16xf32>
    %c61_329 = arith.constant 61 : index
    %1159 = memref.load %arg4[%c61_329] : memref<144xf32, #tpu.memory_space<smem>>
    %1160 = vector.broadcast %1159 : f32 to vector<16x16xf32>
    %1161 = arith.mulf %1160, %1154 : vector<16x16xf32>
    %1162 = arith.addf %1144, %1161 : vector<16x16xf32>
    %c97_330 = arith.constant 97 : index
    %1163 = memref.load %arg4[%c97_330] : memref<144xf32, #tpu.memory_space<smem>>
    %1164 = vector.broadcast %1163 : f32 to vector<16x16xf32>
    %1165 = arith.mulf %1164, %1154 : vector<16x16xf32>
    %1166 = arith.addf %1148, %1165 : vector<16x16xf32>
    %c133_331 = arith.constant 133 : index
    %1167 = memref.load %arg4[%c133_331] : memref<144xf32, #tpu.memory_space<smem>>
    %1168 = vector.broadcast %1167 : f32 to vector<16x16xf32>
    %1169 = arith.mulf %1168, %1154 : vector<16x16xf32>
    %1170 = arith.addf %1152, %1169 : vector<16x16xf32>
    %c2_332 = arith.constant 2 : index
    %c2_333 = arith.constant 2 : index
    %c2_334 = arith.constant 2 : index
    %1171 = vector.load %arg8[%c2_332, %c2_333, %c2_334] : memref<4x18x18xf32, #tpu.memory_space<vmem>>, vector<1x16x16xf32>
    %1172 = vector.shape_cast %1171 : vector<1x16x16xf32> to vector<16x16xf32>
    %c26_335 = arith.constant 26 : index
    %1173 = memref.load %arg4[%c26_335] : memref<144xf32, #tpu.memory_space<smem>>
    %1174 = vector.broadcast %1173 : f32 to vector<16x16xf32>
    %1175 = arith.mulf %1174, %1172 : vector<16x16xf32>
    %1176 = arith.addf %1158, %1175 : vector<16x16xf32>
    %c62_336 = arith.constant 62 : index
    %1177 = memref.load %arg4[%c62_336] : memref<144xf32, #tpu.memory_space<smem>>
    %1178 = vector.broadcast %1177 : f32 to vector<16x16xf32>
    %1179 = arith.mulf %1178, %1172 : vector<16x16xf32>
    %1180 = arith.addf %1162, %1179 : vector<16x16xf32>
    %c98_337 = arith.constant 98 : index
    %1181 = memref.load %arg4[%c98_337] : memref<144xf32, #tpu.memory_space<smem>>
    %1182 = vector.broadcast %1181 : f32 to vector<16x16xf32>
    %1183 = arith.mulf %1182, %1172 : vector<16x16xf32>
    %1184 = arith.addf %1166, %1183 : vector<16x16xf32>
    %c134_338 = arith.constant 134 : index
    %1185 = memref.load %arg4[%c134_338] : memref<144xf32, #tpu.memory_space<smem>>
    %1186 = vector.broadcast %1185 : f32 to vector<16x16xf32>
    %1187 = arith.mulf %1186, %1172 : vector<16x16xf32>
    %1188 = arith.addf %1170, %1187 : vector<16x16xf32>
    %c3_339 = arith.constant 3 : index
    %c0_340 = arith.constant 0 : index
    %c0_341 = arith.constant 0 : index
    %1189 = vector.load %arg8[%c3_339, %c0_340, %c0_341] : memref<4x18x18xf32, #tpu.memory_space<vmem>>, vector<1x16x16xf32>
    %1190 = vector.shape_cast %1189 : vector<1x16x16xf32> to vector<16x16xf32>
    %c27_342 = arith.constant 27 : index
    %1191 = memref.load %arg4[%c27_342] : memref<144xf32, #tpu.memory_space<smem>>
    %1192 = vector.broadcast %1191 : f32 to vector<16x16xf32>
    %1193 = arith.mulf %1192, %1190 : vector<16x16xf32>
    %1194 = arith.addf %1176, %1193 : vector<16x16xf32>
    %c63_343 = arith.constant 63 : index
    %1195 = memref.load %arg4[%c63_343] : memref<144xf32, #tpu.memory_space<smem>>
    %1196 = vector.broadcast %1195 : f32 to vector<16x16xf32>
    %1197 = arith.mulf %1196, %1190 : vector<16x16xf32>
    %1198 = arith.addf %1180, %1197 : vector<16x16xf32>
    %c99_344 = arith.constant 99 : index
    %1199 = memref.load %arg4[%c99_344] : memref<144xf32, #tpu.memory_space<smem>>
    %1200 = vector.broadcast %1199 : f32 to vector<16x16xf32>
    %1201 = arith.mulf %1200, %1190 : vector<16x16xf32>
    %1202 = arith.addf %1184, %1201 : vector<16x16xf32>
    %c135_345 = arith.constant 135 : index
    %1203 = memref.load %arg4[%c135_345] : memref<144xf32, #tpu.memory_space<smem>>
    %1204 = vector.broadcast %1203 : f32 to vector<16x16xf32>
    %1205 = arith.mulf %1204, %1190 : vector<16x16xf32>
    %1206 = arith.addf %1188, %1205 : vector<16x16xf32>
    %c3_346 = arith.constant 3 : index
    %c0_347 = arith.constant 0 : index
    %c1_348 = arith.constant 1 : index
    %1207 = vector.load %arg8[%c3_346, %c0_347, %c1_348] : memref<4x18x18xf32, #tpu.memory_space<vmem>>, vector<1x16x16xf32>
    %1208 = vector.shape_cast %1207 : vector<1x16x16xf32> to vector<16x16xf32>
    %c28_349 = arith.constant 28 : index
    %1209 = memref.load %arg4[%c28_349] : memref<144xf32, #tpu.memory_space<smem>>
    %1210 = vector.broadcast %1209 : f32 to vector<16x16xf32>
    %1211 = arith.mulf %1210, %1208 : vector<16x16xf32>
    %1212 = arith.addf %1194, %1211 : vector<16x16xf32>
    %c64_350 = arith.constant 64 : index
    %1213 = memref.load %arg4[%c64_350] : memref<144xf32, #tpu.memory_space<smem>>
    %1214 = vector.broadcast %1213 : f32 to vector<16x16xf32>
    %1215 = arith.mulf %1214, %1208 : vector<16x16xf32>
    %1216 = arith.addf %1198, %1215 : vector<16x16xf32>
    %c100_351 = arith.constant 100 : index
    %1217 = memref.load %arg4[%c100_351] : memref<144xf32, #tpu.memory_space<smem>>
    %1218 = vector.broadcast %1217 : f32 to vector<16x16xf32>
    %1219 = arith.mulf %1218, %1208 : vector<16x16xf32>
    %1220 = arith.addf %1202, %1219 : vector<16x16xf32>
    %c136_352 = arith.constant 136 : index
    %1221 = memref.load %arg4[%c136_352] : memref<144xf32, #tpu.memory_space<smem>>
    %1222 = vector.broadcast %1221 : f32 to vector<16x16xf32>
    %1223 = arith.mulf %1222, %1208 : vector<16x16xf32>
    %1224 = arith.addf %1206, %1223 : vector<16x16xf32>
    %c3_353 = arith.constant 3 : index
    %c0_354 = arith.constant 0 : index
    %c2_355 = arith.constant 2 : index
    %1225 = vector.load %arg8[%c3_353, %c0_354, %c2_355] : memref<4x18x18xf32, #tpu.memory_space<vmem>>, vector<1x16x16xf32>
    %1226 = vector.shape_cast %1225 : vector<1x16x16xf32> to vector<16x16xf32>
    %c29_356 = arith.constant 29 : index
    %1227 = memref.load %arg4[%c29_356] : memref<144xf32, #tpu.memory_space<smem>>
    %1228 = vector.broadcast %1227 : f32 to vector<16x16xf32>
    %1229 = arith.mulf %1228, %1226 : vector<16x16xf32>
    %1230 = arith.addf %1212, %1229 : vector<16x16xf32>
    %c65_357 = arith.constant 65 : index
    %1231 = memref.load %arg4[%c65_357] : memref<144xf32, #tpu.memory_space<smem>>
    %1232 = vector.broadcast %1231 : f32 to vector<16x16xf32>
    %1233 = arith.mulf %1232, %1226 : vector<16x16xf32>
    %1234 = arith.addf %1216, %1233 : vector<16x16xf32>
    %c101_358 = arith.constant 101 : index
    %1235 = memref.load %arg4[%c101_358] : memref<144xf32, #tpu.memory_space<smem>>
    %1236 = vector.broadcast %1235 : f32 to vector<16x16xf32>
    %1237 = arith.mulf %1236, %1226 : vector<16x16xf32>
    %1238 = arith.addf %1220, %1237 : vector<16x16xf32>
    %c137_359 = arith.constant 137 : index
    %1239 = memref.load %arg4[%c137_359] : memref<144xf32, #tpu.memory_space<smem>>
    %1240 = vector.broadcast %1239 : f32 to vector<16x16xf32>
    %1241 = arith.mulf %1240, %1226 : vector<16x16xf32>
    %1242 = arith.addf %1224, %1241 : vector<16x16xf32>
    %c3_360 = arith.constant 3 : index
    %c1_361 = arith.constant 1 : index
    %c0_362 = arith.constant 0 : index
    %1243 = vector.load %arg8[%c3_360, %c1_361, %c0_362] : memref<4x18x18xf32, #tpu.memory_space<vmem>>, vector<1x16x16xf32>
    %1244 = vector.shape_cast %1243 : vector<1x16x16xf32> to vector<16x16xf32>
    %c30_363 = arith.constant 30 : index
    %1245 = memref.load %arg4[%c30_363] : memref<144xf32, #tpu.memory_space<smem>>
    %1246 = vector.broadcast %1245 : f32 to vector<16x16xf32>
    %1247 = arith.mulf %1246, %1244 : vector<16x16xf32>
    %1248 = arith.addf %1230, %1247 : vector<16x16xf32>
    %c66_364 = arith.constant 66 : index
    %1249 = memref.load %arg4[%c66_364] : memref<144xf32, #tpu.memory_space<smem>>
    %1250 = vector.broadcast %1249 : f32 to vector<16x16xf32>
    %1251 = arith.mulf %1250, %1244 : vector<16x16xf32>
    %1252 = arith.addf %1234, %1251 : vector<16x16xf32>
    %c102_365 = arith.constant 102 : index
    %1253 = memref.load %arg4[%c102_365] : memref<144xf32, #tpu.memory_space<smem>>
    %1254 = vector.broadcast %1253 : f32 to vector<16x16xf32>
    %1255 = arith.mulf %1254, %1244 : vector<16x16xf32>
    %1256 = arith.addf %1238, %1255 : vector<16x16xf32>
    %c138_366 = arith.constant 138 : index
    %1257 = memref.load %arg4[%c138_366] : memref<144xf32, #tpu.memory_space<smem>>
    %1258 = vector.broadcast %1257 : f32 to vector<16x16xf32>
    %1259 = arith.mulf %1258, %1244 : vector<16x16xf32>
    %1260 = arith.addf %1242, %1259 : vector<16x16xf32>
    %c3_367 = arith.constant 3 : index
    %c1_368 = arith.constant 1 : index
    %c1_369 = arith.constant 1 : index
    %1261 = vector.load %arg8[%c3_367, %c1_368, %c1_369] : memref<4x18x18xf32, #tpu.memory_space<vmem>>, vector<1x16x16xf32>
    %1262 = vector.shape_cast %1261 : vector<1x16x16xf32> to vector<16x16xf32>
    %c31_370 = arith.constant 31 : index
    %1263 = memref.load %arg4[%c31_370] : memref<144xf32, #tpu.memory_space<smem>>
    %1264 = vector.broadcast %1263 : f32 to vector<16x16xf32>
    %1265 = arith.mulf %1264, %1262 : vector<16x16xf32>
    %1266 = arith.addf %1248, %1265 : vector<16x16xf32>
    %c67_371 = arith.constant 67 : index
    %1267 = memref.load %arg4[%c67_371] : memref<144xf32, #tpu.memory_space<smem>>
    %1268 = vector.broadcast %1267 : f32 to vector<16x16xf32>
    %1269 = arith.mulf %1268, %1262 : vector<16x16xf32>
    %1270 = arith.addf %1252, %1269 : vector<16x16xf32>
    %c103_372 = arith.constant 103 : index
    %1271 = memref.load %arg4[%c103_372] : memref<144xf32, #tpu.memory_space<smem>>
    %1272 = vector.broadcast %1271 : f32 to vector<16x16xf32>
    %1273 = arith.mulf %1272, %1262 : vector<16x16xf32>
    %1274 = arith.addf %1256, %1273 : vector<16x16xf32>
    %c139_373 = arith.constant 139 : index
    %1275 = memref.load %arg4[%c139_373] : memref<144xf32, #tpu.memory_space<smem>>
    %1276 = vector.broadcast %1275 : f32 to vector<16x16xf32>
    %1277 = arith.mulf %1276, %1262 : vector<16x16xf32>
    %1278 = arith.addf %1260, %1277 : vector<16x16xf32>
    %c3_374 = arith.constant 3 : index
    %c1_375 = arith.constant 1 : index
    %c2_376 = arith.constant 2 : index
    %1279 = vector.load %arg8[%c3_374, %c1_375, %c2_376] : memref<4x18x18xf32, #tpu.memory_space<vmem>>, vector<1x16x16xf32>
    %1280 = vector.shape_cast %1279 : vector<1x16x16xf32> to vector<16x16xf32>
    %c32_377 = arith.constant 32 : index
    %1281 = memref.load %arg4[%c32_377] : memref<144xf32, #tpu.memory_space<smem>>
    %1282 = vector.broadcast %1281 : f32 to vector<16x16xf32>
    %1283 = arith.mulf %1282, %1280 : vector<16x16xf32>
    %1284 = arith.addf %1266, %1283 : vector<16x16xf32>
    %c68_378 = arith.constant 68 : index
    %1285 = memref.load %arg4[%c68_378] : memref<144xf32, #tpu.memory_space<smem>>
    %1286 = vector.broadcast %1285 : f32 to vector<16x16xf32>
    %1287 = arith.mulf %1286, %1280 : vector<16x16xf32>
    %1288 = arith.addf %1270, %1287 : vector<16x16xf32>
    %c104_379 = arith.constant 104 : index
    %1289 = memref.load %arg4[%c104_379] : memref<144xf32, #tpu.memory_space<smem>>
    %1290 = vector.broadcast %1289 : f32 to vector<16x16xf32>
    %1291 = arith.mulf %1290, %1280 : vector<16x16xf32>
    %1292 = arith.addf %1274, %1291 : vector<16x16xf32>
    %c140_380 = arith.constant 140 : index
    %1293 = memref.load %arg4[%c140_380] : memref<144xf32, #tpu.memory_space<smem>>
    %1294 = vector.broadcast %1293 : f32 to vector<16x16xf32>
    %1295 = arith.mulf %1294, %1280 : vector<16x16xf32>
    %1296 = arith.addf %1278, %1295 : vector<16x16xf32>
    %c3_381 = arith.constant 3 : index
    %c2_382 = arith.constant 2 : index
    %c0_383 = arith.constant 0 : index
    %1297 = vector.load %arg8[%c3_381, %c2_382, %c0_383] : memref<4x18x18xf32, #tpu.memory_space<vmem>>, vector<1x16x16xf32>
    %1298 = vector.shape_cast %1297 : vector<1x16x16xf32> to vector<16x16xf32>
    %c33_384 = arith.constant 33 : index
    %1299 = memref.load %arg4[%c33_384] : memref<144xf32, #tpu.memory_space<smem>>
    %1300 = vector.broadcast %1299 : f32 to vector<16x16xf32>
    %1301 = arith.mulf %1300, %1298 : vector<16x16xf32>
    %1302 = arith.addf %1284, %1301 : vector<16x16xf32>
    %c69_385 = arith.constant 69 : index
    %1303 = memref.load %arg4[%c69_385] : memref<144xf32, #tpu.memory_space<smem>>
    %1304 = vector.broadcast %1303 : f32 to vector<16x16xf32>
    %1305 = arith.mulf %1304, %1298 : vector<16x16xf32>
    %1306 = arith.addf %1288, %1305 : vector<16x16xf32>
    %c105_386 = arith.constant 105 : index
    %1307 = memref.load %arg4[%c105_386] : memref<144xf32, #tpu.memory_space<smem>>
    %1308 = vector.broadcast %1307 : f32 to vector<16x16xf32>
    %1309 = arith.mulf %1308, %1298 : vector<16x16xf32>
    %1310 = arith.addf %1292, %1309 : vector<16x16xf32>
    %c141_387 = arith.constant 141 : index
    %1311 = memref.load %arg4[%c141_387] : memref<144xf32, #tpu.memory_space<smem>>
    %1312 = vector.broadcast %1311 : f32 to vector<16x16xf32>
    %1313 = arith.mulf %1312, %1298 : vector<16x16xf32>
    %1314 = arith.addf %1296, %1313 : vector<16x16xf32>
    %c3_388 = arith.constant 3 : index
    %c2_389 = arith.constant 2 : index
    %c1_390 = arith.constant 1 : index
    %1315 = vector.load %arg8[%c3_388, %c2_389, %c1_390] : memref<4x18x18xf32, #tpu.memory_space<vmem>>, vector<1x16x16xf32>
    %1316 = vector.shape_cast %1315 : vector<1x16x16xf32> to vector<16x16xf32>
    %c34_391 = arith.constant 34 : index
    %1317 = memref.load %arg4[%c34_391] : memref<144xf32, #tpu.memory_space<smem>>
    %1318 = vector.broadcast %1317 : f32 to vector<16x16xf32>
    %1319 = arith.mulf %1318, %1316 : vector<16x16xf32>
    %1320 = arith.addf %1302, %1319 : vector<16x16xf32>
    %c70_392 = arith.constant 70 : index
    %1321 = memref.load %arg4[%c70_392] : memref<144xf32, #tpu.memory_space<smem>>
    %1322 = vector.broadcast %1321 : f32 to vector<16x16xf32>
    %1323 = arith.mulf %1322, %1316 : vector<16x16xf32>
    %1324 = arith.addf %1306, %1323 : vector<16x16xf32>
    %c106_393 = arith.constant 106 : index
    %1325 = memref.load %arg4[%c106_393] : memref<144xf32, #tpu.memory_space<smem>>
    %1326 = vector.broadcast %1325 : f32 to vector<16x16xf32>
    %1327 = arith.mulf %1326, %1316 : vector<16x16xf32>
    %1328 = arith.addf %1310, %1327 : vector<16x16xf32>
    %c142_394 = arith.constant 142 : index
    %1329 = memref.load %arg4[%c142_394] : memref<144xf32, #tpu.memory_space<smem>>
    %1330 = vector.broadcast %1329 : f32 to vector<16x16xf32>
    %1331 = arith.mulf %1330, %1316 : vector<16x16xf32>
    %1332 = arith.addf %1314, %1331 : vector<16x16xf32>
    %c3_395 = arith.constant 3 : index
    %c2_396 = arith.constant 2 : index
    %c2_397 = arith.constant 2 : index
    %1333 = vector.load %arg8[%c3_395, %c2_396, %c2_397] : memref<4x18x18xf32, #tpu.memory_space<vmem>>, vector<1x16x16xf32>
    %1334 = vector.shape_cast %1333 : vector<1x16x16xf32> to vector<16x16xf32>
    %c35_398 = arith.constant 35 : index
    %1335 = memref.load %arg4[%c35_398] : memref<144xf32, #tpu.memory_space<smem>>
    %1336 = vector.broadcast %1335 : f32 to vector<16x16xf32>
    %1337 = arith.mulf %1336, %1334 : vector<16x16xf32>
    %1338 = arith.addf %1320, %1337 : vector<16x16xf32>
    %c71_399 = arith.constant 71 : index
    %1339 = memref.load %arg4[%c71_399] : memref<144xf32, #tpu.memory_space<smem>>
    %1340 = vector.broadcast %1339 : f32 to vector<16x16xf32>
    %1341 = arith.mulf %1340, %1334 : vector<16x16xf32>
    %1342 = arith.addf %1324, %1341 : vector<16x16xf32>
    %c107_400 = arith.constant 107 : index
    %1343 = memref.load %arg4[%c107_400] : memref<144xf32, #tpu.memory_space<smem>>
    %1344 = vector.broadcast %1343 : f32 to vector<16x16xf32>
    %1345 = arith.mulf %1344, %1334 : vector<16x16xf32>
    %1346 = arith.addf %1328, %1345 : vector<16x16xf32>
    %c143_401 = arith.constant 143 : index
    %1347 = memref.load %arg4[%c143_401] : memref<144xf32, #tpu.memory_space<smem>>
    %1348 = vector.broadcast %1347 : f32 to vector<16x16xf32>
    %1349 = arith.mulf %1348, %1334 : vector<16x16xf32>
    %1350 = arith.addf %1332, %1349 : vector<16x16xf32>
    %c0_402 = arith.constant 0 : index
    %c0_403 = arith.constant 0 : index
    %c0_404 = arith.constant 0 : index
    %c0_405 = arith.constant 0 : index
    %1351 = vector.load %arg6[%c0_402, %c0_403, %c0_404, %c0_405] : memref<1x4x16x16xf32, #tpu.memory_space<vmem>>, vector<1x1x16x16xf32>
    %1352 = vector.shape_cast %1351 : vector<1x1x16x16xf32> to vector<16x16xf32>
    %1353 = vector.shape_cast %1338 : vector<16x16xf32> to vector<1x1x16x16xf32>
    tpu.vector_store %arg6[%c0_402, %c0_403, %c0_404, %c0_405], %1353 {strides = array<i32>} : memref<1x4x16x16xf32, #tpu.memory_space<vmem>>, vector<1x1x16x16xf32>,
    %c0_406 = arith.constant 0 : index
    %c1_407 = arith.constant 1 : index
    %c0_408 = arith.constant 0 : index
    %c0_409 = arith.constant 0 : index
    %1354 = vector.load %arg6[%c0_406, %c1_407, %c0_408, %c0_409] : memref<1x4x16x16xf32, #tpu.memory_space<vmem>>, vector<1x1x16x16xf32>
    %1355 = vector.shape_cast %1354 : vector<1x1x16x16xf32> to vector<16x16xf32>
    %1356 = vector.shape_cast %1342 : vector<16x16xf32> to vector<1x1x16x16xf32>
    tpu.vector_store %arg6[%c0_406, %c1_407, %c0_408, %c0_409], %1356 {strides = array<i32>} : memref<1x4x16x16xf32, #tpu.memory_space<vmem>>, vector<1x1x16x16xf32>,
    %c0_410 = arith.constant 0 : index
    %c2_411 = arith.constant 2 : index
    %c0_412 = arith.constant 0 : index
    %c0_413 = arith.constant 0 : index
    %1357 = vector.load %arg6[%c0_410, %c2_411, %c0_412, %c0_413] : memref<1x4x16x16xf32, #tpu.memory_space<vmem>>, vector<1x1x16x16xf32>
    %1358 = vector.shape_cast %1357 : vector<1x1x16x16xf32> to vector<16x16xf32>
    %1359 = vector.shape_cast %1346 : vector<16x16xf32> to vector<1x1x16x16xf32>
    tpu.vector_store %arg6[%c0_410, %c2_411, %c0_412, %c0_413], %1359 {strides = array<i32>} : memref<1x4x16x16xf32, #tpu.memory_space<vmem>>, vector<1x1x16x16xf32>,
    %c0_414 = arith.constant 0 : index
    %c3_415 = arith.constant 3 : index
    %c0_416 = arith.constant 0 : index
    %c0_417 = arith.constant 0 : index
    %1360 = vector.load %arg6[%c0_414, %c3_415, %c0_416, %c0_417] : memref<1x4x16x16xf32, #tpu.memory_space<vmem>>, vector<1x1x16x16xf32>
    %1361 = vector.shape_cast %1360 : vector<1x1x16x16xf32> to vector<16x16xf32>
    %1362 = vector.shape_cast %1350 : vector<16x16xf32> to vector<1x1x16x16xf32>
    tpu.vector_store %arg6[%c0_414, %c3_415, %c0_416, %c0_417], %1362 {strides = array<i32>} : memref<1x4x16x16xf32, #tpu.memory_space<vmem>>, vector<1x1x16x16xf32>,
    return
  }
  func.func @transform_0(%arg0: i32) -> (i32, i32, i32, i32) {
    %c0_i32 = arith.constant 0 : i32
    %c0_i32_0 = arith.constant 0 : i32
    %c0_i32_1 = arith.constant 0 : i32
    %c0_i32_2 = arith.constant 0 : i32
    return %arg0, %c0_i32, %c0_i32_0, %c0_i32_1 : i32, i32, i32, i32
  }
  func.func @transform_1(%arg0: i32) -> i32 {
    %c0_i32 = arith.constant 0 : i32
    %c0_i32_0 = arith.constant 0 : i32
    return %c0_i32 : i32
  }
  func.func @transform_2(%arg0: i32) -> i32 {
    %c0_i32 = arith.constant 0 : i32
    %c0_i32_0 = arith.constant 0 : i32
    return %c0_i32 : i32
  }
  func.func @transform_3(%arg0: i32) -> i32 {
    %c0_i32 = arith.constant 0 : i32
    %c0_i32_0 = arith.constant 0 : i32
    return %c0_i32 : i32
  }
  func.func @transform_4(%arg0: i32) -> i32 {
    %c0_i32 = arith.constant 0 : i32
    %c0_i32_0 = arith.constant 0 : i32
    return %c0_i32 : i32
  }
  func.func @transform_5(%arg0: i32) -> (i32, i32, i32, i32) {
    %c0_i32 = arith.constant 0 : i32
    %c0_i32_0 = arith.constant 0 : i32
    %c0_i32_1 = arith.constant 0 : i32
    %c0_i32_2 = arith.constant 0 : i32
    return %arg0, %c0_i32, %c0_i32_0, %c0_i32_1 : i32, i32, i32, i32
  }
}

</mosaic_0001>

<llo_original>
// kernel: tpu_custom_call.1
$region0: #{tpu_custom_call.1}
  #allocation0 [shape = 'u32[]', space=smem, size = 0x4, offset = 0x4, fixed_abs, tag = 'smem constant byte address 0x4 - core index']
  #allocation1 [shape = 'u32[144,128]{1,0:T(1,128)}', space=vmem, size = 0x12000, scoped, tag = 'internal scratch']
  #allocation2 [shape = 'f32[4,18,18]{2,1,0:T(8,128)}', space=vmem, size = 0xc000, scoped, tag = 'scratch operand']
  #allocation3 [shape = 'f32[4,18,18]{2,1,0:T(8,128)}', space=vmem, size = 0xc000, scoped, tag = 'scratch operand']
  %s0 = inlined_call_operand.hbm [shape: f32[2,4,16,16], index: 0, kind: input, shape index: {}]
  %s1 = inlined_call_operand.vmem [shape: f32[144], index: 1, kind: input, shape index: {}]
  %s2 = inlined_call_operand.vmem [shape: f32[4], index: 2, kind: input, shape index: {}]
  %s3 = inlined_call_operand.vmem [shape: f32[144], index: 3, kind: input, shape index: {}]
  %s4 = inlined_call_operand.vmem [shape: f32[4], index: 4, kind: input, shape index: {}]
  %s5 = inlined_call_operand.hbm [shape: f32[2,4,16,16], index: 5, kind: output, shape index: {}]
  %s6 = sld [smem:[#allocation0]]
  $region73: #{tpu_custom_call.1} parent=0
    _
  %s8 = ssub.s32 1, %s6
  %s9 = scalar_select 0, %s8, %s6
  $region1: #{tpu_custom_call.1} parent=0
    #allocation4 [shape = 'u8[65536]{0}', space=vmem, size = 0x10000, scoped, tag = 'input window, operand 0']
    #allocation5 [shape = 's32[2]{0}', space=sflag, size = 0x8, scoped, tag = 'scoped memory for tpu_custom_call.1']
    #allocation6 [shape = 's32[2]{0}', space=sflag, size = 0x8, scoped, tag = 'scoped memory for tpu_custom_call.1']
    #allocation7 [shape = 's32[2]{0}', space=sflag, size = 0x8, scoped, tag = 'scoped memory for tpu_custom_call.1']
    #allocation8 [shape = 'u8[1024]{0}', space=smem, size = 0x400, scoped, tag = 'input window, operand 1, single buffered']
    #allocation9 [shape = 'u8[512]{0}', space=smem, size = 0x200, scoped, tag = 'input window, operand 2, single buffered']
    #allocation10 [shape = 's32[1]{0}', space=sflag, size = 0x4, scoped, tag = 'scoped memory for tpu_custom_call.1']
    #allocation11 [shape = 'u8[1024]{0}', space=smem, size = 0x400, scoped, tag = 'input window, operand 3, single buffered']
    #allocation12 [shape = 'u8[512]{0}', space=smem, size = 0x200, scoped, tag = 'input window, operand 4, single buffered']
    #allocation13 [shape = 's32[1]{0}', space=sflag, size = 0x4, scoped, tag = 'scoped memory for tpu_custom_call.1']
    #allocation14 [shape = 'u8[65536]{0}', space=vmem, size = 0x10000, scoped, tag = 'output window, operand 0']
    %10 = vsyncpa [#allocation5], 0
    %s11 = scalar_lea.sflag [#allocation5], 1
    %12 = vsyncpa %s11, 0
    %13 = vsyncpa [#allocation7], 0
    %14 = vsyncpa [#allocation10], 0
    %15 = vsyncpa [#allocation13], 0
    %16 = vsyncpa [#allocation6], 0
    %s17 = scalar_lea.sflag [#allocation6], 1
    %18 = vsyncpa %s17, 0
    loop: start=0, step=1, limit=4
    $region2: #{tpu_custom_call.1} parent=1 // loop_pre_header
      _
    $region3: #{tpu_custom_call.1} parent=1 // loop_header
      %s20 = sphi 0, %s24
      %p21 = scmp.ge.s32.totalorder %s20, 4
      %s30 = sphi 0, %s32
      %s33 = sphi 0, %s30
      %s34 = sphi 0, %s33
      %s50 = sphi 0, %s34
      %s54 = sphi 0, %s54
      %s56 = sphi 0, %s54
      %s57 = sphi 0, %s56
      %s71 = sphi 0, %s57
      %s75 = sphi 0, %s75
      %s77 = sphi 0, %s75
      %s78 = sphi 0, %s77
      %s92 = sphi 0, %s78
      %s96 = sphi 0, %s96
      %s98 = sphi 0, %s96
      %s99 = sphi 0, %s98
      %s113 = sphi 0, %s99
      %s117 = sphi 0, %s117
      %s119 = sphi 0, %s117
      %s120 = sphi 0, %s119
      %s134 = sphi 0, %s120
      %s140 = sphi 0, %s142
      %s143 = sphi 0, %s140
      %s144 = sphi 0, %s143
      %s160 = sphi 0, %s144
    $region4: #{tpu_custom_call.1} parent=1 // loop_header_branch
      %23 = sbr.rel (%p21) target = $region8
    $region5: #{tpu_custom_call.1} parent=1 // loop_body
      %s25 = ssub.s32 %s20, 1
      %s26 = ssub.s32 %s20, 2
      %s27 = sadd.s32 %s20, 1
      %s28 = ssub.s32 %s20, %s27
      %p29 = scmp.eq.s32.totalorder %s28, 0
      %s31 = sadd.s32 %s30, 1
      %s32 = scalar_select %p29, %s30, %s31
      %p35 = pneg %p29
      %p36 = scmp.eq.s32.totalorder %s20, 1
      %p37 = por %p35, %p36
      %p38 = scmp.ne.s32.totalorder %s30, %s33
      %p39 = scmp.eq.s32.totalorder %s20, 0
      %p40 = por %p38, %p39
      %p41 = scmp.ne.s32.totalorder %s30, %s33
      %p42 = scmp.eq.s32.totalorder %s25, 1
      %p43 = por %p41, %p42
      %p44 = scmp.ne.s32.totalorder %s33, %s34
      %p45 = scmp.eq.s32.totalorder %s25, 0
      %p46 = por %p44, %p45
      %p47 = scmp.ne.s32.totalorder %s33, %s34
      %p48 = scmp.eq.s32.totalorder %s26, 1
      %p49 = por %p47, %p48
      %p51 = scmp.ne.s32.totalorder %s34, %s50
      %p52 = scmp.eq.s32.totalorder %s26, 0
      %p53 = por %p51, %p52
      %s55 = sadd.s32 %s54, 1
      %p58 = scmp.eq.s32.totalorder %s20, 1
      %p59 = scmp.ne.s32.totalorder %s54, %s56
      %p60 = scmp.eq.s32.totalorder %s20, 0
      %p61 = por %p59, %p60
      %p62 = scmp.ne.s32.totalorder %s54, %s56
      %p63 = scmp.eq.s32.totalorder %s25, 1
      %p64 = por %p62, %p63
      %p65 = scmp.ne.s32.totalorder %s56, %s57
      %p66 = scmp.eq.s32.totalorder %s25, 0
      %p67 = por %p65, %p66
      %p68 = scmp.ne.s32.totalorder %s56, %s57
      %p69 = scmp.eq.s32.totalorder %s26, 1
      %p70 = por %p68, %p69
      %p72 = scmp.ne.s32.totalorder %s57, %s71
      %p73 = scmp.eq.s32.totalorder %s26, 0
      %p74 = por %p72, %p73
      %s76 = sadd.s32 %s75, 1
      %p79 = scmp.eq.s32.totalorder %s20, 1
      %p80 = scmp.ne.s32.totalorder %s75, %s77
      %p81 = scmp.eq.s32.totalorder %s20, 0
      %p82 = por %p80, %p81
      %p83 = scmp.ne.s32.totalorder %s75, %s77
      %p84 = scmp.eq.s32.totalorder %s25, 1
      %p85 = por %p83, %p84
      %p86 = scmp.ne.s32.totalorder %s77, %s78
      %p87 = scmp.eq.s32.totalorder %s25, 0
      %p88 = por %p86, %p87
      %p89 = scmp.ne.s32.totalorder %s77, %s78
      %p90 = scmp.eq.s32.totalorder %s26, 1
      %p91 = por %p89, %p90
      %p93 = scmp.ne.s32.totalorder %s78, %s92
      %p94 = scmp.eq.s32.totalorder %s26, 0
      %p95 = por %p93, %p94
      %s97 = sadd.s32 %s96, 1
      %p100 = scmp.eq.s32.totalorder %s20, 1
      %p101 = scmp.ne.s32.totalorder %s96, %s98
      %p102 = scmp.eq.s32.totalorder %s20, 0
      %p103 = por %p101, %p102
      %p104 = scmp.ne.s32.totalorder %s96, %s98
      %p105 = scmp.eq.s32.totalorder %s25, 1
      %p106 = por %p104, %p105
      %p107 = scmp.ne.s32.totalorder %s98, %s99
      %p108 = scmp.eq.s32.totalorder %s25, 0
      %p109 = por %p107, %p108
      %p110 = scmp.ne.s32.totalorder %s98, %s99
      %p111 = scmp.eq.s32.totalorder %s26, 1
      %p112 = por %p110, %p111
      %p114 = scmp.ne.s32.totalorder %s99, %s113
      %p115 = scmp.eq.s32.totalorder %s26, 0
      %p116 = por %p114, %p115
      %s118 = sadd.s32 %s117, 1
      %p121 = scmp.eq.s32.totalorder %s20, 1
      %p122 = scmp.ne.s32.totalorder %s117, %s119
      %p123 = scmp.eq.s32.totalorder %s20, 0
      %p124 = por %p122, %p123
      %p125 = scmp.ne.s32.totalorder %s117, %s119
      %p126 = scmp.eq.s32.totalorder %s25, 1
      %p127 = por %p125, %p126
      %p128 = scmp.ne.s32.totalorder %s119, %s120
      %p129 = scmp.eq.s32.totalorder %s25, 0
      %p130 = por %p128, %p129
      %p131 = scmp.ne.s32.totalorder %s119, %s120
      %p132 = scmp.eq.s32.totalorder %s26, 1
      %p133 = por %p131, %p132
      %p135 = scmp.ne.s32.totalorder %s120, %s134
      %p136 = scmp.eq.s32.totalorder %s26, 0
      %p137 = por %p135, %p136
      %s138 = ssub.s32 %s20, %s27
      %p139 = scmp.eq.s32.totalorder %s138, 0
      %s141 = sadd.s32 %s140, 1
      %s142 = scalar_select %p139, %s140, %s141
      %p145 = pneg %p139
      %p146 = scmp.eq.s32.totalorder %s20, 1
      %p147 = por %p145, %p146
      %p148 = scmp.ne.s32.totalorder %s140, %s143
      %p149 = scmp.eq.s32.totalorder %s20, 0
      %p150 = por %p148, %p149
      %p151 = scmp.ne.s32.totalorder %s140, %s143
      %p152 = scmp.eq.s32.totalorder %s25, 1
      %p153 = por %p151, %p152
      %p154 = scmp.ne.s32.totalorder %s143, %s144
      %p155 = scmp.eq.s32.totalorder %s25, 0
      %p156 = por %p154, %p155
      %p157 = scmp.ne.s32.totalorder %s143, %s144
      %p158 = scmp.eq.s32.totalorder %s26, 1
      %p159 = por %p157, %p158
      %p161 = scmp.ne.s32.totalorder %s144, %s160
      %p162 = scmp.eq.s32.totalorder %s26, 0
      %p163 = por %p161, %p162
      %p164 = scmp.le.s32.totalorder 1, %s20
      %p165 = scmp.lt.s32.totalorder %s20, 3
      %p166 = pnand %p164, %p165
      %p167 = pneg %p166
      // Predicated region
      $region9: #{tpu_custom_call.1} parent=5 // pred_check
        _
      $region10: #{tpu_custom_call.1} parent=5 // pred_check_branch
        %169 = sbr.rel (%p166) target = $region12
      $region11: #{tpu_custom_call.1} parent=5 // pred_region
        %s170 = ssub.s32 %s20, 1
        // Predicated region
        $region13: #{tpu_custom_call.1} parent=11 // pred_check
          %p171 = pneg %p67
        $region14: #{tpu_custom_call.1} parent=11 // pred_check_branch
          %173 = sbr.rel (%p171) target = $region16
        $region15: #{tpu_custom_call.1} parent=11 // pred_region
          %s175 = ssub.s32 32, 32
          %176 = vsyncadd [#allocation7], %s175
          %s178 = sshll.u32 %s1, 4
          %s179 = int_to_ptr.vmem [resolvable:$true] %s178
          %181 = dma.vmem_to_smem %s179, 32, [#allocation8], [#allocation7]
        $region16: #{tpu_custom_call.1} parent=11 // pred_fallthru
          _
        // Predicated region
        $region17: #{tpu_custom_call.1} parent=11 // pred_check
          %p182 = pneg %p88
        $region18: #{tpu_custom_call.1} parent=11 // pred_check_branch
          %184 = sbr.rel (%p182) target = $region20
        $region19: #{tpu_custom_call.1} parent=11 // pred_region
          %s186 = ssub.s32 16, 16
          %187 = vsyncadd [#allocation10], %s186
          %s189 = sshll.u32 %s2, 4
          %s190 = int_to_ptr.vmem [resolvable:$true] %s189
          %192 = dma.vmem_to_smem %s190, 16, [#allocation9], [#allocation10]
        $region20: #{tpu_custom_call.1} parent=11 // pred_fallthru
          _
        // Predicated region
        $region21: #{tpu_custom_call.1} parent=11 // pred_check
          %p193 = pneg %p109
        $region22: #{tpu_custom_call.1} parent=11 // pred_check_branch
          %195 = sbr.rel (%p193) target = $region24
        $region23: #{tpu_custom_call.1} parent=11 // pred_region
          %s197 = ssub.s32 32, 32
          %198 = vsyncadd [#allocation10], %s197
          %s200 = sshll.u32 %s3, 4
          %s201 = int_to_ptr.vmem [resolvable:$true] %s200
          %203 = dma.vmem_to_smem %s201, 32, [#allocation11], [#allocation10]
        $region24: #{tpu_custom_call.1} parent=11 // pred_fallthru
          _
        // Predicated region
        $region25: #{tpu_custom_call.1} parent=11 // pred_check
          %p204 = pneg %p130
        $region26: #{tpu_custom_call.1} parent=11 // pred_check_branch
          %206 = sbr.rel (%p204) target = $region28
        $region27: #{tpu_custom_call.1} parent=11 // pred_region
          %s208 = ssub.s32 16, 16
          %209 = vsyncadd [#allocation13], %s208
          %s211 = sshll.u32 %s4, 4
          %s212 = int_to_ptr.vmem [resolvable:$true] %s211
          %214 = dma.vmem_to_smem %s212, 16, [#allocation12], [#allocation13]
        $region28: #{tpu_custom_call.1} parent=11 // pred_fallthru
          _
      $region12: #{tpu_custom_call.1} parent=5 // pred_fallthru
        _
      %p215 = scmp.lt.s32.totalorder %s20, 2
      // Predicated region
      $region29: #{tpu_custom_call.1} parent=5 // pred_check
        %p216 = pneg %p215
      $region30: #{tpu_custom_call.1} parent=5 // pred_check_branch
        %218 = sbr.rel (%p216) target = $region32
      $region31: #{tpu_custom_call.1} parent=5 // pred_region
        // Predicated region
        $region33: #{tpu_custom_call.1} parent=31 // pred_check
          %p219 = pneg %p40
        $region34: #{tpu_custom_call.1} parent=31 // pred_check_branch
          %221 = sbr.rel (%p219) target = $region36
        $region35: #{tpu_custom_call.1} parent=31 // pred_region
          %s222 = sand.u32 %s30, 1
          %s223 = scalar_lea.sflag [#allocation5], %s222
          %s224 = sand.u32 %s30, 1
          %s225 = smul.addr %s224, 64
          %s226 = scalar_lea.vmem [#allocation4], %s225
          %s228 = ssub.s32 1024, 1024
          %229 = vsyncadd %s223, %s228
          %s230 = smul.addr %s20, 8
          %s231 = smul.addr %s230, 128
          %s232 = scalar_lea.hbm %s0, %s231
          %s233 = sshll.u32 %s226, 4
          %s234 = int_to_ptr.vmem [resolvable:$true] %s233
          %239 = dma.hbm_to_vmem [thread:$0]  %s232, 1024, %s234, %s223, 128, 128, 8
        $region36: #{tpu_custom_call.1} parent=31 // pred_fallthru
          _
      $region32: #{tpu_custom_call.1} parent=5 // pred_fallthru
        _
      %p240 = scmp.le.s32.totalorder 1, %s20
      %p241 = scmp.lt.s32.totalorder %s20, 3
      %p242 = pnand %p240, %p241
      %p243 = pneg %p242
      // Predicated region
      $region37: #{tpu_custom_call.1} parent=5 // pred_check
        _
      $region38: #{tpu_custom_call.1} parent=5 // pred_check_branch
        %245 = sbr.rel (%p242) target = $region40
      $region39: #{tpu_custom_call.1} parent=5 // pred_region
        %s246 = ssub.s32 %s20, 1
        %s247 = sand.u32 %s33, 1
        %s248 = scalar_lea.sflag [#allocation5], %s247
        %s249 = sand.u32 %s33, 1
        %s250 = smul.addr %s249, 64
        %s251 = scalar_lea.vmem [#allocation4], %s250
        // Predicated region
        $region41: #{tpu_custom_call.1} parent=39 // pred_check
          %p252 = pneg %p46
        $region42: #{tpu_custom_call.1} parent=39 // pred_check_branch
          %254 = sbr.rel (%p252) target = $region44
        $region43: #{tpu_custom_call.1} parent=39 // pred_region
          %255 = dma.done %s248, 1024
        $region44: #{tpu_custom_call.1} parent=39 // pred_fallthru
          _
        // Predicated region
        $region45: #{tpu_custom_call.1} parent=39 // pred_check
          %p256 = pneg %p67
        $region46: #{tpu_custom_call.1} parent=39 // pred_check_branch
          %258 = sbr.rel (%p256) target = $region48
        $region47: #{tpu_custom_call.1} parent=39 // pred_region
          %259 = dma.done [#allocation7], 32
        $region48: #{tpu_custom_call.1} parent=39 // pred_fallthru
          _
        // Predicated region
        $region49: #{tpu_custom_call.1} parent=39 // pred_check
          %p260 = pneg %p88
        $region50: #{tpu_custom_call.1} parent=39 // pred_check_branch
          %262 = sbr.rel (%p260) target = $region52
        $region51: #{tpu_custom_call.1} parent=39 // pred_region
          %263 = dma.done [#allocation10], 16
        $region52: #{tpu_custom_call.1} parent=39 // pred_fallthru
          _
        // Predicated region
        $region53: #{tpu_custom_call.1} parent=39 // pred_check
          %p264 = pneg %p109
        $region54: #{tpu_custom_call.1} parent=39 // pred_check_branch
          %266 = sbr.rel (%p264) target = $region56
        $region55: #{tpu_custom_call.1} parent=39 // pred_region
          %267 = dma.done [#allocation10], 32
        $region56: #{tpu_custom_call.1} parent=39 // pred_fallthru
          _
        // Predicated region
        $region57: #{tpu_custom_call.1} parent=39 // pred_check
          %p268 = pneg %p130
        $region58: #{tpu_custom_call.1} parent=39 // pred_check_branch
          %270 = sbr.rel (%p268) target = $region60
        $region59: #{tpu_custom_call.1} parent=39 // pred_region
          %271 = dma.done [#allocation13], 16
        $region60: #{tpu_custom_call.1} parent=39 // pred_fallthru
          _
        %272 = sfence
        %s273 = sand.u32 %s33, 1
        %s274 = scalar_lea.sflag [#allocation5], %s273
        %s275 = sand.u32 %s33, 1
        %s276 = smul.addr %s275, 64
        %s277 = scalar_lea.vmem [#allocation4], %s276
        %p278 = pneg %p46
        %p279 = pneg %p43
        %p280 = pneg %p67
        %p281 = pneg %p64
        %p282 = pneg %p88
        %p283 = pneg %p85
        %p284 = pneg %p109
        %p285 = pneg %p106
        %p286 = pneg %p130
        %p287 = pneg %p127
        %p288 = pneg %p156
        %p289 = pneg %p153
        %s290 = sand.u32 %s143, 1
        %s291 = scalar_lea.sflag [#allocation6], %s290
        %s292 = sand.u32 %s143, 1
        %s293 = smul.addr %s292, 64
        %s294 = scalar_lea.vmem [#allocation14], %s293
        %vm295 = vcmask 146432
        %296 = vst.msk [vmem:[#allocation2] sm:$0xff] %vm295, 0.0
        %297 = vst.msk [vmem:[#allocation2 + $0x8] sm:$0xff] %vm295, 0.0
        %vm298 = vcmask 140288
        %299 = vst.msk [vmem:[#allocation2 + $0x10] sm:$0x3] %vm298, 0.0
        %300 = vst.msk [vmem:[#allocation2 + $0x18] sm:$0xff] %vm295, 0.0
        %301 = vst.msk [vmem:[#allocation2 + $0x20] sm:$0xff] %vm295, 0.0
        %302 = vst.msk [vmem:[#allocation2 + $0x28] sm:$0x3] %vm298, 0.0
        %303 = vst.msk [vmem:[#allocation2 + $0x30] sm:$0xff] %vm295, 0.0
        %304 = vst.msk [vmem:[#allocation2 + $0x38] sm:$0xff] %vm295, 0.0
        %305 = vst.msk [vmem:[#allocation2 + $0x40] sm:$0x3] %vm298, 0.0
        %306 = vst.msk [vmem:[#allocation2 + $0x48] sm:$0xff] %vm295, 0.0
        %307 = vst.msk [vmem:[#allocation2 + $0x50] sm:$0xff] %vm295, 0.0
        %308 = vst.msk [vmem:[#allocation2 + $0x58] sm:$0x3] %vm298, 0.0
        %309 = vst.msk [vmem:[#allocation3] sm:$0xff] %vm295, 0.0
        %310 = vst.msk [vmem:[#allocation3 + $0x8] sm:$0xff] %vm295, 0.0
        %311 = vst.msk [vmem:[#allocation3 + $0x10] sm:$0x3] %vm298, 0.0
        %312 = vst.msk [vmem:[#allocation3 + $0x18] sm:$0xff] %vm295, 0.0
        %313 = vst.msk [vmem:[#allocation3 + $0x20] sm:$0xff] %vm295, 0.0
        %314 = vst.msk [vmem:[#allocation3 + $0x28] sm:$0x3] %vm298, 0.0
        %315 = vst.msk [vmem:[#allocation3 + $0x30] sm:$0xff] %vm295, 0.0
        %316 = vst.msk [vmem:[#allocation3 + $0x38] sm:$0xff] %vm295, 0.0
        %317 = vst.msk [vmem:[#allocation3 + $0x40] sm:$0x3] %vm298, 0.0
        %318 = vst.msk [vmem:[#allocation3 + $0x48] sm:$0xff] %vm295, 0.0
        %319 = vst.msk [vmem:[#allocation3 + $0x50] sm:$0xff] %vm295, 0.0
        %320 = vst.msk [vmem:[#allocation3 + $0x58] sm:$0x3] %vm298, 0.0
        %v321 = vld [vmem:[%s251] sm:$0xff]
        %v322 = vld [vmem:[%s251 + $0x8] sm:$0xff]
        %v323 = vld [vmem:[%s251 + $0x10] sm:$0xff]
        %v324 = vld [vmem:[%s251 + $0x18] sm:$0xff]
        %v325 = vld [vmem:[%s251 + $0x20] sm:$0xff]
        %v326 = vld [vmem:[%s251 + $0x28] sm:$0xff]
        %v327 = vld [vmem:[%s251 + $0x30] sm:$0xff]
        %v328 = vld [vmem:[%s251 + $0x38] sm:$0xff]
        %337 = vrot.lane.b32.xlu0 %v321, 1
        %v338 = vpop.permute.xlu0 %337
        %339 = vrot.lane.b32.xlu0 %v322, 1
        %v340 = vpop.permute.xlu0 %339
        %341 = vrot.lane.b32.xlu0 %v323, 1
        %v342 = vpop.permute.xlu0 %341
        %343 = vrot.lane.b32.xlu0 %v324, 1
        %v344 = vpop.permute.xlu0 %343
        %345 = vrot.lane.b32.xlu0 %v325, 1
        %v346 = vpop.permute.xlu0 %345
        %347 = vrot.lane.b32.xlu0 %v326, 1
        %v348 = vpop.permute.xlu0 %347
        %349 = vrot.lane.b32.xlu0 %v327, 1
        %v350 = vpop.permute.xlu0 %349
        %351 = vrot.lane.b32.xlu0 %v328, 1
        %v352 = vpop.permute.xlu0 %351
        %vm361 = vcmask 138248
        %362 = vst.msk [vmem:[#allocation2 + $0x1] sm:$0xff] %vm361, %v338
        %363 = vst.msk [vmem:[#allocation2 + $0x9] sm:$0xff] %vm361, %v340
        %364 = vst.msk [vmem:[#allocation2 + $0x19] sm:$0xff] %vm361, %v342
        %365 = vst.msk [vmem:[#allocation2 + $0x21] sm:$0xff] %vm361, %v344
        %366 = vst.msk [vmem:[#allocation2 + $0x31] sm:$0xff] %vm361, %v346
        %367 = vst.msk [vmem:[#allocation2 + $0x39] sm:$0xff] %vm361, %v348
        %368 = vst.msk [vmem:[#allocation2 + $0x49] sm:$0xff] %vm361, %v350
        %369 = vst.msk [vmem:[#allocation2 + $0x51] sm:$0xff] %vm361, %v352
        %s370 = sld [smem:[#allocation9]]
        %v371 = vstv %s370
        %s372 = sld [smem:[#allocation9 + $0x1]]
        %v373 = vstv %s372
        %s374 = sld [smem:[#allocation9 + $0x2]]
        %v375 = vstv %s374
        %s376 = sld [smem:[#allocation9 + $0x3]]
        %v377 = vstv %s376
        %v378 = vld [vmem:[#allocation2] sm:$0xff]
        %v379 = vld [vmem:[#allocation2 + $0x8] sm:$0xff]
        %s380 = sld [smem:[#allocation8]]
        %v381 = vstv %s380
        %v382 = vmul.f32 %v381, %v378
        %v383 = vmul.f32 %v381, %v379
        %v384 = vadd.f32 %v371, %v382
        %v385 = vadd.f32 %v371, %v383
        %s386 = sld [smem:[#allocation8 + $0x24]]
        %v387 = vstv %s386
        %v388 = vmul.f32 %v387, %v378
        %v389 = vmul.f32 %v387, %v379
        %v390 = vadd.f32 %v373, %v388
        %v391 = vadd.f32 %v373, %v389
        %s392 = sld [smem:[#allocation8 + $0x48]]
        %v393 = vstv %s392
        %v394 = vmul.f32 %v393, %v378
        %v395 = vmul.f32 %v393, %v379
        %v396 = vadd.f32 %v375, %v394
        %v397 = vadd.f32 %v375, %v395
        %s398 = sld [smem:[#allocation8 + $0x6c]]
        %v399 = vstv %s398
        %v400 = vmul.f32 %v399, %v378
        %v401 = vmul.f32 %v399, %v379
        %v402 = vadd.f32 %v377, %v400
        %v403 = vadd.f32 %v377, %v401
        %s404 = sld [smem:[#allocation8 + $0x1]]
        %v405 = vstv %s404
        %v406 = vmul.f32 %v405, %v378
        %v407 = vmul.f32 %v405, %v379
        %410 = vrot.lane.b32.xlu0 %v406, 127
        %v411 = vpop.permute.xlu0 %410
        %412 = vrot.lane.b32.xlu0 %v407, 127
        %v413 = vpop.permute.xlu0 %412
        %v416 = vadd.f32 %v384, %v411
        %v417 = vadd.f32 %v385, %v413
        %s418 = sld [smem:[#allocation8 + $0x25]]
        %v419 = vstv %s418
        %v420 = vmul.f32 %v419, %v378
        %v421 = vmul.f32 %v419, %v379
        %424 = vrot.lane.b32.xlu0 %v420, 127
        %v425 = vpop.permute.xlu0 %424
        %426 = vrot.lane.b32.xlu0 %v421, 127
        %v427 = vpop.permute.xlu0 %426
        %v430 = vadd.f32 %v390, %v425
        %v431 = vadd.f32 %v391, %v427
        %s432 = sld [smem:[#allocation8 + $0x49]]
        %v433 = vstv %s432
        %v434 = vmul.f32 %v433, %v378
        %v435 = vmul.f32 %v433, %v379
        %438 = vrot.lane.b32.xlu0 %v434, 127
        %v439 = vpop.permute.xlu0 %438
        %440 = vrot.lane.b32.xlu0 %v435, 127
        %v441 = vpop.permute.xlu0 %440
        %v444 = vadd.f32 %v396, %v439
        %v445 = vadd.f32 %v397, %v441
        %s446 = sld [smem:[#allocation8 + $0x6d]]
        %v447 = vstv %s446
        %v448 = vmul.f32 %v447, %v378
        %v449 = vmul.f32 %v447, %v379
        %452 = vrot.lane.b32.xlu0 %v448, 127
        %v453 = vpop.permute.xlu0 %452
        %454 = vrot.lane.b32.xlu0 %v449, 127
        %v455 = vpop.permute.xlu0 %454
        %v458 = vadd.f32 %v402, %v453
        %v459 = vadd.f32 %v403, %v455
        %s460 = sld [smem:[#allocation8 + $0x2]]
        %v461 = vstv %s460
        %v462 = vmul.f32 %v461, %v378
        %v463 = vmul.f32 %v461, %v379
        %466 = vrot.lane.b32.xlu0 %v462, 126
        %v467 = vpop.permute.xlu0 %466
        %468 = vrot.lane.b32.xlu0 %v463, 126
        %v469 = vpop.permute.xlu0 %468
        %v472 = vadd.f32 %v416, %v467
        %v473 = vadd.f32 %v417, %v469
        %s474 = sld [smem:[#allocation8 + $0x26]]
        %v475 = vstv %s474
        %v476 = vmul.f32 %v475, %v378
        %v477 = vmul.f32 %v475, %v379
        %480 = vrot.lane.b32.xlu0 %v476, 126
        %v481 = vpop.permute.xlu0 %480
        %482 = vrot.lane.b32.xlu0 %v477, 126
        %v483 = vpop.permute.xlu0 %482
        %v486 = vadd.f32 %v430, %v481
        %v487 = vadd.f32 %v431, %v483
        %s488 = sld [smem:[#allocation8 + $0x4a]]
        %v489 = vstv %s488
        %v490 = vmul.f32 %v489, %v378
        %v491 = vmul.f32 %v489, %v379
        %494 = vrot.lane.b32.xlu0 %v490, 126
        %v495 = vpop.permute.xlu0 %494
        %496 = vrot.lane.b32.xlu0 %v491, 126
        %v497 = vpop.permute.xlu0 %496
        %v500 = vadd.f32 %v444, %v495
        %v501 = vadd.f32 %v445, %v497
        %s502 = sld [smem:[#allocation8 + $0x6e]]
        %v503 = vstv %s502
        %v504 = vmul.f32 %v503, %v378
        %v505 = vmul.f32 %v503, %v379
        %508 = vrot.lane.b32.xlu0 %v504, 126
        %v509 = vpop.permute.xlu0 %508
        %510 = vrot.lane.b32.xlu0 %v505, 126
        %v511 = vpop.permute.xlu0 %510
        %v514 = vadd.f32 %v458, %v509
        %v515 = vadd.f32 %v459, %v511
        %v516 = vld [vmem:[#allocation2 + $0x1] sm:$0xff]
        %v517 = vld [vmem:[#allocation2 + $0x9] sm:$0xff]
        %s518 = sld [smem:[#allocation8 + $0x3]]
        %v519 = vstv %s518
        %v520 = vmul.f32 %v519, %v516
        %v521 = vmul.f32 %v519, %v517
        %v522 = vadd.f32 %v472, %v520
        %v523 = vadd.f32 %v473, %v521
        %s524 = sld [smem:[#allocation8 + $0x27]]
        %v525 = vstv %s524
        %v526 = vmul.f32 %v525, %v516
        %v527 = vmul.f32 %v525, %v517
        %v528 = vadd.f32 %v486, %v526
        %v529 = vadd.f32 %v487, %v527
        %s530 = sld [smem:[#allocation8 + $0x4b]]
        %v531 = vstv %s530
        %v532 = vmul.f32 %v531, %v516
        %v533 = vmul.f32 %v531, %v517
        %v534 = vadd.f32 %v500, %v532
        %v535 = vadd.f32 %v501, %v533
        %s536 = sld [smem:[#allocation8 + $0x6f]]
        %v537 = vstv %s536
        %v538 = vmul.f32 %v537, %v516
        %v539 = vmul.f32 %v537, %v517
        %v540 = vadd.f32 %v514, %v538
        %v541 = vadd.f32 %v515, %v539
        %s542 = sld [smem:[#allocation8 + $0x4]]
        %v543 = vstv %s542
        %v544 = vmul.f32 %v543, %v516
        %v545 = vmul.f32 %v543, %v517
        %548 = vrot.lane.b32.xlu0 %v544, 127
        %v549 = vpop.permute.xlu0 %548
        %550 = vrot.lane.b32.xlu0 %v545, 127
        %v551 = vpop.permute.xlu0 %550
        %v554 = vadd.f32 %v522, %v549
        %v555 = vadd.f32 %v523, %v551
        %s556 = sld [smem:[#allocation8 + $0x28]]
        %v557 = vstv %s556
        %v558 = vmul.f32 %v557, %v516
        %v559 = vmul.f32 %v557, %v517
        %562 = vrot.lane.b32.xlu0 %v558, 127
        %v563 = vpop.permute.xlu0 %562
        %564 = vrot.lane.b32.xlu0 %v559, 127
        %v565 = vpop.permute.xlu0 %564
        %v568 = vadd.f32 %v528, %v563
        %v569 = vadd.f32 %v529, %v565
        %s570 = sld [smem:[#allocation8 + $0x4c]]
        %v571 = vstv %s570
        %v572 = vmul.f32 %v571, %v516
        %v573 = vmul.f32 %v571, %v517
        %576 = vrot.lane.b32.xlu0 %v572, 127
        %v577 = vpop.permute.xlu0 %576
        %578 = vrot.lane.b32.xlu0 %v573, 127
        %v579 = vpop.permute.xlu0 %578
        %v582 = vadd.f32 %v534, %v577
        %v583 = vadd.f32 %v535, %v579
        %s584 = sld [smem:[#allocation8 + $0x70]]
        %v585 = vstv %s584
        %v586 = vmul.f32 %v585, %v516
        %v587 = vmul.f32 %v585, %v517
        %590 = vrot.lane.b32.xlu0 %v586, 127
        %v591 = vpop.permute.xlu0 %590
        %592 = vrot.lane.b32.xlu0 %v587, 127
        %v593 = vpop.permute.xlu0 %592
        %v596 = vadd.f32 %v540, %v591
        %v597 = vadd.f32 %v541, %v593
        %s598 = sld [smem:[#allocation8 + $0x5]]
        %v599 = vstv %s598
        %v600 = vmul.f32 %v599, %v516
        %v601 = vmul.f32 %v599, %v517
        %604 = vrot.lane.b32.xlu0 %v600, 126
        %v605 = vpop.permute.xlu0 %604
        %606 = vrot.lane.b32.xlu0 %v601, 126
        %v607 = vpop.permute.xlu0 %606
        %v610 = vadd.f32 %v554, %v605
        %v611 = vadd.f32 %v555, %v607
        %s612 = sld [smem:[#allocation8 + $0x29]]
        %v613 = vstv %s612
        %v614 = vmul.f32 %v613, %v516
        %v615 = vmul.f32 %v613, %v517
        %618 = vrot.lane.b32.xlu0 %v614, 126
        %v619 = vpop.permute.xlu0 %618
        %620 = vrot.lane.b32.xlu0 %v615, 126
        %v621 = vpop.permute.xlu0 %620
        %v624 = vadd.f32 %v568, %v619
        %v625 = vadd.f32 %v569, %v621
        %s626 = sld [smem:[#allocation8 + $0x4d]]
        %v627 = vstv %s626
        %v628 = vmul.f32 %v627, %v516
        %v629 = vmul.f32 %v627, %v517
        %632 = vrot.lane.b32.xlu0 %v628, 126
        %v633 = vpop.permute.xlu0 %632
        %634 = vrot.lane.b32.xlu0 %v629, 126
        %v635 = vpop.permute.xlu0 %634
        %v638 = vadd.f32 %v582, %v633
        %v639 = vadd.f32 %v583, %v635
        %s640 = sld [smem:[#allocation8 + $0x71]]
        %v641 = vstv %s640
        %v642 = vmul.f32 %v641, %v516
        %v643 = vmul.f32 %v641, %v517
        %646 = vrot.lane.b32.xlu0 %v642, 126
        %v647 = vpop.permute.xlu0 %646
        %648 = vrot.lane.b32.xlu0 %v643, 126
        %v649 = vpop.permute.xlu0 %648
        %v652 = vadd.f32 %v596, %v647
        %v653 = vadd.f32 %v597, %v649
        %v654 = vld [vmem:[#allocation2 + $0x2] sm:$0xff]
        %v655 = vld [vmem:[#allocation2 + $0xa] sm:$0xff]
        %s656 = sld [smem:[#allocation8 + $0x6]]
        %v657 = vstv %s656
        %v658 = vmul.f32 %v657, %v654
        %v659 = vmul.f32 %v657, %v655
        %v660 = vadd.f32 %v610, %v658
        %v661 = vadd.f32 %v611, %v659
        %s662 = sld [smem:[#allocation8 + $0x2a]]
        %v663 = vstv %s662
        %v664 = vmul.f32 %v663, %v654
        %v665 = vmul.f32 %v663, %v655
        %v666 = vadd.f32 %v624, %v664
        %v667 = vadd.f32 %v625, %v665
        %s668 = sld [smem:[#allocation8 + $0x4e]]
        %v669 = vstv %s668
        %v670 = vmul.f32 %v669, %v654
        %v671 = vmul.f32 %v669, %v655
        %v672 = vadd.f32 %v638, %v670
        %v673 = vadd.f32 %v639, %v671
        %s674 = sld [smem:[#allocation8 + $0x72]]
        %v675 = vstv %s674
        %v676 = vmul.f32 %v675, %v654
        %v677 = vmul.f32 %v675, %v655
        %v678 = vadd.f32 %v652, %v676
        %v679 = vadd.f32 %v653, %v677
        %s680 = sld [smem:[#allocation8 + $0x7]]
        %v681 = vstv %s680
        %v682 = vmul.f32 %v681, %v654
        %v683 = vmul.f32 %v681, %v655
        %686 = vrot.lane.b32.xlu0 %v682, 127
        %v687 = vpop.permute.xlu0 %686
        %688 = vrot.lane.b32.xlu0 %v683, 127
        %v689 = vpop.permute.xlu0 %688
        %v692 = vadd.f32 %v660, %v687
        %v693 = vadd.f32 %v661, %v689
        %s694 = sld [smem:[#allocation8 + $0x2b]]
        %v695 = vstv %s694
        %v696 = vmul.f32 %v695, %v654
        %v697 = vmul.f32 %v695, %v655
        %700 = vrot.lane.b32.xlu0 %v696, 127
        %v701 = vpop.permute.xlu0 %700
        %702 = vrot.lane.b32.xlu0 %v697, 127
        %v703 = vpop.permute.xlu0 %702
        %v706 = vadd.f32 %v666, %v701
        %v707 = vadd.f32 %v667, %v703
        %s708 = sld [smem:[#allocation8 + $0x4f]]
        %v709 = vstv %s708
        %v710 = vmul.f32 %v709, %v654
        %v711 = vmul.f32 %v709, %v655
        %714 = vrot.lane.b32.xlu0 %v710, 127
        %v715 = vpop.permute.xlu0 %714
        %716 = vrot.lane.b32.xlu0 %v711, 127
        %v717 = vpop.permute.xlu0 %716
        %v720 = vadd.f32 %v672, %v715
        %v721 = vadd.f32 %v673, %v717
        %s722 = sld [smem:[#allocation8 + $0x73]]
        %v723 = vstv %s722
        %v724 = vmul.f32 %v723, %v654
        %v725 = vmul.f32 %v723, %v655
        %728 = vrot.lane.b32.xlu0 %v724, 127
        %v729 = vpop.permute.xlu0 %728
        %730 = vrot.lane.b32.xlu0 %v725, 127
        %v731 = vpop.permute.xlu0 %730
        %v734 = vadd.f32 %v678, %v729
        %v735 = vadd.f32 %v679, %v731
        %s736 = sld [smem:[#allocation8 + $0x8]]
        %v737 = vstv %s736
        %v738 = vmul.f32 %v737, %v654
        %v739 = vmul.f32 %v737, %v655
        %742 = vrot.lane.b32.xlu0 %v738, 126
        %v743 = vpop.permute.xlu0 %742
        %744 = vrot.lane.b32.xlu0 %v739, 126
        %v745 = vpop.permute.xlu0 %744
        %v748 = vadd.f32 %v692, %v743
        %v749 = vadd.f32 %v693, %v745
        %s750 = sld [smem:[#allocation8 + $0x2c]]
        %v751 = vstv %s750
        %v752 = vmul.f32 %v751, %v654
        %v753 = vmul.f32 %v751, %v655
        %756 = vrot.lane.b32.xlu0 %v752, 126
        %v757 = vpop.permute.xlu0 %756
        %758 = vrot.lane.b32.xlu0 %v753, 126
        %v759 = vpop.permute.xlu0 %758
        %v762 = vadd.f32 %v706, %v757
        %v763 = vadd.f32 %v707, %v759
        %s764 = sld [smem:[#allocation8 + $0x50]]
        %v765 = vstv %s764
        %v766 = vmul.f32 %v765, %v654
        %v767 = vmul.f32 %v765, %v655
        %770 = vrot.lane.b32.xlu0 %v766, 126
        %v771 = vpop.permute.xlu0 %770
        %772 = vrot.lane.b32.xlu0 %v767, 126
        %v773 = vpop.permute.xlu0 %772
        %v776 = vadd.f32 %v720, %v771
        %v777 = vadd.f32 %v721, %v773
        %s778 = sld [smem:[#allocation8 + $0x74]]
        %v779 = vstv %s778
        %v780 = vmul.f32 %v779, %v654
        %v781 = vmul.f32 %v779, %v655
        %784 = vrot.lane.b32.xlu0 %v780, 126
        %v785 = vpop.permute.xlu0 %784
        %786 = vrot.lane.b32.xlu0 %v781, 126
        %v787 = vpop.permute.xlu0 %786
        %v790 = vadd.f32 %v734, %v785
        %v791 = vadd.f32 %v735, %v787
        %s792 = scalar_lea.vmem [#allocation2], 24
        %v793 = vld [vmem:[%s792] sm:$0xff]
        %v794 = vld [vmem:[%s792 + $0x8] sm:$0xff]
        %s795 = sld [smem:[#allocation8 + $0x9]]
        %v796 = vstv %s795
        %v797 = vmul.f32 %v796, %v793
        %v798 = vmul.f32 %v796, %v794
        %v799 = vadd.f32 %v748, %v797
        %v800 = vadd.f32 %v749, %v798
        %s801 = sld [smem:[#allocation8 + $0x2d]]
        %v802 = vstv %s801
        %v803 = vmul.f32 %v802, %v793
        %v804 = vmul.f32 %v802, %v794
        %v805 = vadd.f32 %v762, %v803
        %v806 = vadd.f32 %v763, %v804
        %s807 = sld [smem:[#allocation8 + $0x51]]
        %v808 = vstv %s807
        %v809 = vmul.f32 %v808, %v793
        %v810 = vmul.f32 %v808, %v794
        %v811 = vadd.f32 %v776, %v809
        %v812 = vadd.f32 %v777, %v810
        %s813 = sld [smem:[#allocation8 + $0x75]]
        %v814 = vstv %s813
        %v815 = vmul.f32 %v814, %v793
        %v816 = vmul.f32 %v814, %v794
        %v817 = vadd.f32 %v790, %v815
        %v818 = vadd.f32 %v791, %v816
        %s819 = sld [smem:[#allocation8 + $0xa]]
        %v820 = vstv %s819
        %v821 = vmul.f32 %v820, %v793
        %v822 = vmul.f32 %v820, %v794
        %825 = vrot.lane.b32.xlu0 %v821, 127
        %v826 = vpop.permute.xlu0 %825
        %827 = vrot.lane.b32.xlu0 %v822, 127
        %v828 = vpop.permute.xlu0 %827
        %v831 = vadd.f32 %v799, %v826
        %v832 = vadd.f32 %v800, %v828
        %s833 = sld [smem:[#allocation8 + $0x2e]]
        %v834 = vstv %s833
        %v835 = vmul.f32 %v834, %v793
        %v836 = vmul.f32 %v834, %v794
        %839 = vrot.lane.b32.xlu0 %v835, 127
        %v840 = vpop.permute.xlu0 %839
        %841 = vrot.lane.b32.xlu0 %v836, 127
        %v842 = vpop.permute.xlu0 %841
        %v845 = vadd.f32 %v805, %v840
        %v846 = vadd.f32 %v806, %v842
        %s847 = sld [smem:[#allocation8 + $0x52]]
        %v848 = vstv %s847
        %v849 = vmul.f32 %v848, %v793
        %v850 = vmul.f32 %v848, %v794
        %853 = vrot.lane.b32.xlu0 %v849, 127
        %v854 = vpop.permute.xlu0 %853
        %855 = vrot.lane.b32.xlu0 %v850, 127
        %v856 = vpop.permute.xlu0 %855
        %v859 = vadd.f32 %v811, %v854
        %v860 = vadd.f32 %v812, %v856
        %s861 = sld [smem:[#allocation8 + $0x76]]
        %v862 = vstv %s861
        %v863 = vmul.f32 %v862, %v793
        %v864 = vmul.f32 %v862, %v794
        %867 = vrot.lane.b32.xlu0 %v863, 127
        %v868 = vpop.permute.xlu0 %867
        %869 = vrot.lane.b32.xlu0 %v864, 127
        %v870 = vpop.permute.xlu0 %869
        %v873 = vadd.f32 %v817, %v868
        %v874 = vadd.f32 %v818, %v870
        %s875 = sld [smem:[#allocation8 + $0xb]]
        %v876 = vstv %s875
        %v877 = vmul.f32 %v876, %v793
        %v878 = vmul.f32 %v876, %v794
        %881 = vrot.lane.b32.xlu0 %v877, 126
        %v882 = vpop.permute.xlu0 %881
        %883 = vrot.lane.b32.xlu0 %v878, 126
        %v884 = vpop.permute.xlu0 %883
        %v887 = vadd.f32 %v831, %v882
        %v888 = vadd.f32 %v832, %v884
        %s889 = sld [smem:[#allocation8 + $0x2f]]
        %v890 = vstv %s889
        %v891 = vmul.f32 %v890, %v793
        %v892 = vmul.f32 %v890, %v794
        %895 = vrot.lane.b32.xlu0 %v891, 126
        %v896 = vpop.permute.xlu0 %895
        %897 = vrot.lane.b32.xlu0 %v892, 126
        %v898 = vpop.permute.xlu0 %897
        %v901 = vadd.f32 %v845, %v896
        %v902 = vadd.f32 %v846, %v898
        %s903 = sld [smem:[#allocation8 + $0x53]]
        %v904 = vstv %s903
        %v905 = vmul.f32 %v904, %v793
        %v906 = vmul.f32 %v904, %v794
        %909 = vrot.lane.b32.xlu0 %v905, 126
        %v910 = vpop.permute.xlu0 %909
        %911 = vrot.lane.b32.xlu0 %v906, 126
        %v912 = vpop.permute.xlu0 %911
        %v915 = vadd.f32 %v859, %v910
        %v916 = vadd.f32 %v860, %v912
        %s917 = sld [smem:[#allocation8 + $0x77]]
        %v918 = vstv %s917
        %v919 = vmul.f32 %v918, %v793
        %v920 = vmul.f32 %v918, %v794
        %923 = vrot.lane.b32.xlu0 %v919, 126
        %v924 = vpop.permute.xlu0 %923
        %925 = vrot.lane.b32.xlu0 %v920, 126
        %v926 = vpop.permute.xlu0 %925
        %v929 = vadd.f32 %v873, %v924
        %v930 = vadd.f32 %v874, %v926
        %v931 = vld [vmem:[%s792 + $0x1] sm:$0xff]
        %v932 = vld [vmem:[%s792 + $0x9] sm:$0xff]
        %s933 = sld [smem:[#allocation8 + $0xc]]
        %v934 = vstv %s933
        %v935 = vmul.f32 %v934, %v931
        %v936 = vmul.f32 %v934, %v932
        %v937 = vadd.f32 %v887, %v935
        %v938 = vadd.f32 %v888, %v936
        %s939 = sld [smem:[#allocation8 + $0x30]]
        %v940 = vstv %s939
        %v941 = vmul.f32 %v940, %v931
        %v942 = vmul.f32 %v940, %v932
        %v943 = vadd.f32 %v901, %v941
        %v944 = vadd.f32 %v902, %v942
        %s945 = sld [smem:[#allocation8 + $0x54]]
        %v946 = vstv %s945
        %v947 = vmul.f32 %v946, %v931
        %v948 = vmul.f32 %v946, %v932
        %v949 = vadd.f32 %v915, %v947
        %v950 = vadd.f32 %v916, %v948
        %s951 = sld [smem:[#allocation8 + $0x78]]
        %v952 = vstv %s951
        %v953 = vmul.f32 %v952, %v931
        %v954 = vmul.f32 %v952, %v932
        %v955 = vadd.f32 %v929, %v953
        %v956 = vadd.f32 %v930, %v954
        %s957 = sld [smem:[#allocation8 + $0xd]]
        %v958 = vstv %s957
        %v959 = vmul.f32 %v958, %v931
        %v960 = vmul.f32 %v958, %v932
        %963 = vrot.lane.b32.xlu0 %v959, 127
        %v964 = vpop.permute.xlu0 %963
        %965 = vrot.lane.b32.xlu0 %v960, 127
        %v966 = vpop.permute.xlu0 %965
        %v969 = vadd.f32 %v937, %v964
        %v970 = vadd.f32 %v938, %v966
        %s971 = sld [smem:[#allocation8 + $0x31]]
        %v972 = vstv %s971
        %v973 = vmul.f32 %v972, %v931
        %v974 = vmul.f32 %v972, %v932
        %977 = vrot.lane.b32.xlu0 %v973, 127
        %v978 = vpop.permute.xlu0 %977
        %979 = vrot.lane.b32.xlu0 %v974, 127
        %v980 = vpop.permute.xlu0 %979
        %v983 = vadd.f32 %v943, %v978
        %v984 = vadd.f32 %v944, %v980
        %s985 = sld [smem:[#allocation8 + $0x55]]
        %v986 = vstv %s985
        %v987 = vmul.f32 %v986, %v931
        %v988 = vmul.f32 %v986, %v932
        %991 = vrot.lane.b32.xlu0 %v987, 127
        %v992 = vpop.permute.xlu0 %991
        %993 = vrot.lane.b32.xlu0 %v988, 127
        %v994 = vpop.permute.xlu0 %993
        %v997 = vadd.f32 %v949, %v992
        %v998 = vadd.f32 %v950, %v994
        %s999 = sld [smem:[#allocation8 + $0x79]]
        %v1000 = vstv %s999
        %v1001 = vmul.f32 %v1000, %v931
        %v1002 = vmul.f32 %v1000, %v932
        %1005 = vrot.lane.b32.xlu0 %v1001, 127
        %v1006 = vpop.permute.xlu0 %1005
        %1007 = vrot.lane.b32.xlu0 %v1002, 127
        %v1008 = vpop.permute.xlu0 %1007
        %v1011 = vadd.f32 %v955, %v1006
        %v1012 = vadd.f32 %v956, %v1008
        %s1013 = sld [smem:[#allocation8 + $0xe]]
        %v1014 = vstv %s1013
        %v1015 = vmul.f32 %v1014, %v931
        %v1016 = vmul.f32 %v1014, %v932
        %1019 = vrot.lane.b32.xlu0 %v1015, 126
        %v1020 = vpop.permute.xlu0 %1019
        %1021 = vrot.lane.b32.xlu0 %v1016, 126
        %v1022 = vpop.permute.xlu0 %1021
        %v1025 = vadd.f32 %v969, %v1020
        %v1026 = vadd.f32 %v970, %v1022
        %s1027 = sld [smem:[#allocation8 + $0x32]]
        %v1028 = vstv %s1027
        %v1029 = vmul.f32 %v1028, %v931
        %v1030 = vmul.f32 %v1028, %v932
        %1033 = vrot.lane.b32.xlu0 %v1029, 126
        %v1034 = vpop.permute.xlu0 %1033
        %1035 = vrot.lane.b32.xlu0 %v1030, 126
        %v1036 = vpop.permute.xlu0 %1035
        %v1039 = vadd.f32 %v983, %v1034
        %v1040 = vadd.f32 %v984, %v1036
        %s1041 = sld [smem:[#allocation8 + $0x56]]
        %v1042 = vstv %s1041
        %v1043 = vmul.f32 %v1042, %v931
        %v1044 = vmul.f32 %v1042, %v932
        %1047 = vrot.lane.b32.xlu0 %v1043, 126
        %v1048 = vpop.permute.xlu0 %1047
        %1049 = vrot.lane.b32.xlu0 %v1044, 126
        %v1050 = vpop.permute.xlu0 %1049
        %v1053 = vadd.f32 %v997, %v1048
        %v1054 = vadd.f32 %v998, %v1050
        %s1055 = sld [smem:[#allocation8 + $0x7a]]
        %v1056 = vstv %s1055
        %v1057 = vmul.f32 %v1056, %v931
        %v1058 = vmul.f32 %v1056, %v932
        %1061 = vrot.lane.b32.xlu0 %v1057, 126
        %v1062 = vpop.permute.xlu0 %1061
        %1063 = vrot.lane.b32.xlu0 %v1058, 126
        %v1064 = vpop.permute.xlu0 %1063
        %v1067 = vadd.f32 %v1011, %v1062
        %v1068 = vadd.f32 %v1012, %v1064
        %v1069 = vld [vmem:[%s792 + $0x2] sm:$0xff]
        %v1070 = vld [vmem:[%s792 + $0xa] sm:$0xff]
        %s1071 = sld [smem:[#allocation8 + $0xf]]
        %v1072 = vstv %s1071
        %v1073 = vmul.f32 %v1072, %v1069
        %v1074 = vmul.f32 %v1072, %v1070
        %v1075 = vadd.f32 %v1025, %v1073
        %v1076 = vadd.f32 %v1026, %v1074
        %s1077 = sld [smem:[#allocation8 + $0x33]]
        %v1078 = vstv %s1077
        %v1079 = vmul.f32 %v1078, %v1069
        %v1080 = vmul.f32 %v1078, %v1070
        %v1081 = vadd.f32 %v1039, %v1079
        %v1082 = vadd.f32 %v1040, %v1080
        %s1083 = sld [smem:[#allocation8 + $0x57]]
        %v1084 = vstv %s1083
        %v1085 = vmul.f32 %v1084, %v1069
        %v1086 = vmul.f32 %v1084, %v1070
        %v1087 = vadd.f32 %v1053, %v1085
        %v1088 = vadd.f32 %v1054, %v1086
        %s1089 = sld [smem:[#allocation8 + $0x7b]]
        %v1090 = vstv %s1089
        %v1091 = vmul.f32 %v1090, %v1069
        %v1092 = vmul.f32 %v1090, %v1070
        %v1093 = vadd.f32 %v1067, %v1091
        %v1094 = vadd.f32 %v1068, %v1092
        %s1095 = sld [smem:[#allocation8 + $0x10]]
        %v1096 = vstv %s1095
        %v1097 = vmul.f32 %v1096, %v1069
        %v1098 = vmul.f32 %v1096, %v1070
        %1101 = vrot.lane.b32.xlu0 %v1097, 127
        %v1102 = vpop.permute.xlu0 %1101
        %1103 = vrot.lane.b32.xlu0 %v1098, 127
        %v1104 = vpop.permute.xlu0 %1103
        %v1107 = vadd.f32 %v1075, %v1102
        %v1108 = vadd.f32 %v1076, %v1104
        %s1109 = sld [smem:[#allocation8 + $0x34]]
        %v1110 = vstv %s1109
        %v1111 = vmul.f32 %v1110, %v1069
        %v1112 = vmul.f32 %v1110, %v1070
        %1115 = vrot.lane.b32.xlu0 %v1111, 127
        %v1116 = vpop.permute.xlu0 %1115
        %1117 = vrot.lane.b32.xlu0 %v1112, 127
        %v1118 = vpop.permute.xlu0 %1117
        %v1121 = vadd.f32 %v1081, %v1116
        %v1122 = vadd.f32 %v1082, %v1118
        %s1123 = sld [smem:[#allocation8 + $0x58]]
        %v1124 = vstv %s1123
        %v1125 = vmul.f32 %v1124, %v1069
        %v1126 = vmul.f32 %v1124, %v1070
        %1129 = vrot.lane.b32.xlu0 %v1125, 127
        %v1130 = vpop.permute.xlu0 %1129
        %1131 = vrot.lane.b32.xlu0 %v1126, 127
        %v1132 = vpop.permute.xlu0 %1131
        %v1135 = vadd.f32 %v1087, %v1130
        %v1136 = vadd.f32 %v1088, %v1132
        %s1137 = sld [smem:[#allocation8 + $0x7c]]
        %v1138 = vstv %s1137
        %v1139 = vmul.f32 %v1138, %v1069
        %v1140 = vmul.f32 %v1138, %v1070
        %1143 = vrot.lane.b32.xlu0 %v1139, 127
        %v1144 = vpop.permute.xlu0 %1143
        %1145 = vrot.lane.b32.xlu0 %v1140, 127
        %v1146 = vpop.permute.xlu0 %1145
        %v1149 = vadd.f32 %v1093, %v1144
        %v1150 = vadd.f32 %v1094, %v1146
        %s1151 = sld [smem:[#allocation8 + $0x11]]
        %v1152 = vstv %s1151
        %v1153 = vmul.f32 %v1152, %v1069
        %v1154 = vmul.f32 %v1152, %v1070
        %1157 = vrot.lane.b32.xlu0 %v1153, 126
        %v1158 = vpop.permute.xlu0 %1157
        %1159 = vrot.lane.b32.xlu0 %v1154, 126
        %v1160 = vpop.permute.xlu0 %1159
        %v1163 = vadd.f32 %v1107, %v1158
        %v1164 = vadd.f32 %v1108, %v1160
        %s1165 = sld [smem:[#allocation8 + $0x35]]
        %v1166 = vstv %s1165
        %v1167 = vmul.f32 %v1166, %v1069
        %v1168 = vmul.f32 %v1166, %v1070
        %1171 = vrot.lane.b32.xlu0 %v1167, 126
        %v1172 = vpop.permute.xlu0 %1171
        %1173 = vrot.lane.b32.xlu0 %v1168, 126
        %v1174 = vpop.permute.xlu0 %1173
        %v1177 = vadd.f32 %v1121, %v1172
        %v1178 = vadd.f32 %v1122, %v1174
        %s1179 = sld [smem:[#allocation8 + $0x59]]
        %v1180 = vstv %s1179
        %v1181 = vmul.f32 %v1180, %v1069
        %v1182 = vmul.f32 %v1180, %v1070
        %1185 = vrot.lane.b32.xlu0 %v1181, 126
        %v1186 = vpop.permute.xlu0 %1185
        %1187 = vrot.lane.b32.xlu0 %v1182, 126
        %v1188 = vpop.permute.xlu0 %1187
        %v1191 = vadd.f32 %v1135, %v1186
        %v1192 = vadd.f32 %v1136, %v1188
        %s1193 = sld [smem:[#allocation8 + $0x7d]]
        %v1194 = vstv %s1193
        %v1195 = vmul.f32 %v1194, %v1069
        %v1196 = vmul.f32 %v1194, %v1070
        %1199 = vrot.lane.b32.xlu0 %v1195, 126
        %v1200 = vpop.permute.xlu0 %1199
        %1201 = vrot.lane.b32.xlu0 %v1196, 126
        %v1202 = vpop.permute.xlu0 %1201
        %v1205 = vadd.f32 %v1149, %v1200
        %v1206 = vadd.f32 %v1150, %v1202
        %s1207 = scalar_lea.vmem [#allocation2], 48
        %v1208 = vld [vmem:[%s1207] sm:$0xff]
        %v1209 = vld [vmem:[%s1207 + $0x8] sm:$0xff]
        %s1210 = sld [smem:[#allocation8 + $0x12]]
        %v1211 = vstv %s1210
        %v1212 = vmul.f32 %v1211, %v1208
        %v1213 = vmul.f32 %v1211, %v1209
        %v1214 = vadd.f32 %v1163, %v1212
        %v1215 = vadd.f32 %v1164, %v1213
        %s1216 = sld [smem:[#allocation8 + $0x36]]
        %v1217 = vstv %s1216
        %v1218 = vmul.f32 %v1217, %v1208
        %v1219 = vmul.f32 %v1217, %v1209
        %v1220 = vadd.f32 %v1177, %v1218
        %v1221 = vadd.f32 %v1178, %v1219
        %s1222 = sld [smem:[#allocation8 + $0x5a]]
        %v1223 = vstv %s1222
        %v1224 = vmul.f32 %v1223, %v1208
        %v1225 = vmul.f32 %v1223, %v1209
        %v1226 = vadd.f32 %v1191, %v1224
        %v1227 = vadd.f32 %v1192, %v1225
        %s1228 = sld [smem:[#allocation8 + $0x7e]]
        %v1229 = vstv %s1228
        %v1230 = vmul.f32 %v1229, %v1208
        %v1231 = vmul.f32 %v1229, %v1209
        %v1232 = vadd.f32 %v1205, %v1230
        %v1233 = vadd.f32 %v1206, %v1231
        %s1234 = sld [smem:[#allocation8 + $0x13]]
        %v1235 = vstv %s1234
        %v1236 = vmul.f32 %v1235, %v1208
        %v1237 = vmul.f32 %v1235, %v1209
        %1240 = vrot.lane.b32.xlu0 %v1236, 127
        %v1241 = vpop.permute.xlu0 %1240
        %1242 = vrot.lane.b32.xlu0 %v1237, 127
        %v1243 = vpop.permute.xlu0 %1242
        %v1246 = vadd.f32 %v1214, %v1241
        %v1247 = vadd.f32 %v1215, %v1243
        %s1248 = sld [smem:[#allocation8 + $0x37]]
        %v1249 = vstv %s1248
        %v1250 = vmul.f32 %v1249, %v1208
        %v1251 = vmul.f32 %v1249, %v1209
        %1254 = vrot.lane.b32.xlu0 %v1250, 127
        %v1255 = vpop.permute.xlu0 %1254
        %1256 = vrot.lane.b32.xlu0 %v1251, 127
        %v1257 = vpop.permute.xlu0 %1256
        %v1260 = vadd.f32 %v1220, %v1255
        %v1261 = vadd.f32 %v1221, %v1257
        %s1262 = sld [smem:[#allocation8 + $0x5b]]
        %v1263 = vstv %s1262
        %v1264 = vmul.f32 %v1263, %v1208
        %v1265 = vmul.f32 %v1263, %v1209
        %1268 = vrot.lane.b32.xlu0 %v1264, 127
        %v1269 = vpop.permute.xlu0 %1268
        %1270 = vrot.lane.b32.xlu0 %v1265, 127
        %v1271 = vpop.permute.xlu0 %1270
        %v1274 = vadd.f32 %v1226, %v1269
        %v1275 = vadd.f32 %v1227, %v1271
        %s1276 = sld [smem:[#allocation8 + $0x7f]]
        %v1277 = vstv %s1276
        %v1278 = vmul.f32 %v1277, %v1208
        %v1279 = vmul.f32 %v1277, %v1209
        %1282 = vrot.lane.b32.xlu0 %v1278, 127
        %v1283 = vpop.permute.xlu0 %1282
        %1284 = vrot.lane.b32.xlu0 %v1279, 127
        %v1285 = vpop.permute.xlu0 %1284
        %v1288 = vadd.f32 %v1232, %v1283
        %v1289 = vadd.f32 %v1233, %v1285
        %s1290 = sld [smem:[#allocation8 + $0x14]]
        %v1291 = vstv %s1290
        %v1292 = vmul.f32 %v1291, %v1208
        %v1293 = vmul.f32 %v1291, %v1209
        %1296 = vrot.lane.b32.xlu0 %v1292, 126
        %v1297 = vpop.permute.xlu0 %1296
        %1298 = vrot.lane.b32.xlu0 %v1293, 126
        %v1299 = vpop.permute.xlu0 %1298
        %v1302 = vadd.f32 %v1246, %v1297
        %v1303 = vadd.f32 %v1247, %v1299
        %s1304 = sld [smem:[#allocation8 + $0x38]]
        %v1305 = vstv %s1304
        %v1306 = vmul.f32 %v1305, %v1208
        %v1307 = vmul.f32 %v1305, %v1209
        %1310 = vrot.lane.b32.xlu0 %v1306, 126
        %v1311 = vpop.permute.xlu0 %1310
        %1312 = vrot.lane.b32.xlu0 %v1307, 126
        %v1313 = vpop.permute.xlu0 %1312
        %v1316 = vadd.f32 %v1260, %v1311
        %v1317 = vadd.f32 %v1261, %v1313
        %s1318 = sld [smem:[#allocation8 + $0x5c]]
        %v1319 = vstv %s1318
        %v1320 = vmul.f32 %v1319, %v1208
        %v1321 = vmul.f32 %v1319, %v1209
        %1324 = vrot.lane.b32.xlu0 %v1320, 126
        %v1325 = vpop.permute.xlu0 %1324
        %1326 = vrot.lane.b32.xlu0 %v1321, 126
        %v1327 = vpop.permute.xlu0 %1326
        %v1330 = vadd.f32 %v1274, %v1325
        %v1331 = vadd.f32 %v1275, %v1327
        %s1332 = sld [smem:[#allocation8 + $0x80]]
        %v1333 = vstv %s1332
        %v1334 = vmul.f32 %v1333, %v1208
        %v1335 = vmul.f32 %v1333, %v1209
        %1338 = vrot.lane.b32.xlu0 %v1334, 126
        %v1339 = vpop.permute.xlu0 %1338
        %1340 = vrot.lane.b32.xlu0 %v1335, 126
        %v1341 = vpop.permute.xlu0 %1340
        %v1344 = vadd.f32 %v1288, %v1339
        %v1345 = vadd.f32 %v1289, %v1341
        %v1346 = vld [vmem:[%s1207 + $0x1] sm:$0xff]
        %v1347 = vld [vmem:[%s1207 + $0x9] sm:$0xff]
        %s1348 = sld [smem:[#allocation8 + $0x15]]
        %v1349 = vstv %s1348
        %v1350 = vmul.f32 %v1349, %v1346
        %v1351 = vmul.f32 %v1349, %v1347
        %v1352 = vadd.f32 %v1302, %v1350
        %v1353 = vadd.f32 %v1303, %v1351
        %s1354 = sld [smem:[#allocation8 + $0x39]]
        %v1355 = vstv %s1354
        %v1356 = vmul.f32 %v1355, %v1346
        %v1357 = vmul.f32 %v1355, %v1347
        %v1358 = vadd.f32 %v1316, %v1356
        %v1359 = vadd.f32 %v1317, %v1357
        %s1360 = sld [smem:[#allocation8 + $0x5d]]
        %v1361 = vstv %s1360
        %v1362 = vmul.f32 %v1361, %v1346
        %v1363 = vmul.f32 %v1361, %v1347
        %v1364 = vadd.f32 %v1330, %v1362
        %v1365 = vadd.f32 %v1331, %v1363
        %s1366 = sld [smem:[#allocation8 + $0x81]]
        %v1367 = vstv %s1366
        %v1368 = vmul.f32 %v1367, %v1346
        %v1369 = vmul.f32 %v1367, %v1347
        %v1370 = vadd.f32 %v1344, %v1368
        %v1371 = vadd.f32 %v1345, %v1369
        %s1372 = sld [smem:[#allocation8 + $0x16]]
        %v1373 = vstv %s1372
        %v1374 = vmul.f32 %v1373, %v1346
        %v1375 = vmul.f32 %v1373, %v1347
        %1378 = vrot.lane.b32.xlu0 %v1374, 127
        %v1379 = vpop.permute.xlu0 %1378
        %1380 = vrot.lane.b32.xlu0 %v1375, 127
        %v1381 = vpop.permute.xlu0 %1380
        %v1384 = vadd.f32 %v1352, %v1379
        %v1385 = vadd.f32 %v1353, %v1381
        %s1386 = sld [smem:[#allocation8 + $0x3a]]
        %v1387 = vstv %s1386
        %v1388 = vmul.f32 %v1387, %v1346
        %v1389 = vmul.f32 %v1387, %v1347
        %1392 = vrot.lane.b32.xlu0 %v1388, 127
        %v1393 = vpop.permute.xlu0 %1392
        %1394 = vrot.lane.b32.xlu0 %v1389, 127
        %v1395 = vpop.permute.xlu0 %1394
        %v1398 = vadd.f32 %v1358, %v1393
        %v1399 = vadd.f32 %v1359, %v1395
        %s1400 = sld [smem:[#allocation8 + $0x5e]]
        %v1401 = vstv %s1400
        %v1402 = vmul.f32 %v1401, %v1346
        %v1403 = vmul.f32 %v1401, %v1347
        %1406 = vrot.lane.b32.xlu0 %v1402, 127
        %v1407 = vpop.permute.xlu0 %1406
        %1408 = vrot.lane.b32.xlu0 %v1403, 127
        %v1409 = vpop.permute.xlu0 %1408
        %v1412 = vadd.f32 %v1364, %v1407
        %v1413 = vadd.f32 %v1365, %v1409
        %s1414 = sld [smem:[#allocation8 + $0x82]]
        %v1415 = vstv %s1414
        %v1416 = vmul.f32 %v1415, %v1346
        %v1417 = vmul.f32 %v1415, %v1347
        %1420 = vrot.lane.b32.xlu0 %v1416, 127
        %v1421 = vpop.permute.xlu0 %1420
        %1422 = vrot.lane.b32.xlu0 %v1417, 127
        %v1423 = vpop.permute.xlu0 %1422
        %v1426 = vadd.f32 %v1370, %v1421
        %v1427 = vadd.f32 %v1371, %v1423
        %s1428 = sld [smem:[#allocation8 + $0x17]]
        %v1429 = vstv %s1428
        %v1430 = vmul.f32 %v1429, %v1346
        %v1431 = vmul.f32 %v1429, %v1347
        %1434 = vrot.lane.b32.xlu0 %v1430, 126
        %v1435 = vpop.permute.xlu0 %1434
        %1436 = vrot.lane.b32.xlu0 %v1431, 126
        %v1437 = vpop.permute.xlu0 %1436
        %v1440 = vadd.f32 %v1384, %v1435
        %v1441 = vadd.f32 %v1385, %v1437
        %s1442 = sld [smem:[#allocation8 + $0x3b]]
        %v1443 = vstv %s1442
        %v1444 = vmul.f32 %v1443, %v1346
        %v1445 = vmul.f32 %v1443, %v1347
        %1448 = vrot.lane.b32.xlu0 %v1444, 126
        %v1449 = vpop.permute.xlu0 %1448
        %1450 = vrot.lane.b32.xlu0 %v1445, 126
        %v1451 = vpop.permute.xlu0 %1450
        %v1454 = vadd.f32 %v1398, %v1449
        %v1455 = vadd.f32 %v1399, %v1451
        %s1456 = sld [smem:[#allocation8 + $0x5f]]
        %v1457 = vstv %s1456
        %v1458 = vmul.f32 %v1457, %v1346
        %v1459 = vmul.f32 %v1457, %v1347
        %1462 = vrot.lane.b32.xlu0 %v1458, 126
        %v1463 = vpop.permute.xlu0 %1462
        %1464 = vrot.lane.b32.xlu0 %v1459, 126
        %v1465 = vpop.permute.xlu0 %1464
        %v1468 = vadd.f32 %v1412, %v1463
        %v1469 = vadd.f32 %v1413, %v1465
        %s1470 = sld [smem:[#allocation8 + $0x83]]
        %v1471 = vstv %s1470
        %v1472 = vmul.f32 %v1471, %v1346
        %v1473 = vmul.f32 %v1471, %v1347
        %1476 = vrot.lane.b32.xlu0 %v1472, 126
        %v1477 = vpop.permute.xlu0 %1476
        %1478 = vrot.lane.b32.xlu0 %v1473, 126
        %v1479 = vpop.permute.xlu0 %1478
        %v1482 = vadd.f32 %v1426, %v1477
        %v1483 = vadd.f32 %v1427, %v1479
        %v1484 = vld [vmem:[%s1207 + $0x2] sm:$0xff]
        %v1485 = vld [vmem:[%s1207 + $0xa] sm:$0xff]
        %s1486 = sld [smem:[#allocation8 + $0x18]]
        %v1487 = vstv %s1486
        %v1488 = vmul.f32 %v1487, %v1484
        %v1489 = vmul.f32 %v1487, %v1485
        %v1490 = vadd.f32 %v1440, %v1488
        %v1491 = vadd.f32 %v1441, %v1489
        %s1492 = sld [smem:[#allocation8 + $0x3c]]
        %v1493 = vstv %s1492
        %v1494 = vmul.f32 %v1493, %v1484
        %v1495 = vmul.f32 %v1493, %v1485
        %v1496 = vadd.f32 %v1454, %v1494
        %v1497 = vadd.f32 %v1455, %v1495
        %s1498 = sld [smem:[#allocation8 + $0x60]]
        %v1499 = vstv %s1498
        %v1500 = vmul.f32 %v1499, %v1484
        %v1501 = vmul.f32 %v1499, %v1485
        %v1502 = vadd.f32 %v1468, %v1500
        %v1503 = vadd.f32 %v1469, %v1501
        %s1504 = sld [smem:[#allocation8 + $0x84]]
        %v1505 = vstv %s1504
        %v1506 = vmul.f32 %v1505, %v1484
        %v1507 = vmul.f32 %v1505, %v1485
        %v1508 = vadd.f32 %v1482, %v1506
        %v1509 = vadd.f32 %v1483, %v1507
        %s1510 = sld [smem:[#allocation8 + $0x19]]
        %v1511 = vstv %s1510
        %v1512 = vmul.f32 %v1511, %v1484
        %v1513 = vmul.f32 %v1511, %v1485
        %1516 = vrot.lane.b32.xlu0 %v1512, 127
        %v1517 = vpop.permute.xlu0 %1516
        %1518 = vrot.lane.b32.xlu0 %v1513, 127
        %v1519 = vpop.permute.xlu0 %1518
        %v1522 = vadd.f32 %v1490, %v1517
        %v1523 = vadd.f32 %v1491, %v1519
        %s1524 = sld [smem:[#allocation8 + $0x3d]]
        %v1525 = vstv %s1524
        %v1526 = vmul.f32 %v1525, %v1484
        %v1527 = vmul.f32 %v1525, %v1485
        %1530 = vrot.lane.b32.xlu0 %v1526, 127
        %v1531 = vpop.permute.xlu0 %1530
        %1532 = vrot.lane.b32.xlu0 %v1527, 127
        %v1533 = vpop.permute.xlu0 %1532
        %v1536 = vadd.f32 %v1496, %v1531
        %v1537 = vadd.f32 %v1497, %v1533
        %s1538 = sld [smem:[#allocation8 + $0x61]]
        %v1539 = vstv %s1538
        %v1540 = vmul.f32 %v1539, %v1484
        %v1541 = vmul.f32 %v1539, %v1485
        %1544 = vrot.lane.b32.xlu0 %v1540, 127
        %v1545 = vpop.permute.xlu0 %1544
        %1546 = vrot.lane.b32.xlu0 %v1541, 127
        %v1547 = vpop.permute.xlu0 %1546
        %v1550 = vadd.f32 %v1502, %v1545
        %v1551 = vadd.f32 %v1503, %v1547
        %s1552 = sld [smem:[#allocation8 + $0x85]]
        %v1553 = vstv %s1552
        %v1554 = vmul.f32 %v1553, %v1484
        %v1555 = vmul.f32 %v1553, %v1485
        %1558 = vrot.lane.b32.xlu0 %v1554, 127
        %v1559 = vpop.permute.xlu0 %1558
        %1560 = vrot.lane.b32.xlu0 %v1555, 127
        %v1561 = vpop.permute.xlu0 %1560
        %v1564 = vadd.f32 %v1508, %v1559
        %v1565 = vadd.f32 %v1509, %v1561
        %s1566 = sld [smem:[#allocation8 + $0x1a]]
        %v1567 = vstv %s1566
        %v1568 = vmul.f32 %v1567, %v1484
        %v1569 = vmul.f32 %v1567, %v1485
        %1572 = vrot.lane.b32.xlu0 %v1568, 126
        %v1573 = vpop.permute.xlu0 %1572
        %1574 = vrot.lane.b32.xlu0 %v1569, 126
        %v1575 = vpop.permute.xlu0 %1574
        %v1578 = vadd.f32 %v1522, %v1573
        %v1579 = vadd.f32 %v1523, %v1575
        %s1580 = sld [smem:[#allocation8 + $0x3e]]
        %v1581 = vstv %s1580
        %v1582 = vmul.f32 %v1581, %v1484
        %v1583 = vmul.f32 %v1581, %v1485
        %1586 = vrot.lane.b32.xlu0 %v1582, 126
        %v1587 = vpop.permute.xlu0 %1586
        %1588 = vrot.lane.b32.xlu0 %v1583, 126
        %v1589 = vpop.permute.xlu0 %1588
        %v1592 = vadd.f32 %v1536, %v1587
        %v1593 = vadd.f32 %v1537, %v1589
        %s1594 = sld [smem:[#allocation8 + $0x62]]
        %v1595 = vstv %s1594
        %v1596 = vmul.f32 %v1595, %v1484
        %v1597 = vmul.f32 %v1595, %v1485
        %1600 = vrot.lane.b32.xlu0 %v1596, 126
        %v1601 = vpop.permute.xlu0 %1600
        %1602 = vrot.lane.b32.xlu0 %v1597, 126
        %v1603 = vpop.permute.xlu0 %1602
        %v1606 = vadd.f32 %v1550, %v1601
        %v1607 = vadd.f32 %v1551, %v1603
        %s1608 = sld [smem:[#allocation8 + $0x86]]
        %v1609 = vstv %s1608
        %v1610 = vmul.f32 %v1609, %v1484
        %v1611 = vmul.f32 %v1609, %v1485
        %1614 = vrot.lane.b32.xlu0 %v1610, 126
        %v1615 = vpop.permute.xlu0 %1614
        %1616 = vrot.lane.b32.xlu0 %v1611, 126
        %v1617 = vpop.permute.xlu0 %1616
        %v1620 = vadd.f32 %v1564, %v1615
        %v1621 = vadd.f32 %v1565, %v1617
        %s1622 = scalar_lea.vmem [#allocation2], 72
        %v1623 = vld [vmem:[%s1622] sm:$0xff]
        %v1624 = vld [vmem:[%s1622 + $0x8] sm:$0xff]
        %s1625 = sld [smem:[#allocation8 + $0x1b]]
        %v1626 = vstv %s1625
        %v1627 = vmul.f32 %v1626, %v1623
        %v1628 = vmul.f32 %v1626, %v1624
        %v1629 = vadd.f32 %v1578, %v1627
        %v1630 = vadd.f32 %v1579, %v1628
        %s1631 = sld [smem:[#allocation8 + $0x3f]]
        %v1632 = vstv %s1631
        %v1633 = vmul.f32 %v1632, %v1623
        %v1634 = vmul.f32 %v1632, %v1624
        %v1635 = vadd.f32 %v1592, %v1633
        %v1636 = vadd.f32 %v1593, %v1634
        %s1637 = sld [smem:[#allocation8 + $0x63]]
        %v1638 = vstv %s1637
        %v1639 = vmul.f32 %v1638, %v1623
        %v1640 = vmul.f32 %v1638, %v1624
        %v1641 = vadd.f32 %v1606, %v1639
        %v1642 = vadd.f32 %v1607, %v1640
        %s1643 = sld [smem:[#allocation8 + $0x87]]
        %v1644 = vstv %s1643
        %v1645 = vmul.f32 %v1644, %v1623
        %v1646 = vmul.f32 %v1644, %v1624
        %v1647 = vadd.f32 %v1620, %v1645
        %v1648 = vadd.f32 %v1621, %v1646
        %s1649 = sld [smem:[#allocation8 + $0x1c]]
        %v1650 = vstv %s1649
        %v1651 = vmul.f32 %v1650, %v1623
        %v1652 = vmul.f32 %v1650, %v1624
        %1655 = vrot.lane.b32.xlu0 %v1651, 127
        %v1656 = vpop.permute.xlu0 %1655
        %1657 = vrot.lane.b32.xlu0 %v1652, 127
        %v1658 = vpop.permute.xlu0 %1657
        %v1661 = vadd.f32 %v1629, %v1656
        %v1662 = vadd.f32 %v1630, %v1658
        %s1663 = sld [smem:[#allocation8 + $0x40]]
        %v1664 = vstv %s1663
        %v1665 = vmul.f32 %v1664, %v1623
        %v1666 = vmul.f32 %v1664, %v1624
        %1669 = vrot.lane.b32.xlu0 %v1665, 127
        %v1670 = vpop.permute.xlu0 %1669
        %1671 = vrot.lane.b32.xlu0 %v1666, 127
        %v1672 = vpop.permute.xlu0 %1671
        %v1675 = vadd.f32 %v1635, %v1670
        %v1676 = vadd.f32 %v1636, %v1672
        %s1677 = sld [smem:[#allocation8 + $0x64]]
        %v1678 = vstv %s1677
        %v1679 = vmul.f32 %v1678, %v1623
        %v1680 = vmul.f32 %v1678, %v1624
        %1683 = vrot.lane.b32.xlu0 %v1679, 127
        %v1684 = vpop.permute.xlu0 %1683
        %1685 = vrot.lane.b32.xlu0 %v1680, 127
        %v1686 = vpop.permute.xlu0 %1685
        %v1689 = vadd.f32 %v1641, %v1684
        %v1690 = vadd.f32 %v1642, %v1686
        %s1691 = sld [smem:[#allocation8 + $0x88]]
        %v1692 = vstv %s1691
        %v1693 = vmul.f32 %v1692, %v1623
        %v1694 = vmul.f32 %v1692, %v1624
        %1697 = vrot.lane.b32.xlu0 %v1693, 127
        %v1698 = vpop.permute.xlu0 %1697
        %1699 = vrot.lane.b32.xlu0 %v1694, 127
        %v1700 = vpop.permute.xlu0 %1699
        %v1703 = vadd.f32 %v1647, %v1698
        %v1704 = vadd.f32 %v1648, %v1700
        %s1705 = sld [smem:[#allocation8 + $0x1d]]
        %v1706 = vstv %s1705
        %v1707 = vmul.f32 %v1706, %v1623
        %v1708 = vmul.f32 %v1706, %v1624
        %1711 = vrot.lane.b32.xlu0 %v1707, 126
        %v1712 = vpop.permute.xlu0 %1711
        %1713 = vrot.lane.b32.xlu0 %v1708, 126
        %v1714 = vpop.permute.xlu0 %1713
        %v1717 = vadd.f32 %v1661, %v1712
        %v1718 = vadd.f32 %v1662, %v1714
        %s1719 = sld [smem:[#allocation8 + $0x41]]
        %v1720 = vstv %s1719
        %v1721 = vmul.f32 %v1720, %v1623
        %v1722 = vmul.f32 %v1720, %v1624
        %1725 = vrot.lane.b32.xlu0 %v1721, 126
        %v1726 = vpop.permute.xlu0 %1725
        %1727 = vrot.lane.b32.xlu0 %v1722, 126
        %v1728 = vpop.permute.xlu0 %1727
        %v1731 = vadd.f32 %v1675, %v1726
        %v1732 = vadd.f32 %v1676, %v1728
        %s1733 = sld [smem:[#allocation8 + $0x65]]
        %v1734 = vstv %s1733
        %v1735 = vmul.f32 %v1734, %v1623
        %v1736 = vmul.f32 %v1734, %v1624
        %1739 = vrot.lane.b32.xlu0 %v1735, 126
        %v1740 = vpop.permute.xlu0 %1739
        %1741 = vrot.lane.b32.xlu0 %v1736, 126
        %v1742 = vpop.permute.xlu0 %1741
        %v1745 = vadd.f32 %v1689, %v1740
        %v1746 = vadd.f32 %v1690, %v1742
        %s1747 = sld [smem:[#allocation8 + $0x89]]
        %v1748 = vstv %s1747
        %v1749 = vmul.f32 %v1748, %v1623
        %v1750 = vmul.f32 %v1748, %v1624
        %1753 = vrot.lane.b32.xlu0 %v1749, 126
        %v1754 = vpop.permute.xlu0 %1753
        %1755 = vrot.lane.b32.xlu0 %v1750, 126
        %v1756 = vpop.permute.xlu0 %1755
        %v1759 = vadd.f32 %v1703, %v1754
        %v1760 = vadd.f32 %v1704, %v1756
        %v1761 = vld [vmem:[%s1622 + $0x1] sm:$0xff]
        %v1762 = vld [vmem:[%s1622 + $0x9] sm:$0xff]
        %s1763 = sld [smem:[#allocation8 + $0x1e]]
        %v1764 = vstv %s1763
        %v1765 = vmul.f32 %v1764, %v1761
        %v1766 = vmul.f32 %v1764, %v1762
        %v1767 = vadd.f32 %v1717, %v1765
        %v1768 = vadd.f32 %v1718, %v1766
        %s1769 = sld [smem:[#allocation8 + $0x42]]
        %v1770 = vstv %s1769
        %v1771 = vmul.f32 %v1770, %v1761
        %v1772 = vmul.f32 %v1770, %v1762
        %v1773 = vadd.f32 %v1731, %v1771
        %v1774 = vadd.f32 %v1732, %v1772
        %s1775 = sld [smem:[#allocation8 + $0x66]]
        %v1776 = vstv %s1775
        %v1777 = vmul.f32 %v1776, %v1761
        %v1778 = vmul.f32 %v1776, %v1762
        %v1779 = vadd.f32 %v1745, %v1777
        %v1780 = vadd.f32 %v1746, %v1778
        %s1781 = sld [smem:[#allocation8 + $0x8a]]
        %v1782 = vstv %s1781
        %v1783 = vmul.f32 %v1782, %v1761
        %v1784 = vmul.f32 %v1782, %v1762
        %v1785 = vadd.f32 %v1759, %v1783
        %v1786 = vadd.f32 %v1760, %v1784
        %s1787 = sld [smem:[#allocation8 + $0x1f]]
        %v1788 = vstv %s1787
        %v1789 = vmul.f32 %v1788, %v1761
        %v1790 = vmul.f32 %v1788, %v1762
        %1793 = vrot.lane.b32.xlu0 %v1789, 127
        %v1794 = vpop.permute.xlu0 %1793
        %1795 = vrot.lane.b32.xlu0 %v1790, 127
        %v1796 = vpop.permute.xlu0 %1795
        %v1799 = vadd.f32 %v1767, %v1794
        %v1800 = vadd.f32 %v1768, %v1796
        %s1801 = sld [smem:[#allocation8 + $0x43]]
        %v1802 = vstv %s1801
        %v1803 = vmul.f32 %v1802, %v1761
        %v1804 = vmul.f32 %v1802, %v1762
        %1807 = vrot.lane.b32.xlu0 %v1803, 127
        %v1808 = vpop.permute.xlu0 %1807
        %1809 = vrot.lane.b32.xlu0 %v1804, 127
        %v1810 = vpop.permute.xlu0 %1809
        %v1813 = vadd.f32 %v1773, %v1808
        %v1814 = vadd.f32 %v1774, %v1810
        %s1815 = sld [smem:[#allocation8 + $0x67]]
        %v1816 = vstv %s1815
        %v1817 = vmul.f32 %v1816, %v1761
        %v1818 = vmul.f32 %v1816, %v1762
        %1821 = vrot.lane.b32.xlu0 %v1817, 127
        %v1822 = vpop.permute.xlu0 %1821
        %1823 = vrot.lane.b32.xlu0 %v1818, 127
        %v1824 = vpop.permute.xlu0 %1823
        %v1827 = vadd.f32 %v1779, %v1822
        %v1828 = vadd.f32 %v1780, %v1824
        %s1829 = sld [smem:[#allocation8 + $0x8b]]
        %v1830 = vstv %s1829
        %v1831 = vmul.f32 %v1830, %v1761
        %v1832 = vmul.f32 %v1830, %v1762
        %1835 = vrot.lane.b32.xlu0 %v1831, 127
        %v1836 = vpop.permute.xlu0 %1835
        %1837 = vrot.lane.b32.xlu0 %v1832, 127
        %v1838 = vpop.permute.xlu0 %1837
        %v1841 = vadd.f32 %v1785, %v1836
        %v1842 = vadd.f32 %v1786, %v1838
        %s1843 = sld [smem:[#allocation8 + $0x20]]
        %v1844 = vstv %s1843
        %v1845 = vmul.f32 %v1844, %v1761
        %v1846 = vmul.f32 %v1844, %v1762
        %1849 = vrot.lane.b32.xlu0 %v1845, 126
        %v1850 = vpop.permute.xlu0 %1849
        %1851 = vrot.lane.b32.xlu0 %v1846, 126
        %v1852 = vpop.permute.xlu0 %1851
        %v1855 = vadd.f32 %v1799, %v1850
        %v1856 = vadd.f32 %v1800, %v1852
        %s1857 = sld [smem:[#allocation8 + $0x44]]
        %v1858 = vstv %s1857
        %v1859 = vmul.f32 %v1858, %v1761
        %v1860 = vmul.f32 %v1858, %v1762
        %1863 = vrot.lane.b32.xlu0 %v1859, 126
        %v1864 = vpop.permute.xlu0 %1863
        %1865 = vrot.lane.b32.xlu0 %v1860, 126
        %v1866 = vpop.permute.xlu0 %1865
        %v1869 = vadd.f32 %v1813, %v1864
        %v1870 = vadd.f32 %v1814, %v1866
        %s1871 = sld [smem:[#allocation8 + $0x68]]
        %v1872 = vstv %s1871
        %v1873 = vmul.f32 %v1872, %v1761
        %v1874 = vmul.f32 %v1872, %v1762
        %1877 = vrot.lane.b32.xlu0 %v1873, 126
        %v1878 = vpop.permute.xlu0 %1877
        %1879 = vrot.lane.b32.xlu0 %v1874, 126
        %v1880 = vpop.permute.xlu0 %1879
        %v1883 = vadd.f32 %v1827, %v1878
        %v1884 = vadd.f32 %v1828, %v1880
        %s1885 = sld [smem:[#allocation8 + $0x8c]]
        %v1886 = vstv %s1885
        %v1887 = vmul.f32 %v1886, %v1761
        %v1888 = vmul.f32 %v1886, %v1762
        %1891 = vrot.lane.b32.xlu0 %v1887, 126
        %v1892 = vpop.permute.xlu0 %1891
        %1893 = vrot.lane.b32.xlu0 %v1888, 126
        %v1894 = vpop.permute.xlu0 %1893
        %v1897 = vadd.f32 %v1841, %v1892
        %v1898 = vadd.f32 %v1842, %v1894
        %v1899 = vld [vmem:[%s1622 + $0x2] sm:$0xff]
        %v1900 = vld [vmem:[%s1622 + $0xa] sm:$0xff]
        %s1901 = sld [smem:[#allocation8 + $0x21]]
        %v1902 = vstv %s1901
        %v1903 = vmul.f32 %v1902, %v1899
        %v1904 = vmul.f32 %v1902, %v1900
        %v1905 = vadd.f32 %v1855, %v1903
        %v1906 = vadd.f32 %v1856, %v1904
        %s1907 = sld [smem:[#allocation8 + $0x45]]
        %v1908 = vstv %s1907
        %v1909 = vmul.f32 %v1908, %v1899
        %v1910 = vmul.f32 %v1908, %v1900
        %v1911 = vadd.f32 %v1869, %v1909
        %v1912 = vadd.f32 %v1870, %v1910
        %s1913 = sld [smem:[#allocation8 + $0x69]]
        %v1914 = vstv %s1913
        %v1915 = vmul.f32 %v1914, %v1899
        %v1916 = vmul.f32 %v1914, %v1900
        %v1917 = vadd.f32 %v1883, %v1915
        %v1918 = vadd.f32 %v1884, %v1916
        %s1919 = sld [smem:[#allocation8 + $0x8d]]
        %v1920 = vstv %s1919
        %v1921 = vmul.f32 %v1920, %v1899
        %v1922 = vmul.f32 %v1920, %v1900
        %v1923 = vadd.f32 %v1897, %v1921
        %v1924 = vadd.f32 %v1898, %v1922
        %s1925 = sld [smem:[#allocation8 + $0x22]]
        %v1926 = vstv %s1925
        %v1927 = vmul.f32 %v1926, %v1899
        %v1928 = vmul.f32 %v1926, %v1900
        %1931 = vrot.lane.b32.xlu0 %v1927, 127
        %v1932 = vpop.permute.xlu0 %1931
        %1933 = vrot.lane.b32.xlu0 %v1928, 127
        %v1934 = vpop.permute.xlu0 %1933
        %v1937 = vadd.f32 %v1905, %v1932
        %v1938 = vadd.f32 %v1906, %v1934
        %s1939 = sld [smem:[#allocation8 + $0x46]]
        %v1940 = vstv %s1939
        %v1941 = vmul.f32 %v1940, %v1899
        %v1942 = vmul.f32 %v1940, %v1900
        %1945 = vrot.lane.b32.xlu0 %v1941, 127
        %v1946 = vpop.permute.xlu0 %1945
        %1947 = vrot.lane.b32.xlu0 %v1942, 127
        %v1948 = vpop.permute.xlu0 %1947
        %v1951 = vadd.f32 %v1911, %v1946
        %v1952 = vadd.f32 %v1912, %v1948
        %s1953 = sld [smem:[#allocation8 + $0x6a]]
        %v1954 = vstv %s1953
        %v1955 = vmul.f32 %v1954, %v1899
        %v1956 = vmul.f32 %v1954, %v1900
        %1959 = vrot.lane.b32.xlu0 %v1955, 127
        %v1960 = vpop.permute.xlu0 %1959
        %1961 = vrot.lane.b32.xlu0 %v1956, 127
        %v1962 = vpop.permute.xlu0 %1961
        %v1965 = vadd.f32 %v1917, %v1960
        %v1966 = vadd.f32 %v1918, %v1962
        %s1967 = sld [smem:[#allocation8 + $0x8e]]
        %v1968 = vstv %s1967
        %v1969 = vmul.f32 %v1968, %v1899
        %v1970 = vmul.f32 %v1968, %v1900
        %1973 = vrot.lane.b32.xlu0 %v1969, 127
        %v1974 = vpop.permute.xlu0 %1973
        %1975 = vrot.lane.b32.xlu0 %v1970, 127
        %v1976 = vpop.permute.xlu0 %1975
        %v1979 = vadd.f32 %v1923, %v1974
        %v1980 = vadd.f32 %v1924, %v1976
        %s1981 = sld [smem:[#allocation8 + $0x23]]
        %v1982 = vstv %s1981
        %v1983 = vmul.f32 %v1982, %v1899
        %v1984 = vmul.f32 %v1982, %v1900
        %1987 = vrot.lane.b32.xlu0 %v1983, 126
        %v1988 = vpop.permute.xlu0 %1987
        %1989 = vrot.lane.b32.xlu0 %v1984, 126
        %v1990 = vpop.permute.xlu0 %1989
        %v1993 = vadd.f32 %v1937, %v1988
        %v1994 = vadd.f32 %v1938, %v1990
        %s1995 = sld [smem:[#allocation8 + $0x47]]
        %v1996 = vstv %s1995
        %v1997 = vmul.f32 %v1996, %v1899
        %v1998 = vmul.f32 %v1996, %v1900
        %2001 = vrot.lane.b32.xlu0 %v1997, 126
        %v2002 = vpop.permute.xlu0 %2001
        %2003 = vrot.lane.b32.xlu0 %v1998, 126
        %v2004 = vpop.permute.xlu0 %2003
        %v2007 = vadd.f32 %v1951, %v2002
        %v2008 = vadd.f32 %v1952, %v2004
        %s2009 = sld [smem:[#allocation8 + $0x6b]]
        %v2010 = vstv %s2009
        %v2011 = vmul.f32 %v2010, %v1899
        %v2012 = vmul.f32 %v2010, %v1900
        %2015 = vrot.lane.b32.xlu0 %v2011, 126
        %v2016 = vpop.permute.xlu0 %2015
        %2017 = vrot.lane.b32.xlu0 %v2012, 126
        %v2018 = vpop.permute.xlu0 %2017
        %v2021 = vadd.f32 %v1965, %v2016
        %v2022 = vadd.f32 %v1966, %v2018
        %s2023 = sld [smem:[#allocation8 + $0x8f]]
        %v2024 = vstv %s2023
        %v2025 = vmul.f32 %v2024, %v1899
        %v2026 = vmul.f32 %v2024, %v1900
        %2029 = vrot.lane.b32.xlu0 %v2025, 126
        %v2030 = vpop.permute.xlu0 %2029
        %2031 = vrot.lane.b32.xlu0 %v2026, 126
        %v2032 = vpop.permute.xlu0 %2031
        %v2035 = vadd.f32 %v1979, %v2030
        %v2036 = vadd.f32 %v1980, %v2032
        %vm2037 = vcmp.ge.f32.partialorder %v1993, 0.0
        %vm2038 = vcmp.ge.f32.partialorder %v1994, 0.0
        %v2039 = vmul.f32 %v1993, 0.2
        %v2040 = vmul.f32 %v1994, 0.2
        %v2041 = vsel %vm2037, %v1993, %v2039
        %v2042 = vsel %vm2038, %v1994, %v2040
        %vm2043 = vcmp.ge.f32.partialorder %v2007, 0.0
        %vm2044 = vcmp.ge.f32.partialorder %v2008, 0.0
        %v2045 = vmul.f32 %v2007, 0.2
        %v2046 = vmul.f32 %v2008, 0.2
        %v2047 = vsel %vm2043, %v2007, %v2045
        %v2048 = vsel %vm2044, %v2008, %v2046
        %vm2049 = vcmp.ge.f32.partialorder %v2021, 0.0
        %vm2050 = vcmp.ge.f32.partialorder %v2022, 0.0
        %v2051 = vmul.f32 %v2021, 0.2
        %v2052 = vmul.f32 %v2022, 0.2
        %v2053 = vsel %vm2049, %v2021, %v2051
        %v2054 = vsel %vm2050, %v2022, %v2052
        %vm2055 = vcmp.ge.f32.partialorder %v2035, 0.0
        %vm2056 = vcmp.ge.f32.partialorder %v2036, 0.0
        %v2057 = vmul.f32 %v2035, 0.2
        %v2058 = vmul.f32 %v2036, 0.2
        %v2059 = vsel %vm2055, %v2035, %v2057
        %v2060 = vsel %vm2056, %v2036, %v2058
        %2063 = vrot.lane.b32.xlu0 %v2041, 1
        %v2064 = vpop.permute.xlu0 %2063
        %2065 = vrot.lane.b32.xlu0 %v2042, 1
        %v2066 = vpop.permute.xlu0 %2065
        %2069 = vst.msk [vmem:[#allocation3 + $0x1] sm:$0xff] %vm361, %v2064
        %2070 = vst.msk [vmem:[#allocation3 + $0x9] sm:$0xff] %vm361, %v2066
        %2073 = vrot.lane.b32.xlu0 %v2047, 1
        %v2074 = vpop.permute.xlu0 %2073
        %2075 = vrot.lane.b32.xlu0 %v2048, 1
        %v2076 = vpop.permute.xlu0 %2075
        %s2079 = scalar_lea.vmem [#allocation3], 24
        %2080 = vst.msk [vmem:[%s2079 + $0x1] sm:$0xff] %vm361, %v2074
        %2081 = vst.msk [vmem:[%s2079 + $0x9] sm:$0xff] %vm361, %v2076
        %2084 = vrot.lane.b32.xlu0 %v2053, 1
        %v2085 = vpop.permute.xlu0 %2084
        %2086 = vrot.lane.b32.xlu0 %v2054, 1
        %v2087 = vpop.permute.xlu0 %2086
        %s2090 = scalar_lea.vmem [#allocation3], 48
        %2091 = vst.msk [vmem:[%s2090 + $0x1] sm:$0xff] %vm361, %v2085
        %2092 = vst.msk [vmem:[%s2090 + $0x9] sm:$0xff] %vm361, %v2087
        %2095 = vrot.lane.b32.xlu0 %v2059, 1
        %v2096 = vpop.permute.xlu0 %2095
        %2097 = vrot.lane.b32.xlu0 %v2060, 1
        %v2098 = vpop.permute.xlu0 %2097
        %s2101 = scalar_lea.vmem [#allocation3], 72
        %2102 = vst.msk [vmem:[%s2101 + $0x1] sm:$0xff] %vm361, %v2096
        %2103 = vst.msk [vmem:[%s2101 + $0x9] sm:$0xff] %vm361, %v2098
        %s2104 = sld [smem:[#allocation12]]
        %v2105 = vstv %s2104
        %s2106 = sld [smem:[#allocation12 + $0x1]]
        %v2107 = vstv %s2106
        %s2108 = sld [smem:[#allocation12 + $0x2]]
        %v2109 = vstv %s2108
        %s2110 = sld [smem:[#allocation12 + $0x3]]
        %v2111 = vstv %s2110
        %v2112 = vld [vmem:[#allocation3] sm:$0xff]
        %v2113 = vld [vmem:[#allocation3 + $0x8] sm:$0xff]
        %s2114 = sld [smem:[#allocation11]]
        %v2115 = vstv %s2114
        %v2116 = vmul.f32 %v2115, %v2112
        %v2117 = vmul.f32 %v2115, %v2113
        %v2118 = vadd.f32 %v2105, %v2116
        %v2119 = vadd.f32 %v2105, %v2117
        %s2120 = sld [smem:[#allocation11 + $0x24]]
        %v2121 = vstv %s2120
        %v2122 = vmul.f32 %v2121, %v2112
        %v2123 = vmul.f32 %v2121, %v2113
        %v2124 = vadd.f32 %v2107, %v2122
        %v2125 = vadd.f32 %v2107, %v2123
        %s2126 = sld [smem:[#allocation11 + $0x48]]
        %v2127 = vstv %s2126
        %v2128 = vmul.f32 %v2127, %v2112
        %v2129 = vmul.f32 %v2127, %v2113
        %v2130 = vadd.f32 %v2109, %v2128
        %v2131 = vadd.f32 %v2109, %v2129
        %s2132 = sld [smem:[#allocation11 + $0x6c]]
        %v2133 = vstv %s2132
        %v2134 = vmul.f32 %v2133, %v2112
        %v2135 = vmul.f32 %v2133, %v2113
        %v2136 = vadd.f32 %v2111, %v2134
        %v2137 = vadd.f32 %v2111, %v2135
        %s2138 = sld [smem:[#allocation11 + $0x1]]
        %v2139 = vstv %s2138
        %v2140 = vmul.f32 %v2139, %v2112
        %v2141 = vmul.f32 %v2139, %v2113
        %2144 = vrot.lane.b32.xlu0 %v2140, 127
        %v2145 = vpop.permute.xlu0 %2144
        %2146 = vrot.lane.b32.xlu0 %v2141, 127
        %v2147 = vpop.permute.xlu0 %2146
        %v2150 = vadd.f32 %v2118, %v2145
        %v2151 = vadd.f32 %v2119, %v2147
        %s2152 = sld [smem:[#allocation11 + $0x25]]
        %v2153 = vstv %s2152
        %v2154 = vmul.f32 %v2153, %v2112
        %v2155 = vmul.f32 %v2153, %v2113
        %2158 = vrot.lane.b32.xlu0 %v2154, 127
        %v2159 = vpop.permute.xlu0 %2158
        %2160 = vrot.lane.b32.xlu0 %v2155, 127
        %v2161 = vpop.permute.xlu0 %2160
        %v2164 = vadd.f32 %v2124, %v2159
        %v2165 = vadd.f32 %v2125, %v2161
        %s2166 = sld [smem:[#allocation11 + $0x49]]
        %v2167 = vstv %s2166
        %v2168 = vmul.f32 %v2167, %v2112
        %v2169 = vmul.f32 %v2167, %v2113
        %2172 = vrot.lane.b32.xlu0 %v2168, 127
        %v2173 = vpop.permute.xlu0 %2172
        %2174 = vrot.lane.b32.xlu0 %v2169, 127
        %v2175 = vpop.permute.xlu0 %2174
        %v2178 = vadd.f32 %v2130, %v2173
        %v2179 = vadd.f32 %v2131, %v2175
        %s2180 = sld [smem:[#allocation11 + $0x6d]]
        %v2181 = vstv %s2180
        %v2182 = vmul.f32 %v2181, %v2112
        %v2183 = vmul.f32 %v2181, %v2113
        %2186 = vrot.lane.b32.xlu0 %v2182, 127
        %v2187 = vpop.permute.xlu0 %2186
        %2188 = vrot.lane.b32.xlu0 %v2183, 127
        %v2189 = vpop.permute.xlu0 %2188
        %v2192 = vadd.f32 %v2136, %v2187
        %v2193 = vadd.f32 %v2137, %v2189
        %s2194 = sld [smem:[#allocation11 + $0x2]]
        %v2195 = vstv %s2194
        %v2196 = vmul.f32 %v2195, %v2112
        %v2197 = vmul.f32 %v2195, %v2113
        %2200 = vrot.lane.b32.xlu0 %v2196, 126
        %v2201 = vpop.permute.xlu0 %2200
        %2202 = vrot.lane.b32.xlu0 %v2197, 126
        %v2203 = vpop.permute.xlu0 %2202
        %v2206 = vadd.f32 %v2150, %v2201
        %v2207 = vadd.f32 %v2151, %v2203
        %s2208 = sld [smem:[#allocation11 + $0x26]]
        %v2209 = vstv %s2208
        %v2210 = vmul.f32 %v2209, %v2112
        %v2211 = vmul.f32 %v2209, %v2113
        %2214 = vrot.lane.b32.xlu0 %v2210, 126
        %v2215 = vpop.permute.xlu0 %2214
        %2216 = vrot.lane.b32.xlu0 %v2211, 126
        %v2217 = vpop.permute.xlu0 %2216
        %v2220 = vadd.f32 %v2164, %v2215
        %v2221 = vadd.f32 %v2165, %v2217
        %s2222 = sld [smem:[#allocation11 + $0x4a]]
        %v2223 = vstv %s2222
        %v2224 = vmul.f32 %v2223, %v2112
        %v2225 = vmul.f32 %v2223, %v2113
        %2228 = vrot.lane.b32.xlu0 %v2224, 126
        %v2229 = vpop.permute.xlu0 %2228
        %2230 = vrot.lane.b32.xlu0 %v2225, 126
        %v2231 = vpop.permute.xlu0 %2230
        %v2234 = vadd.f32 %v2178, %v2229
        %v2235 = vadd.f32 %v2179, %v2231
        %s2236 = sld [smem:[#allocation11 + $0x6e]]
        %v2237 = vstv %s2236
        %v2238 = vmul.f32 %v2237, %v2112
        %v2239 = vmul.f32 %v2237, %v2113
        %2242 = vrot.lane.b32.xlu0 %v2238, 126
        %v2243 = vpop.permute.xlu0 %2242
        %2244 = vrot.lane.b32.xlu0 %v2239, 126
        %v2245 = vpop.permute.xlu0 %2244
        %v2248 = vadd.f32 %v2192, %v2243
        %v2249 = vadd.f32 %v2193, %v2245
        %v2250 = vld [vmem:[#allocation3 + $0x1] sm:$0xff]
        %v2251 = vld [vmem:[#allocation3 + $0x9] sm:$0xff]
        %s2252 = sld [smem:[#allocation11 + $0x3]]
        %v2253 = vstv %s2252
        %v2254 = vmul.f32 %v2253, %v2250
        %v2255 = vmul.f32 %v2253, %v2251
        %v2256 = vadd.f32 %v2206, %v2254
        %v2257 = vadd.f32 %v2207, %v2255
        %s2258 = sld [smem:[#allocation11 + $0x27]]
        %v2259 = vstv %s2258
        %v2260 = vmul.f32 %v2259, %v2250
        %v2261 = vmul.f32 %v2259, %v2251
        %v2262 = vadd.f32 %v2220, %v2260
        %v2263 = vadd.f32 %v2221, %v2261
        %s2264 = sld [smem:[#allocation11 + $0x4b]]
        %v2265 = vstv %s2264
        %v2266 = vmul.f32 %v2265, %v2250
        %v2267 = vmul.f32 %v2265, %v2251
        %v2268 = vadd.f32 %v2234, %v2266
        %v2269 = vadd.f32 %v2235, %v2267
        %s2270 = sld [smem:[#allocation11 + $0x6f]]
        %v2271 = vstv %s2270
        %v2272 = vmul.f32 %v2271, %v2250
        %v2273 = vmul.f32 %v2271, %v2251
        %v2274 = vadd.f32 %v2248, %v2272
        %v2275 = vadd.f32 %v2249, %v2273
        %s2276 = sld [smem:[#allocation11 + $0x4]]
        %v2277 = vstv %s2276
        %v2278 = vmul.f32 %v2277, %v2250
        %v2279 = vmul.f32 %v2277, %v2251
        %2282 = vrot.lane.b32.xlu0 %v2278, 127
        %v2283 = vpop.permute.xlu0 %2282
        %2284 = vrot.lane.b32.xlu0 %v2279, 127
        %v2285 = vpop.permute.xlu0 %2284
        %v2288 = vadd.f32 %v2256, %v2283
        %v2289 = vadd.f32 %v2257, %v2285
        %s2290 = sld [smem:[#allocation11 + $0x28]]
        %v2291 = vstv %s2290
        %v2292 = vmul.f32 %v2291, %v2250
        %v2293 = vmul.f32 %v2291, %v2251
        %2296 = vrot.lane.b32.xlu0 %v2292, 127
        %v2297 = vpop.permute.xlu0 %2296
        %2298 = vrot.lane.b32.xlu0 %v2293, 127
        %v2299 = vpop.permute.xlu0 %2298
        %v2302 = vadd.f32 %v2262, %v2297
        %v2303 = vadd.f32 %v2263, %v2299
        %s2304 = sld [smem:[#allocation11 + $0x4c]]
        %v2305 = vstv %s2304
        %v2306 = vmul.f32 %v2305, %v2250
        %v2307 = vmul.f32 %v2305, %v2251
        %2310 = vrot.lane.b32.xlu0 %v2306, 127
        %v2311 = vpop.permute.xlu0 %2310
        %2312 = vrot.lane.b32.xlu0 %v2307, 127
        %v2313 = vpop.permute.xlu0 %2312
        %v2316 = vadd.f32 %v2268, %v2311
        %v2317 = vadd.f32 %v2269, %v2313
        %s2318 = sld [smem:[#allocation11 + $0x70]]
        %v2319 = vstv %s2318
        %v2320 = vmul.f32 %v2319, %v2250
        %v2321 = vmul.f32 %v2319, %v2251
        %2324 = vrot.lane.b32.xlu0 %v2320, 127
        %v2325 = vpop.permute.xlu0 %2324
        %2326 = vrot.lane.b32.xlu0 %v2321, 127
        %v2327 = vpop.permute.xlu0 %2326
        %v2330 = vadd.f32 %v2274, %v2325
        %v2331 = vadd.f32 %v2275, %v2327
        %s2332 = sld [smem:[#allocation11 + $0x5]]
        %v2333 = vstv %s2332
        %v2334 = vmul.f32 %v2333, %v2250
        %v2335 = vmul.f32 %v2333, %v2251
        %2338 = vrot.lane.b32.xlu0 %v2334, 126
        %v2339 = vpop.permute.xlu0 %2338
        %2340 = vrot.lane.b32.xlu0 %v2335, 126
        %v2341 = vpop.permute.xlu0 %2340
        %v2344 = vadd.f32 %v2288, %v2339
        %v2345 = vadd.f32 %v2289, %v2341
        %s2346 = sld [smem:[#allocation11 + $0x29]]
        %v2347 = vstv %s2346
        %v2348 = vmul.f32 %v2347, %v2250
        %v2349 = vmul.f32 %v2347, %v2251
        %2352 = vrot.lane.b32.xlu0 %v2348, 126
        %v2353 = vpop.permute.xlu0 %2352
        %2354 = vrot.lane.b32.xlu0 %v2349, 126
        %v2355 = vpop.permute.xlu0 %2354
        %v2358 = vadd.f32 %v2302, %v2353
        %v2359 = vadd.f32 %v2303, %v2355
        %s2360 = sld [smem:[#allocation11 + $0x4d]]
        %v2361 = vstv %s2360
        %v2362 = vmul.f32 %v2361, %v2250
        %v2363 = vmul.f32 %v2361, %v2251
        %2366 = vrot.lane.b32.xlu0 %v2362, 126
        %v2367 = vpop.permute.xlu0 %2366
        %2368 = vrot.lane.b32.xlu0 %v2363, 126
        %v2369 = vpop.permute.xlu0 %2368
        %v2372 = vadd.f32 %v2316, %v2367
        %v2373 = vadd.f32 %v2317, %v2369
        %s2374 = sld [smem:[#allocation11 + $0x71]]
        %v2375 = vstv %s2374
        %v2376 = vmul.f32 %v2375, %v2250
        %v2377 = vmul.f32 %v2375, %v2251
        %2380 = vrot.lane.b32.xlu0 %v2376, 126
        %v2381 = vpop.permute.xlu0 %2380
        %2382 = vrot.lane.b32.xlu0 %v2377, 126
        %v2383 = vpop.permute.xlu0 %2382
        %v2386 = vadd.f32 %v2330, %v2381
        %v2387 = vadd.f32 %v2331, %v2383
        %v2388 = vld [vmem:[#allocation3 + $0x2] sm:$0xff]
        %v2389 = vld [vmem:[#allocation3 + $0xa] sm:$0xff]
        %s2390 = sld [smem:[#allocation11 + $0x6]]
        %v2391 = vstv %s2390
        %v2392 = vmul.f32 %v2391, %v2388
        %v2393 = vmul.f32 %v2391, %v2389
        %v2394 = vadd.f32 %v2344, %v2392
        %v2395 = vadd.f32 %v2345, %v2393
        %s2396 = sld [smem:[#allocation11 + $0x2a]]
        %v2397 = vstv %s2396
        %v2398 = vmul.f32 %v2397, %v2388
        %v2399 = vmul.f32 %v2397, %v2389
        %v2400 = vadd.f32 %v2358, %v2398
        %v2401 = vadd.f32 %v2359, %v2399
        %s2402 = sld [smem:[#allocation11 + $0x4e]]
        %v2403 = vstv %s2402
        %v2404 = vmul.f32 %v2403, %v2388
        %v2405 = vmul.f32 %v2403, %v2389
        %v2406 = vadd.f32 %v2372, %v2404
        %v2407 = vadd.f32 %v2373, %v2405
        %s2408 = sld [smem:[#allocation11 + $0x72]]
        %v2409 = vstv %s2408
        %v2410 = vmul.f32 %v2409, %v2388
        %v2411 = vmul.f32 %v2409, %v2389
        %v2412 = vadd.f32 %v2386, %v2410
        %v2413 = vadd.f32 %v2387, %v2411
        %s2414 = sld [smem:[#allocation11 + $0x7]]
        %v2415 = vstv %s2414
        %v2416 = vmul.f32 %v2415, %v2388
        %v2417 = vmul.f32 %v2415, %v2389
        %2420 = vrot.lane.b32.xlu0 %v2416, 127
        %v2421 = vpop.permute.xlu0 %2420
        %2422 = vrot.lane.b32.xlu0 %v2417, 127
        %v2423 = vpop.permute.xlu0 %2422
        %v2426 = vadd.f32 %v2394, %v2421
        %v2427 = vadd.f32 %v2395, %v2423
        %s2428 = sld [smem:[#allocation11 + $0x2b]]
        %v2429 = vstv %s2428
        %v2430 = vmul.f32 %v2429, %v2388
        %v2431 = vmul.f32 %v2429, %v2389
        %2434 = vrot.lane.b32.xlu0 %v2430, 127
        %v2435 = vpop.permute.xlu0 %2434
        %2436 = vrot.lane.b32.xlu0 %v2431, 127
        %v2437 = vpop.permute.xlu0 %2436
        %v2440 = vadd.f32 %v2400, %v2435
        %v2441 = vadd.f32 %v2401, %v2437
        %s2442 = sld [smem:[#allocation11 + $0x4f]]
        %v2443 = vstv %s2442
        %v2444 = vmul.f32 %v2443, %v2388
        %v2445 = vmul.f32 %v2443, %v2389
        %2448 = vrot.lane.b32.xlu0 %v2444, 127
        %v2449 = vpop.permute.xlu0 %2448
        %2450 = vrot.lane.b32.xlu0 %v2445, 127
        %v2451 = vpop.permute.xlu0 %2450
        %v2454 = vadd.f32 %v2406, %v2449
        %v2455 = vadd.f32 %v2407, %v2451
        %s2456 = sld [smem:[#allocation11 + $0x73]]
        %v2457 = vstv %s2456
        %v2458 = vmul.f32 %v2457, %v2388
        %v2459 = vmul.f32 %v2457, %v2389
        %2462 = vrot.lane.b32.xlu0 %v2458, 127
        %v2463 = vpop.permute.xlu0 %2462
        %2464 = vrot.lane.b32.xlu0 %v2459, 127
        %v2465 = vpop.permute.xlu0 %2464
        %v2468 = vadd.f32 %v2412, %v2463
        %v2469 = vadd.f32 %v2413, %v2465
        %s2470 = sld [smem:[#allocation11 + $0x8]]
        %v2471 = vstv %s2470
        %v2472 = vmul.f32 %v2471, %v2388
        %v2473 = vmul.f32 %v2471, %v2389
        %2476 = vrot.lane.b32.xlu0 %v2472, 126
        %v2477 = vpop.permute.xlu0 %2476
        %2478 = vrot.lane.b32.xlu0 %v2473, 126
        %v2479 = vpop.permute.xlu0 %2478
        %v2482 = vadd.f32 %v2426, %v2477
        %v2483 = vadd.f32 %v2427, %v2479
        %s2484 = sld [smem:[#allocation11 + $0x2c]]
        %v2485 = vstv %s2484
        %v2486 = vmul.f32 %v2485, %v2388
        %v2487 = vmul.f32 %v2485, %v2389
        %2490 = vrot.lane.b32.xlu0 %v2486, 126
        %v2491 = vpop.permute.xlu0 %2490
        %2492 = vrot.lane.b32.xlu0 %v2487, 126
        %v2493 = vpop.permute.xlu0 %2492
        %v2496 = vadd.f32 %v2440, %v2491
        %v2497 = vadd.f32 %v2441, %v2493
        %s2498 = sld [smem:[#allocation11 + $0x50]]
        %v2499 = vstv %s2498
        %v2500 = vmul.f32 %v2499, %v2388
        %v2501 = vmul.f32 %v2499, %v2389
        %2504 = vrot.lane.b32.xlu0 %v2500, 126
        %v2505 = vpop.permute.xlu0 %2504
        %2506 = vrot.lane.b32.xlu0 %v2501, 126
        %v2507 = vpop.permute.xlu0 %2506
        %v2510 = vadd.f32 %v2454, %v2505
        %v2511 = vadd.f32 %v2455, %v2507
        %s2512 = sld [smem:[#allocation11 + $0x74]]
        %v2513 = vstv %s2512
        %v2514 = vmul.f32 %v2513, %v2388
        %v2515 = vmul.f32 %v2513, %v2389
        %2518 = vrot.lane.b32.xlu0 %v2514, 126
        %v2519 = vpop.permute.xlu0 %2518
        %2520 = vrot.lane.b32.xlu0 %v2515, 126
        %v2521 = vpop.permute.xlu0 %2520
        %v2524 = vadd.f32 %v2468, %v2519
        %v2525 = vadd.f32 %v2469, %v2521
        %v2526 = vld [vmem:[%s2079] sm:$0xff]
        %v2527 = vld [vmem:[%s2079 + $0x8] sm:$0xff]
        %s2528 = sld [smem:[#allocation11 + $0x9]]
        %v2529 = vstv %s2528
        %v2530 = vmul.f32 %v2529, %v2526
        %v2531 = vmul.f32 %v2529, %v2527
        %v2532 = vadd.f32 %v2482, %v2530
        %v2533 = vadd.f32 %v2483, %v2531
        %s2534 = sld [smem:[#allocation11 + $0x2d]]
        %v2535 = vstv %s2534
        %v2536 = vmul.f32 %v2535, %v2526
        %v2537 = vmul.f32 %v2535, %v2527
        %v2538 = vadd.f32 %v2496, %v2536
        %v2539 = vadd.f32 %v2497, %v2537
        %s2540 = sld [smem:[#allocation11 + $0x51]]
        %v2541 = vstv %s2540
        %v2542 = vmul.f32 %v2541, %v2526
        %v2543 = vmul.f32 %v2541, %v2527
        %v2544 = vadd.f32 %v2510, %v2542
        %v2545 = vadd.f32 %v2511, %v2543
        %s2546 = sld [smem:[#allocation11 + $0x75]]
        %v2547 = vstv %s2546
        %v2548 = vmul.f32 %v2547, %v2526
        %v2549 = vmul.f32 %v2547, %v2527
        %v2550 = vadd.f32 %v2524, %v2548
        %v2551 = vadd.f32 %v2525, %v2549
        %s2552 = sld [smem:[#allocation11 + $0xa]]
        %v2553 = vstv %s2552
        %v2554 = vmul.f32 %v2553, %v2526
        %v2555 = vmul.f32 %v2553, %v2527
        %2558 = vrot.lane.b32.xlu0 %v2554, 127
        %v2559 = vpop.permute.xlu0 %2558
        %2560 = vrot.lane.b32.xlu0 %v2555, 127
        %v2561 = vpop.permute.xlu0 %2560
        %v2564 = vadd.f32 %v2532, %v2559
        %v2565 = vadd.f32 %v2533, %v2561
        %s2566 = sld [smem:[#allocation11 + $0x2e]]
        %v2567 = vstv %s2566
        %v2568 = vmul.f32 %v2567, %v2526
        %v2569 = vmul.f32 %v2567, %v2527
        %2572 = vrot.lane.b32.xlu0 %v2568, 127
        %v2573 = vpop.permute.xlu0 %2572
        %2574 = vrot.lane.b32.xlu0 %v2569, 127
        %v2575 = vpop.permute.xlu0 %2574
        %v2578 = vadd.f32 %v2538, %v2573
        %v2579 = vadd.f32 %v2539, %v2575
        %s2580 = sld [smem:[#allocation11 + $0x52]]
        %v2581 = vstv %s2580
        %v2582 = vmul.f32 %v2581, %v2526
        %v2583 = vmul.f32 %v2581, %v2527
        %2586 = vrot.lane.b32.xlu0 %v2582, 127
        %v2587 = vpop.permute.xlu0 %2586
        %2588 = vrot.lane.b32.xlu0 %v2583, 127
        %v2589 = vpop.permute.xlu0 %2588
        %v2592 = vadd.f32 %v2544, %v2587
        %v2593 = vadd.f32 %v2545, %v2589
        %s2594 = sld [smem:[#allocation11 + $0x76]]
        %v2595 = vstv %s2594
        %v2596 = vmul.f32 %v2595, %v2526
        %v2597 = vmul.f32 %v2595, %v2527
        %2600 = vrot.lane.b32.xlu0 %v2596, 127
        %v2601 = vpop.permute.xlu0 %2600
        %2602 = vrot.lane.b32.xlu0 %v2597, 127
        %v2603 = vpop.permute.xlu0 %2602
        %v2606 = vadd.f32 %v2550, %v2601
        %v2607 = vadd.f32 %v2551, %v2603
        %s2608 = sld [smem:[#allocation11 + $0xb]]
        %v2609 = vstv %s2608
        %v2610 = vmul.f32 %v2609, %v2526
        %v2611 = vmul.f32 %v2609, %v2527
        %2614 = vrot.lane.b32.xlu0 %v2610, 126
        %v2615 = vpop.permute.xlu0 %2614
        %2616 = vrot.lane.b32.xlu0 %v2611, 126
        %v2617 = vpop.permute.xlu0 %2616
        %v2620 = vadd.f32 %v2564, %v2615
        %v2621 = vadd.f32 %v2565, %v2617
        %s2622 = sld [smem:[#allocation11 + $0x2f]]
        %v2623 = vstv %s2622
        %v2624 = vmul.f32 %v2623, %v2526
        %v2625 = vmul.f32 %v2623, %v2527
        %2628 = vrot.lane.b32.xlu0 %v2624, 126
        %v2629 = vpop.permute.xlu0 %2628
        %2630 = vrot.lane.b32.xlu0 %v2625, 126
        %v2631 = vpop.permute.xlu0 %2630
        %v2634 = vadd.f32 %v2578, %v2629
        %v2635 = vadd.f32 %v2579, %v2631
        %s2636 = sld [smem:[#allocation11 + $0x53]]
        %v2637 = vstv %s2636
        %v2638 = vmul.f32 %v2637, %v2526
        %v2639 = vmul.f32 %v2637, %v2527
        %2642 = vrot.lane.b32.xlu0 %v2638, 126
        %v2643 = vpop.permute.xlu0 %2642
        %2644 = vrot.lane.b32.xlu0 %v2639, 126
        %v2645 = vpop.permute.xlu0 %2644
        %v2648 = vadd.f32 %v2592, %v2643
        %v2649 = vadd.f32 %v2593, %v2645
        %s2650 = sld [smem:[#allocation11 + $0x77]]
        %v2651 = vstv %s2650
        %v2652 = vmul.f32 %v2651, %v2526
        %v2653 = vmul.f32 %v2651, %v2527
        %2656 = vrot.lane.b32.xlu0 %v2652, 126
        %v2657 = vpop.permute.xlu0 %2656
        %2658 = vrot.lane.b32.xlu0 %v2653, 126
        %v2659 = vpop.permute.xlu0 %2658
        %v2662 = vadd.f32 %v2606, %v2657
        %v2663 = vadd.f32 %v2607, %v2659
        %v2664 = vld [vmem:[%s2079 + $0x1] sm:$0xff]
        %v2665 = vld [vmem:[%s2079 + $0x9] sm:$0xff]
        %s2666 = sld [smem:[#allocation11 + $0xc]]
        %v2667 = vstv %s2666
        %v2668 = vmul.f32 %v2667, %v2664
        %v2669 = vmul.f32 %v2667, %v2665
        %v2670 = vadd.f32 %v2620, %v2668
        %v2671 = vadd.f32 %v2621, %v2669
        %s2672 = sld [smem:[#allocation11 + $0x30]]
        %v2673 = vstv %s2672
        %v2674 = vmul.f32 %v2673, %v2664
        %v2675 = vmul.f32 %v2673, %v2665
        %v2676 = vadd.f32 %v2634, %v2674
        %v2677 = vadd.f32 %v2635, %v2675
        %s2678 = sld [smem:[#allocation11 + $0x54]]
        %v2679 = vstv %s2678
        %v2680 = vmul.f32 %v2679, %v2664
        %v2681 = vmul.f32 %v2679, %v2665
        %v2682 = vadd.f32 %v2648, %v2680
        %v2683 = vadd.f32 %v2649, %v2681
        %s2684 = sld [smem:[#allocation11 + $0x78]]
        %v2685 = vstv %s2684
        %v2686 = vmul.f32 %v2685, %v2664
        %v2687 = vmul.f32 %v2685, %v2665
        %v2688 = vadd.f32 %v2662, %v2686
        %v2689 = vadd.f32 %v2663, %v2687
        %s2690 = sld [smem:[#allocation11 + $0xd]]
        %v2691 = vstv %s2690
        %v2692 = vmul.f32 %v2691, %v2664
        %v2693 = vmul.f32 %v2691, %v2665
        %2696 = vrot.lane.b32.xlu0 %v2692, 127
        %v2697 = vpop.permute.xlu0 %2696
        %2698 = vrot.lane.b32.xlu0 %v2693, 127
        %v2699 = vpop.permute.xlu0 %2698
        %v2702 = vadd.f32 %v2670, %v2697
        %v2703 = vadd.f32 %v2671, %v2699
        %s2704 = sld [smem:[#allocation11 + $0x31]]
        %v2705 = vstv %s2704
        %v2706 = vmul.f32 %v2705, %v2664
        %v2707 = vmul.f32 %v2705, %v2665
        %2710 = vrot.lane.b32.xlu0 %v2706, 127
        %v2711 = vpop.permute.xlu0 %2710
        %2712 = vrot.lane.b32.xlu0 %v2707, 127
        %v2713 = vpop.permute.xlu0 %2712
        %v2716 = vadd.f32 %v2676, %v2711
        %v2717 = vadd.f32 %v2677, %v2713
        %s2718 = sld [smem:[#allocation11 + $0x55]]
        %v2719 = vstv %s2718
        %v2720 = vmul.f32 %v2719, %v2664
        %v2721 = vmul.f32 %v2719, %v2665
        %2724 = vrot.lane.b32.xlu0 %v2720, 127
        %v2725 = vpop.permute.xlu0 %2724
        %2726 = vrot.lane.b32.xlu0 %v2721, 127
        %v2727 = vpop.permute.xlu0 %2726
        %v2730 = vadd.f32 %v2682, %v2725
        %v2731 = vadd.f32 %v2683, %v2727
        %s2732 = sld [smem:[#allocation11 + $0x79]]
        %v2733 = vstv %s2732
        %v2734 = vmul.f32 %v2733, %v2664
        %v2735 = vmul.f32 %v2733, %v2665
        %2738 = vrot.lane.b32.xlu0 %v2734, 127
        %v2739 = vpop.permute.xlu0 %2738
        %2740 = vrot.lane.b32.xlu0 %v2735, 127
        %v2741 = vpop.permute.xlu0 %2740
        %v2744 = vadd.f32 %v2688, %v2739
        %v2745 = vadd.f32 %v2689, %v2741
        %s2746 = sld [smem:[#allocation11 + $0xe]]
        %v2747 = vstv %s2746
        %v2748 = vmul.f32 %v2747, %v2664
        %v2749 = vmul.f32 %v2747, %v2665
        %2752 = vrot.lane.b32.xlu0 %v2748, 126
        %v2753 = vpop.permute.xlu0 %2752
        %2754 = vrot.lane.b32.xlu0 %v2749, 126
        %v2755 = vpop.permute.xlu0 %2754
        %v2758 = vadd.f32 %v2702, %v2753
        %v2759 = vadd.f32 %v2703, %v2755
        %s2760 = sld [smem:[#allocation11 + $0x32]]
        %v2761 = vstv %s2760
        %v2762 = vmul.f32 %v2761, %v2664
        %v2763 = vmul.f32 %v2761, %v2665
        %2766 = vrot.lane.b32.xlu0 %v2762, 126
        %v2767 = vpop.permute.xlu0 %2766
        %2768 = vrot.lane.b32.xlu0 %v2763, 126
        %v2769 = vpop.permute.xlu0 %2768
        %v2772 = vadd.f32 %v2716, %v2767
        %v2773 = vadd.f32 %v2717, %v2769
        %s2774 = sld [smem:[#allocation11 + $0x56]]
        %v2775 = vstv %s2774
        %v2776 = vmul.f32 %v2775, %v2664
        %v2777 = vmul.f32 %v2775, %v2665
        %2780 = vrot.lane.b32.xlu0 %v2776, 126
        %v2781 = vpop.permute.xlu0 %2780
        %2782 = vrot.lane.b32.xlu0 %v2777, 126
        %v2783 = vpop.permute.xlu0 %2782
        %v2786 = vadd.f32 %v2730, %v2781
        %v2787 = vadd.f32 %v2731, %v2783
        %s2788 = sld [smem:[#allocation11 + $0x7a]]
        %v2789 = vstv %s2788
        %v2790 = vmul.f32 %v2789, %v2664
        %v2791 = vmul.f32 %v2789, %v2665
        %2794 = vrot.lane.b32.xlu0 %v2790, 126
        %v2795 = vpop.permute.xlu0 %2794
        %2796 = vrot.lane.b32.xlu0 %v2791, 126
        %v2797 = vpop.permute.xlu0 %2796
        %v2800 = vadd.f32 %v2744, %v2795
        %v2801 = vadd.f32 %v2745, %v2797
        %v2802 = vld [vmem:[%s2079 + $0x2] sm:$0xff]
        %v2803 = vld [vmem:[%s2079 + $0xa] sm:$0xff]
        %s2804 = sld [smem:[#allocation11 + $0xf]]
        %v2805 = vstv %s2804
        %v2806 = vmul.f32 %v2805, %v2802
        %v2807 = vmul.f32 %v2805, %v2803
        %v2808 = vadd.f32 %v2758, %v2806
        %v2809 = vadd.f32 %v2759, %v2807
        %s2810 = sld [smem:[#allocation11 + $0x33]]
        %v2811 = vstv %s2810
        %v2812 = vmul.f32 %v2811, %v2802
        %v2813 = vmul.f32 %v2811, %v2803
        %v2814 = vadd.f32 %v2772, %v2812
        %v2815 = vadd.f32 %v2773, %v2813
        %s2816 = sld [smem:[#allocation11 + $0x57]]
        %v2817 = vstv %s2816
        %v2818 = vmul.f32 %v2817, %v2802
        %v2819 = vmul.f32 %v2817, %v2803
        %v2820 = vadd.f32 %v2786, %v2818
        %v2821 = vadd.f32 %v2787, %v2819
        %s2822 = sld [smem:[#allocation11 + $0x7b]]
        %v2823 = vstv %s2822
        %v2824 = vmul.f32 %v2823, %v2802
        %v2825 = vmul.f32 %v2823, %v2803
        %v2826 = vadd.f32 %v2800, %v2824
        %v2827 = vadd.f32 %v2801, %v2825
        %s2828 = sld [smem:[#allocation11 + $0x10]]
        %v2829 = vstv %s2828
        %v2830 = vmul.f32 %v2829, %v2802
        %v2831 = vmul.f32 %v2829, %v2803
        %2834 = vrot.lane.b32.xlu0 %v2830, 127
        %v2835 = vpop.permute.xlu0 %2834
        %2836 = vrot.lane.b32.xlu0 %v2831, 127
        %v2837 = vpop.permute.xlu0 %2836
        %v2840 = vadd.f32 %v2808, %v2835
        %v2841 = vadd.f32 %v2809, %v2837
        %s2842 = sld [smem:[#allocation11 + $0x34]]
        %v2843 = vstv %s2842
        %v2844 = vmul.f32 %v2843, %v2802
        %v2845 = vmul.f32 %v2843, %v2803
        %2848 = vrot.lane.b32.xlu0 %v2844, 127
        %v2849 = vpop.permute.xlu0 %2848
        %2850 = vrot.lane.b32.xlu0 %v2845, 127
        %v2851 = vpop.permute.xlu0 %2850
        %v2854 = vadd.f32 %v2814, %v2849
        %v2855 = vadd.f32 %v2815, %v2851
        %s2856 = sld [smem:[#allocation11 + $0x58]]
        %v2857 = vstv %s2856
        %v2858 = vmul.f32 %v2857, %v2802
        %v2859 = vmul.f32 %v2857, %v2803
        %2862 = vrot.lane.b32.xlu0 %v2858, 127
        %v2863 = vpop.permute.xlu0 %2862
        %2864 = vrot.lane.b32.xlu0 %v2859, 127
        %v2865 = vpop.permute.xlu0 %2864
        %v2868 = vadd.f32 %v2820, %v2863
        %v2869 = vadd.f32 %v2821, %v2865
        %s2870 = sld [smem:[#allocation11 + $0x7c]]
        %v2871 = vstv %s2870
        %v2872 = vmul.f32 %v2871, %v2802
        %v2873 = vmul.f32 %v2871, %v2803
        %2876 = vrot.lane.b32.xlu0 %v2872, 127
        %v2877 = vpop.permute.xlu0 %2876
        %2878 = vrot.lane.b32.xlu0 %v2873, 127
        %v2879 = vpop.permute.xlu0 %2878
        %v2882 = vadd.f32 %v2826, %v2877
        %v2883 = vadd.f32 %v2827, %v2879
        %s2884 = sld [smem:[#allocation11 + $0x11]]
        %v2885 = vstv %s2884
        %v2886 = vmul.f32 %v2885, %v2802
        %v2887 = vmul.f32 %v2885, %v2803
        %2890 = vrot.lane.b32.xlu0 %v2886, 126
        %v2891 = vpop.permute.xlu0 %2890
        %2892 = vrot.lane.b32.xlu0 %v2887, 126
        %v2893 = vpop.permute.xlu0 %2892
        %v2896 = vadd.f32 %v2840, %v2891
        %v2897 = vadd.f32 %v2841, %v2893
        %s2898 = sld [smem:[#allocation11 + $0x35]]
        %v2899 = vstv %s2898
        %v2900 = vmul.f32 %v2899, %v2802
        %v2901 = vmul.f32 %v2899, %v2803
        %2904 = vrot.lane.b32.xlu0 %v2900, 126
        %v2905 = vpop.permute.xlu0 %2904
        %2906 = vrot.lane.b32.xlu0 %v2901, 126
        %v2907 = vpop.permute.xlu0 %2906
        %v2910 = vadd.f32 %v2854, %v2905
        %v2911 = vadd.f32 %v2855, %v2907
        %s2912 = sld [smem:[#allocation11 + $0x59]]
        %v2913 = vstv %s2912
        %v2914 = vmul.f32 %v2913, %v2802
        %v2915 = vmul.f32 %v2913, %v2803
        %2918 = vrot.lane.b32.xlu0 %v2914, 126
        %v2919 = vpop.permute.xlu0 %2918
        %2920 = vrot.lane.b32.xlu0 %v2915, 126
        %v2921 = vpop.permute.xlu0 %2920
        %v2924 = vadd.f32 %v2868, %v2919
        %v2925 = vadd.f32 %v2869, %v2921
        %s2926 = sld [smem:[#allocation11 + $0x7d]]
        %v2927 = vstv %s2926
        %v2928 = vmul.f32 %v2927, %v2802
        %v2929 = vmul.f32 %v2927, %v2803
        %2932 = vrot.lane.b32.xlu0 %v2928, 126
        %v2933 = vpop.permute.xlu0 %2932
        %2934 = vrot.lane.b32.xlu0 %v2929, 126
        %v2935 = vpop.permute.xlu0 %2934
        %v2938 = vadd.f32 %v2882, %v2933
        %v2939 = vadd.f32 %v2883, %v2935
        %v2940 = vld [vmem:[%s2090] sm:$0xff]
        %v2941 = vld [vmem:[%s2090 + $0x8] sm:$0xff]
        %s2942 = sld [smem:[#allocation11 + $0x12]]
        %v2943 = vstv %s2942
        %v2944 = vmul.f32 %v2943, %v2940
        %v2945 = vmul.f32 %v2943, %v2941
        %v2946 = vadd.f32 %v2896, %v2944
        %v2947 = vadd.f32 %v2897, %v2945
        %s2948 = sld [smem:[#allocation11 + $0x36]]
        %v2949 = vstv %s2948
        %v2950 = vmul.f32 %v2949, %v2940
        %v2951 = vmul.f32 %v2949, %v2941
        %v2952 = vadd.f32 %v2910, %v2950
        %v2953 = vadd.f32 %v2911, %v2951
        %s2954 = sld [smem:[#allocation11 + $0x5a]]
        %v2955 = vstv %s2954
        %v2956 = vmul.f32 %v2955, %v2940
        %v2957 = vmul.f32 %v2955, %v2941
        %v2958 = vadd.f32 %v2924, %v2956
        %v2959 = vadd.f32 %v2925, %v2957
        %s2960 = sld [smem:[#allocation11 + $0x7e]]
        %v2961 = vstv %s2960
        %v2962 = vmul.f32 %v2961, %v2940
        %v2963 = vmul.f32 %v2961, %v2941
        %v2964 = vadd.f32 %v2938, %v2962
        %v2965 = vadd.f32 %v2939, %v2963
        %s2966 = sld [smem:[#allocation11 + $0x13]]
        %v2967 = vstv %s2966
        %v2968 = vmul.f32 %v2967, %v2940
        %v2969 = vmul.f32 %v2967, %v2941
        %2972 = vrot.lane.b32.xlu0 %v2968, 127
        %v2973 = vpop.permute.xlu0 %2972
        %2974 = vrot.lane.b32.xlu0 %v2969, 127
        %v2975 = vpop.permute.xlu0 %2974
        %v2978 = vadd.f32 %v2946, %v2973
        %v2979 = vadd.f32 %v2947, %v2975
        %s2980 = sld [smem:[#allocation11 + $0x37]]
        %v2981 = vstv %s2980
        %v2982 = vmul.f32 %v2981, %v2940
        %v2983 = vmul.f32 %v2981, %v2941
        %2986 = vrot.lane.b32.xlu0 %v2982, 127
        %v2987 = vpop.permute.xlu0 %2986
        %2988 = vrot.lane.b32.xlu0 %v2983, 127
        %v2989 = vpop.permute.xlu0 %2988
        %v2992 = vadd.f32 %v2952, %v2987
        %v2993 = vadd.f32 %v2953, %v2989
        %s2994 = sld [smem:[#allocation11 + $0x5b]]
        %v2995 = vstv %s2994
        %v2996 = vmul.f32 %v2995, %v2940
        %v2997 = vmul.f32 %v2995, %v2941
        %3000 = vrot.lane.b32.xlu0 %v2996, 127
        %v3001 = vpop.permute.xlu0 %3000
        %3002 = vrot.lane.b32.xlu0 %v2997, 127
        %v3003 = vpop.permute.xlu0 %3002
        %v3006 = vadd.f32 %v2958, %v3001
        %v3007 = vadd.f32 %v2959, %v3003
        %s3008 = sld [smem:[#allocation11 + $0x7f]]
        %v3009 = vstv %s3008
        %v3010 = vmul.f32 %v3009, %v2940
        %v3011 = vmul.f32 %v3009, %v2941
        %3014 = vrot.lane.b32.xlu0 %v3010, 127
        %v3015 = vpop.permute.xlu0 %3014
        %3016 = vrot.lane.b32.xlu0 %v3011, 127
        %v3017 = vpop.permute.xlu0 %3016
        %v3020 = vadd.f32 %v2964, %v3015
        %v3021 = vadd.f32 %v2965, %v3017
        %s3022 = sld [smem:[#allocation11 + $0x14]]
        %v3023 = vstv %s3022
        %v3024 = vmul.f32 %v3023, %v2940
        %v3025 = vmul.f32 %v3023, %v2941
        %3028 = vrot.lane.b32.xlu0 %v3024, 126
        %v3029 = vpop.permute.xlu0 %3028
        %3030 = vrot.lane.b32.xlu0 %v3025, 126
        %v3031 = vpop.permute.xlu0 %3030
        %v3034 = vadd.f32 %v2978, %v3029
        %v3035 = vadd.f32 %v2979, %v3031
        %s3036 = sld [smem:[#allocation11 + $0x38]]
        %v3037 = vstv %s3036
        %v3038 = vmul.f32 %v3037, %v2940
        %v3039 = vmul.f32 %v3037, %v2941
        %3042 = vrot.lane.b32.xlu0 %v3038, 126
        %v3043 = vpop.permute.xlu0 %3042
        %3044 = vrot.lane.b32.xlu0 %v3039, 126
        %v3045 = vpop.permute.xlu0 %3044
        %v3048 = vadd.f32 %v2992, %v3043
        %v3049 = vadd.f32 %v2993, %v3045
        %s3050 = sld [smem:[#allocation11 + $0x5c]]
        %v3051 = vstv %s3050
        %v3052 = vmul.f32 %v3051, %v2940
        %v3053 = vmul.f32 %v3051, %v2941
        %3056 = vrot.lane.b32.xlu0 %v3052, 126
        %v3057 = vpop.permute.xlu0 %3056
        %3058 = vrot.lane.b32.xlu0 %v3053, 126
        %v3059 = vpop.permute.xlu0 %3058
        %v3062 = vadd.f32 %v3006, %v3057
        %v3063 = vadd.f32 %v3007, %v3059
        %s3064 = sld [smem:[#allocation11 + $0x80]]
        %v3065 = vstv %s3064
        %v3066 = vmul.f32 %v3065, %v2940
        %v3067 = vmul.f32 %v3065, %v2941
        %3070 = vrot.lane.b32.xlu0 %v3066, 126
        %v3071 = vpop.permute.xlu0 %3070
        %3072 = vrot.lane.b32.xlu0 %v3067, 126
        %v3073 = vpop.permute.xlu0 %3072
        %v3076 = vadd.f32 %v3020, %v3071
        %v3077 = vadd.f32 %v3021, %v3073
        %v3078 = vld [vmem:[%s2090 + $0x1] sm:$0xff]
        %v3079 = vld [vmem:[%s2090 + $0x9] sm:$0xff]
        %s3080 = sld [smem:[#allocation11 + $0x15]]
        %v3081 = vstv %s3080
        %v3082 = vmul.f32 %v3081, %v3078
        %v3083 = vmul.f32 %v3081, %v3079
        %v3084 = vadd.f32 %v3034, %v3082
        %v3085 = vadd.f32 %v3035, %v3083
        %s3086 = sld [smem:[#allocation11 + $0x39]]
        %v3087 = vstv %s3086
        %v3088 = vmul.f32 %v3087, %v3078
        %v3089 = vmul.f32 %v3087, %v3079
        %v3090 = vadd.f32 %v3048, %v3088
        %v3091 = vadd.f32 %v3049, %v3089
        %s3092 = sld [smem:[#allocation11 + $0x5d]]
        %v3093 = vstv %s3092
        %v3094 = vmul.f32 %v3093, %v3078
        %v3095 = vmul.f32 %v3093, %v3079
        %v3096 = vadd.f32 %v3062, %v3094
        %v3097 = vadd.f32 %v3063, %v3095
        %s3098 = sld [smem:[#allocation11 + $0x81]]
        %v3099 = vstv %s3098
        %v3100 = vmul.f32 %v3099, %v3078
        %v3101 = vmul.f32 %v3099, %v3079
        %v3102 = vadd.f32 %v3076, %v3100
        %v3103 = vadd.f32 %v3077, %v3101
        %s3104 = sld [smem:[#allocation11 + $0x16]]
        %v3105 = vstv %s3104
        %v3106 = vmul.f32 %v3105, %v3078
        %v3107 = vmul.f32 %v3105, %v3079
        %3110 = vrot.lane.b32.xlu0 %v3106, 127
        %v3111 = vpop.permute.xlu0 %3110
        %3112 = vrot.lane.b32.xlu0 %v3107, 127
        %v3113 = vpop.permute.xlu0 %3112
        %v3116 = vadd.f32 %v3084, %v3111
        %v3117 = vadd.f32 %v3085, %v3113
        %s3118 = sld [smem:[#allocation11 + $0x3a]]
        %v3119 = vstv %s3118
        %v3120 = vmul.f32 %v3119, %v3078
        %v3121 = vmul.f32 %v3119, %v3079
        %3124 = vrot.lane.b32.xlu0 %v3120, 127
        %v3125 = vpop.permute.xlu0 %3124
        %3126 = vrot.lane.b32.xlu0 %v3121, 127
        %v3127 = vpop.permute.xlu0 %3126
        %v3130 = vadd.f32 %v3090, %v3125
        %v3131 = vadd.f32 %v3091, %v3127
        %s3132 = sld [smem:[#allocation11 + $0x5e]]
        %v3133 = vstv %s3132
        %v3134 = vmul.f32 %v3133, %v3078
        %v3135 = vmul.f32 %v3133, %v3079
        %3138 = vrot.lane.b32.xlu0 %v3134, 127
        %v3139 = vpop.permute.xlu0 %3138
        %3140 = vrot.lane.b32.xlu0 %v3135, 127
        %v3141 = vpop.permute.xlu0 %3140
        %v3144 = vadd.f32 %v3096, %v3139
        %v3145 = vadd.f32 %v3097, %v3141
        %s3146 = sld [smem:[#allocation11 + $0x82]]
        %v3147 = vstv %s3146
        %v3148 = vmul.f32 %v3147, %v3078
        %v3149 = vmul.f32 %v3147, %v3079
        %3152 = vrot.lane.b32.xlu0 %v3148, 127
        %v3153 = vpop.permute.xlu0 %3152
        %3154 = vrot.lane.b32.xlu0 %v3149, 127
        %v3155 = vpop.permute.xlu0 %3154
        %v3158 = vadd.f32 %v3102, %v3153
        %v3159 = vadd.f32 %v3103, %v3155
        %s3160 = sld [smem:[#allocation11 + $0x17]]
        %v3161 = vstv %s3160
        %v3162 = vmul.f32 %v3161, %v3078
        %v3163 = vmul.f32 %v3161, %v3079
        %3166 = vrot.lane.b32.xlu0 %v3162, 126
        %v3167 = vpop.permute.xlu0 %3166
        %3168 = vrot.lane.b32.xlu0 %v3163, 126
        %v3169 = vpop.permute.xlu0 %3168
        %v3172 = vadd.f32 %v3116, %v3167
        %v3173 = vadd.f32 %v3117, %v3169
        %s3174 = sld [smem:[#allocation11 + $0x3b]]
        %v3175 = vstv %s3174
        %v3176 = vmul.f32 %v3175, %v3078
        %v3177 = vmul.f32 %v3175, %v3079
        %3180 = vrot.lane.b32.xlu0 %v3176, 126
        %v3181 = vpop.permute.xlu0 %3180
        %3182 = vrot.lane.b32.xlu0 %v3177, 126
        %v3183 = vpop.permute.xlu0 %3182
        %v3186 = vadd.f32 %v3130, %v3181
        %v3187 = vadd.f32 %v3131, %v3183
        %s3188 = sld [smem:[#allocation11 + $0x5f]]
        %v3189 = vstv %s3188
        %v3190 = vmul.f32 %v3189, %v3078
        %v3191 = vmul.f32 %v3189, %v3079
        %3194 = vrot.lane.b32.xlu0 %v3190, 126
        %v3195 = vpop.permute.xlu0 %3194
        %3196 = vrot.lane.b32.xlu0 %v3191, 126
        %v3197 = vpop.permute.xlu0 %3196
        %v3200 = vadd.f32 %v3144, %v3195
        %v3201 = vadd.f32 %v3145, %v3197
        %s3202 = sld [smem:[#allocation11 + $0x83]]
        %v3203 = vstv %s3202
        %v3204 = vmul.f32 %v3203, %v3078
        %v3205 = vmul.f32 %v3203, %v3079
        %3208 = vrot.lane.b32.xlu0 %v3204, 126
        %v3209 = vpop.permute.xlu0 %3208
        %3210 = vrot.lane.b32.xlu0 %v3205, 126
        %v3211 = vpop.permute.xlu0 %3210
        %v3214 = vadd.f32 %v3158, %v3209
        %v3215 = vadd.f32 %v3159, %v3211
        %v3216 = vld [vmem:[%s2090 + $0x2] sm:$0xff]
        %v3217 = vld [vmem:[%s2090 + $0xa] sm:$0xff]
        %s3218 = sld [smem:[#allocation11 + $0x18]]
        %v3219 = vstv %s3218
        %v3220 = vmul.f32 %v3219, %v3216
        %v3221 = vmul.f32 %v3219, %v3217
        %v3222 = vadd.f32 %v3172, %v3220
        %v3223 = vadd.f32 %v3173, %v3221
        %s3224 = sld [smem:[#allocation11 + $0x3c]]
        %v3225 = vstv %s3224
        %v3226 = vmul.f32 %v3225, %v3216
        %v3227 = vmul.f32 %v3225, %v3217
        %v3228 = vadd.f32 %v3186, %v3226
        %v3229 = vadd.f32 %v3187, %v3227
        %s3230 = sld [smem:[#allocation11 + $0x60]]
        %v3231 = vstv %s3230
        %v3232 = vmul.f32 %v3231, %v3216
        %v3233 = vmul.f32 %v3231, %v3217
        %v3234 = vadd.f32 %v3200, %v3232
        %v3235 = vadd.f32 %v3201, %v3233
        %s3236 = sld [smem:[#allocation11 + $0x84]]
        %v3237 = vstv %s3236
        %v3238 = vmul.f32 %v3237, %v3216
        %v3239 = vmul.f32 %v3237, %v3217
        %v3240 = vadd.f32 %v3214, %v3238
        %v3241 = vadd.f32 %v3215, %v3239
        %s3242 = sld [smem:[#allocation11 + $0x19]]
        %v3243 = vstv %s3242
        %v3244 = vmul.f32 %v3243, %v3216
        %v3245 = vmul.f32 %v3243, %v3217
        %3248 = vrot.lane.b32.xlu0 %v3244, 127
        %v3249 = vpop.permute.xlu0 %3248
        %3250 = vrot.lane.b32.xlu0 %v3245, 127
        %v3251 = vpop.permute.xlu0 %3250
        %v3254 = vadd.f32 %v3222, %v3249
        %v3255 = vadd.f32 %v3223, %v3251
        %s3256 = sld [smem:[#allocation11 + $0x3d]]
        %v3257 = vstv %s3256
        %v3258 = vmul.f32 %v3257, %v3216
        %v3259 = vmul.f32 %v3257, %v3217
        %3262 = vrot.lane.b32.xlu0 %v3258, 127
        %v3263 = vpop.permute.xlu0 %3262
        %3264 = vrot.lane.b32.xlu0 %v3259, 127
        %v3265 = vpop.permute.xlu0 %3264
        %v3268 = vadd.f32 %v3228, %v3263
        %v3269 = vadd.f32 %v3229, %v3265
        %s3270 = sld [smem:[#allocation11 + $0x61]]
        %v3271 = vstv %s3270
        %v3272 = vmul.f32 %v3271, %v3216
        %v3273 = vmul.f32 %v3271, %v3217
        %3276 = vrot.lane.b32.xlu0 %v3272, 127
        %v3277 = vpop.permute.xlu0 %3276
        %3278 = vrot.lane.b32.xlu0 %v3273, 127
        %v3279 = vpop.permute.xlu0 %3278
        %v3282 = vadd.f32 %v3234, %v3277
        %v3283 = vadd.f32 %v3235, %v3279
        %s3284 = sld [smem:[#allocation11 + $0x85]]
        %v3285 = vstv %s3284
        %v3286 = vmul.f32 %v3285, %v3216
        %v3287 = vmul.f32 %v3285, %v3217
        %3290 = vrot.lane.b32.xlu0 %v3286, 127
        %v3291 = vpop.permute.xlu0 %3290
        %3292 = vrot.lane.b32.xlu0 %v3287, 127
        %v3293 = vpop.permute.xlu0 %3292
        %v3296 = vadd.f32 %v3240, %v3291
        %v3297 = vadd.f32 %v3241, %v3293
        %s3298 = sld [smem:[#allocation11 + $0x1a]]
        %v3299 = vstv %s3298
        %v3300 = vmul.f32 %v3299, %v3216
        %v3301 = vmul.f32 %v3299, %v3217
        %3304 = vrot.lane.b32.xlu0 %v3300, 126
        %v3305 = vpop.permute.xlu0 %3304
        %3306 = vrot.lane.b32.xlu0 %v3301, 126
        %v3307 = vpop.permute.xlu0 %3306
        %v3310 = vadd.f32 %v3254, %v3305
        %v3311 = vadd.f32 %v3255, %v3307
        %s3312 = sld [smem:[#allocation11 + $0x3e]]
        %v3313 = vstv %s3312
        %v3314 = vmul.f32 %v3313, %v3216
        %v3315 = vmul.f32 %v3313, %v3217
        %3318 = vrot.lane.b32.xlu0 %v3314, 126
        %v3319 = vpop.permute.xlu0 %3318
        %3320 = vrot.lane.b32.xlu0 %v3315, 126
        %v3321 = vpop.permute.xlu0 %3320
        %v3324 = vadd.f32 %v3268, %v3319
        %v3325 = vadd.f32 %v3269, %v3321
        %s3326 = sld [smem:[#allocation11 + $0x62]]
        %v3327 = vstv %s3326
        %v3328 = vmul.f32 %v3327, %v3216
        %v3329 = vmul.f32 %v3327, %v3217
        %3332 = vrot.lane.b32.xlu0 %v3328, 126
        %v3333 = vpop.permute.xlu0 %3332
        %3334 = vrot.lane.b32.xlu0 %v3329, 126
        %v3335 = vpop.permute.xlu0 %3334
        %v3338 = vadd.f32 %v3282, %v3333
        %v3339 = vadd.f32 %v3283, %v3335
        %s3340 = sld [smem:[#allocation11 + $0x86]]
        %v3341 = vstv %s3340
        %v3342 = vmul.f32 %v3341, %v3216
        %v3343 = vmul.f32 %v3341, %v3217
        %3346 = vrot.lane.b32.xlu0 %v3342, 126
        %v3347 = vpop.permute.xlu0 %3346
        %3348 = vrot.lane.b32.xlu0 %v3343, 126
        %v3349 = vpop.permute.xlu0 %3348
        %v3352 = vadd.f32 %v3296, %v3347
        %v3353 = vadd.f32 %v3297, %v3349
        %v3354 = vld [vmem:[%s2101] sm:$0xff]
        %v3355 = vld [vmem:[%s2101 + $0x8] sm:$0xff]
        %s3356 = sld [smem:[#allocation11 + $0x1b]]
        %v3357 = vstv %s3356
        %v3358 = vmul.f32 %v3357, %v3354
        %v3359 = vmul.f32 %v3357, %v3355
        %v3360 = vadd.f32 %v3310, %v3358
        %v3361 = vadd.f32 %v3311, %v3359
        %s3362 = sld [smem:[#allocation11 + $0x3f]]
        %v3363 = vstv %s3362
        %v3364 = vmul.f32 %v3363, %v3354
        %v3365 = vmul.f32 %v3363, %v3355
        %v3366 = vadd.f32 %v3324, %v3364
        %v3367 = vadd.f32 %v3325, %v3365
        %s3368 = sld [smem:[#allocation11 + $0x63]]
        %v3369 = vstv %s3368
        %v3370 = vmul.f32 %v3369, %v3354
        %v3371 = vmul.f32 %v3369, %v3355
        %v3372 = vadd.f32 %v3338, %v3370
        %v3373 = vadd.f32 %v3339, %v3371
        %s3374 = sld [smem:[#allocation11 + $0x87]]
        %v3375 = vstv %s3374
        %v3376 = vmul.f32 %v3375, %v3354
        %v3377 = vmul.f32 %v3375, %v3355
        %v3378 = vadd.f32 %v3352, %v3376
        %v3379 = vadd.f32 %v3353, %v3377
        %s3380 = sld [smem:[#allocation11 + $0x1c]]
        %v3381 = vstv %s3380
        %v3382 = vmul.f32 %v3381, %v3354
        %v3383 = vmul.f32 %v3381, %v3355
        %3386 = vrot.lane.b32.xlu0 %v3382, 127
        %v3387 = vpop.permute.xlu0 %3386
        %3388 = vrot.lane.b32.xlu0 %v3383, 127
        %v3389 = vpop.permute.xlu0 %3388
        %v3392 = vadd.f32 %v3360, %v3387
        %v3393 = vadd.f32 %v3361, %v3389
        %s3394 = sld [smem:[#allocation11 + $0x40]]
        %v3395 = vstv %s3394
        %v3396 = vmul.f32 %v3395, %v3354
        %v3397 = vmul.f32 %v3395, %v3355
        %3400 = vrot.lane.b32.xlu0 %v3396, 127
        %v3401 = vpop.permute.xlu0 %3400
        %3402 = vrot.lane.b32.xlu0 %v3397, 127
        %v3403 = vpop.permute.xlu0 %3402
        %v3406 = vadd.f32 %v3366, %v3401
        %v3407 = vadd.f32 %v3367, %v3403
        %s3408 = sld [smem:[#allocation11 + $0x64]]
        %v3409 = vstv %s3408
        %v3410 = vmul.f32 %v3409, %v3354
        %v3411 = vmul.f32 %v3409, %v3355
        %3414 = vrot.lane.b32.xlu0 %v3410, 127
        %v3415 = vpop.permute.xlu0 %3414
        %3416 = vrot.lane.b32.xlu0 %v3411, 127
        %v3417 = vpop.permute.xlu0 %3416
        %v3420 = vadd.f32 %v3372, %v3415
        %v3421 = vadd.f32 %v3373, %v3417
        %s3422 = sld [smem:[#allocation11 + $0x88]]
        %v3423 = vstv %s3422
        %v3424 = vmul.f32 %v3423, %v3354
        %v3425 = vmul.f32 %v3423, %v3355
        %3428 = vrot.lane.b32.xlu0 %v3424, 127
        %v3429 = vpop.permute.xlu0 %3428
        %3430 = vrot.lane.b32.xlu0 %v3425, 127
        %v3431 = vpop.permute.xlu0 %3430
        %v3434 = vadd.f32 %v3378, %v3429
        %v3435 = vadd.f32 %v3379, %v3431
        %s3436 = sld [smem:[#allocation11 + $0x1d]]
        %v3437 = vstv %s3436
        %v3438 = vmul.f32 %v3437, %v3354
        %v3439 = vmul.f32 %v3437, %v3355
        %3442 = vrot.lane.b32.xlu0 %v3438, 126
        %v3443 = vpop.permute.xlu0 %3442
        %3444 = vrot.lane.b32.xlu0 %v3439, 126
        %v3445 = vpop.permute.xlu0 %3444
        %v3448 = vadd.f32 %v3392, %v3443
        %v3449 = vadd.f32 %v3393, %v3445
        %s3450 = sld [smem:[#allocation11 + $0x41]]
        %v3451 = vstv %s3450
        %v3452 = vmul.f32 %v3451, %v3354
        %v3453 = vmul.f32 %v3451, %v3355
        %3456 = vrot.lane.b32.xlu0 %v3452, 126
        %v3457 = vpop.permute.xlu0 %3456
        %3458 = vrot.lane.b32.xlu0 %v3453, 126
        %v3459 = vpop.permute.xlu0 %3458
        %v3462 = vadd.f32 %v3406, %v3457
        %v3463 = vadd.f32 %v3407, %v3459
        %s3464 = sld [smem:[#allocation11 + $0x65]]
        %v3465 = vstv %s3464
        %v3466 = vmul.f32 %v3465, %v3354
        %v3467 = vmul.f32 %v3465, %v3355
        %3470 = vrot.lane.b32.xlu0 %v3466, 126
        %v3471 = vpop.permute.xlu0 %3470
        %3472 = vrot.lane.b32.xlu0 %v3467, 126
        %v3473 = vpop.permute.xlu0 %3472
        %v3476 = vadd.f32 %v3420, %v3471
        %v3477 = vadd.f32 %v3421, %v3473
        %s3478 = sld [smem:[#allocation11 + $0x89]]
        %v3479 = vstv %s3478
        %v3480 = vmul.f32 %v3479, %v3354
        %v3481 = vmul.f32 %v3479, %v3355
        %3484 = vrot.lane.b32.xlu0 %v3480, 126
        %v3485 = vpop.permute.xlu0 %3484
        %3486 = vrot.lane.b32.xlu0 %v3481, 126
        %v3487 = vpop.permute.xlu0 %3486
        %v3490 = vadd.f32 %v3434, %v3485
        %v3491 = vadd.f32 %v3435, %v3487
        %v3492 = vld [vmem:[%s2101 + $0x1] sm:$0xff]
        %v3493 = vld [vmem:[%s2101 + $0x9] sm:$0xff]
        %s3494 = sld [smem:[#allocation11 + $0x1e]]
        %v3495 = vstv %s3494
        %v3496 = vmul.f32 %v3495, %v3492
        %v3497 = vmul.f32 %v3495, %v3493
        %v3498 = vadd.f32 %v3448, %v3496
        %v3499 = vadd.f32 %v3449, %v3497
        %s3500 = sld [smem:[#allocation11 + $0x42]]
        %v3501 = vstv %s3500
        %v3502 = vmul.f32 %v3501, %v3492
        %v3503 = vmul.f32 %v3501, %v3493
        %v3504 = vadd.f32 %v3462, %v3502
        %v3505 = vadd.f32 %v3463, %v3503
        %s3506 = sld [smem:[#allocation11 + $0x66]]
        %v3507 = vstv %s3506
        %v3508 = vmul.f32 %v3507, %v3492
        %v3509 = vmul.f32 %v3507, %v3493
        %v3510 = vadd.f32 %v3476, %v3508
        %v3511 = vadd.f32 %v3477, %v3509
        %s3512 = sld [smem:[#allocation11 + $0x8a]]
        %v3513 = vstv %s3512
        %v3514 = vmul.f32 %v3513, %v3492
        %v3515 = vmul.f32 %v3513, %v3493
        %v3516 = vadd.f32 %v3490, %v3514
        %v3517 = vadd.f32 %v3491, %v3515
        %s3518 = sld [smem:[#allocation11 + $0x1f]]
        %v3519 = vstv %s3518
        %v3520 = vmul.f32 %v3519, %v3492
        %v3521 = vmul.f32 %v3519, %v3493
        %3524 = vrot.lane.b32.xlu0 %v3520, 127
        %v3525 = vpop.permute.xlu0 %3524
        %3526 = vrot.lane.b32.xlu0 %v3521, 127
        %v3527 = vpop.permute.xlu0 %3526
        %v3530 = vadd.f32 %v3498, %v3525
        %v3531 = vadd.f32 %v3499, %v3527
        %s3532 = sld [smem:[#allocation11 + $0x43]]
        %v3533 = vstv %s3532
        %v3534 = vmul.f32 %v3533, %v3492
        %v3535 = vmul.f32 %v3533, %v3493
        %3538 = vrot.lane.b32.xlu0 %v3534, 127
        %v3539 = vpop.permute.xlu0 %3538
        %3540 = vrot.lane.b32.xlu0 %v3535, 127
        %v3541 = vpop.permute.xlu0 %3540
        %v3544 = vadd.f32 %v3504, %v3539
        %v3545 = vadd.f32 %v3505, %v3541
        %s3546 = sld [smem:[#allocation11 + $0x67]]
        %v3547 = vstv %s3546
        %v3548 = vmul.f32 %v3547, %v3492
        %v3549 = vmul.f32 %v3547, %v3493
        %3552 = vrot.lane.b32.xlu0 %v3548, 127
        %v3553 = vpop.permute.xlu0 %3552
        %3554 = vrot.lane.b32.xlu0 %v3549, 127
        %v3555 = vpop.permute.xlu0 %3554
        %v3558 = vadd.f32 %v3510, %v3553
        %v3559 = vadd.f32 %v3511, %v3555
        %s3560 = sld [smem:[#allocation11 + $0x8b]]
        %v3561 = vstv %s3560
        %v3562 = vmul.f32 %v3561, %v3492
        %v3563 = vmul.f32 %v3561, %v3493
        %3566 = vrot.lane.b32.xlu0 %v3562, 127
        %v3567 = vpop.permute.xlu0 %3566
        %3568 = vrot.lane.b32.xlu0 %v3563, 127
        %v3569 = vpop.permute.xlu0 %3568
        %v3572 = vadd.f32 %v3516, %v3567
        %v3573 = vadd.f32 %v3517, %v3569
        %s3574 = sld [smem:[#allocation11 + $0x20]]
        %v3575 = vstv %s3574
        %v3576 = vmul.f32 %v3575, %v3492
        %v3577 = vmul.f32 %v3575, %v3493
        %3580 = vrot.lane.b32.xlu0 %v3576, 126
        %v3581 = vpop.permute.xlu0 %3580
        %3582 = vrot.lane.b32.xlu0 %v3577, 126
        %v3583 = vpop.permute.xlu0 %3582
        %v3586 = vadd.f32 %v3530, %v3581
        %v3587 = vadd.f32 %v3531, %v3583
        %s3588 = sld [smem:[#allocation11 + $0x44]]
        %v3589 = vstv %s3588
        %v3590 = vmul.f32 %v3589, %v3492
        %v3591 = vmul.f32 %v3589, %v3493
        %3594 = vrot.lane.b32.xlu0 %v3590, 126
        %v3595 = vpop.permute.xlu0 %3594
        %3596 = vrot.lane.b32.xlu0 %v3591, 126
        %v3597 = vpop.permute.xlu0 %3596
        %v3600 = vadd.f32 %v3544, %v3595
        %v3601 = vadd.f32 %v3545, %v3597
        %s3602 = sld [smem:[#allocation11 + $0x68]]
        %v3603 = vstv %s3602
        %v3604 = vmul.f32 %v3603, %v3492
        %v3605 = vmul.f32 %v3603, %v3493
        %3608 = vrot.lane.b32.xlu0 %v3604, 126
        %v3609 = vpop.permute.xlu0 %3608
        %3610 = vrot.lane.b32.xlu0 %v3605, 126
        %v3611 = vpop.permute.xlu0 %3610
        %v3614 = vadd.f32 %v3558, %v3609
        %v3615 = vadd.f32 %v3559, %v3611
        %s3616 = sld [smem:[#allocation11 + $0x8c]]
        %v3617 = vstv %s3616
        %v3618 = vmul.f32 %v3617, %v3492
        %v3619 = vmul.f32 %v3617, %v3493
        %3622 = vrot.lane.b32.xlu0 %v3618, 126
        %v3623 = vpop.permute.xlu0 %3622
        %3624 = vrot.lane.b32.xlu0 %v3619, 126
        %v3625 = vpop.permute.xlu0 %3624
        %v3628 = vadd.f32 %v3572, %v3623
        %v3629 = vadd.f32 %v3573, %v3625
        %v3630 = vld [vmem:[%s2101 + $0x2] sm:$0xff]
        %v3631 = vld [vmem:[%s2101 + $0xa] sm:$0xff]
        %s3632 = sld [smem:[#allocation11 + $0x21]]
        %v3633 = vstv %s3632
        %v3634 = vmul.f32 %v3633, %v3630
        %v3635 = vmul.f32 %v3633, %v3631
        %v3636 = vadd.f32 %v3586, %v3634
        %v3637 = vadd.f32 %v3587, %v3635
        %s3638 = sld [smem:[#allocation11 + $0x45]]
        %v3639 = vstv %s3638
        %v3640 = vmul.f32 %v3639, %v3630
        %v3641 = vmul.f32 %v3639, %v3631
        %v3642 = vadd.f32 %v3600, %v3640
        %v3643 = vadd.f32 %v3601, %v3641
        %s3644 = sld [smem:[#allocation11 + $0x69]]
        %v3645 = vstv %s3644
        %v3646 = vmul.f32 %v3645, %v3630
        %v3647 = vmul.f32 %v3645, %v3631
        %v3648 = vadd.f32 %v3614, %v3646
        %v3649 = vadd.f32 %v3615, %v3647
        %s3650 = sld [smem:[#allocation11 + $0x8d]]
        %v3651 = vstv %s3650
        %v3652 = vmul.f32 %v3651, %v3630
        %v3653 = vmul.f32 %v3651, %v3631
        %v3654 = vadd.f32 %v3628, %v3652
        %v3655 = vadd.f32 %v3629, %v3653
        %s3656 = sld [smem:[#allocation11 + $0x22]]
        %v3657 = vstv %s3656
        %v3658 = vmul.f32 %v3657, %v3630
        %v3659 = vmul.f32 %v3657, %v3631
        %3662 = vrot.lane.b32.xlu0 %v3658, 127
        %v3663 = vpop.permute.xlu0 %3662
        %3664 = vrot.lane.b32.xlu0 %v3659, 127
        %v3665 = vpop.permute.xlu0 %3664
        %v3668 = vadd.f32 %v3636, %v3663
        %v3669 = vadd.f32 %v3637, %v3665
        %s3670 = sld [smem:[#allocation11 + $0x46]]
        %v3671 = vstv %s3670
        %v3672 = vmul.f32 %v3671, %v3630
        %v3673 = vmul.f32 %v3671, %v3631
        %3676 = vrot.lane.b32.xlu0 %v3672, 127
        %v3677 = vpop.permute.xlu0 %3676
        %3678 = vrot.lane.b32.xlu0 %v3673, 127
        %v3679 = vpop.permute.xlu0 %3678
        %v3682 = vadd.f32 %v3642, %v3677
        %v3683 = vadd.f32 %v3643, %v3679
        %s3684 = sld [smem:[#allocation11 + $0x6a]]
        %v3685 = vstv %s3684
        %v3686 = vmul.f32 %v3685, %v3630
        %v3687 = vmul.f32 %v3685, %v3631
        %3690 = vrot.lane.b32.xlu0 %v3686, 127
        %v3691 = vpop.permute.xlu0 %3690
        %3692 = vrot.lane.b32.xlu0 %v3687, 127
        %v3693 = vpop.permute.xlu0 %3692
        %v3696 = vadd.f32 %v3648, %v3691
        %v3697 = vadd.f32 %v3649, %v3693
        %s3698 = sld [smem:[#allocation11 + $0x8e]]
        %v3699 = vstv %s3698
        %v3700 = vmul.f32 %v3699, %v3630
        %v3701 = vmul.f32 %v3699, %v3631
        %3704 = vrot.lane.b32.xlu0 %v3700, 127
        %v3705 = vpop.permute.xlu0 %3704
        %3706 = vrot.lane.b32.xlu0 %v3701, 127
        %v3707 = vpop.permute.xlu0 %3706
        %v3710 = vadd.f32 %v3654, %v3705
        %v3711 = vadd.f32 %v3655, %v3707
        %s3712 = sld [smem:[#allocation11 + $0x23]]
        %v3713 = vstv %s3712
        %v3714 = vmul.f32 %v3713, %v3630
        %v3715 = vmul.f32 %v3713, %v3631
        %3718 = vrot.lane.b32.xlu0 %v3714, 126
        %v3719 = vpop.permute.xlu0 %3718
        %3720 = vrot.lane.b32.xlu0 %v3715, 126
        %v3721 = vpop.permute.xlu0 %3720
        %v3724 = vadd.f32 %v3668, %v3719
        %v3725 = vadd.f32 %v3669, %v3721
        %s3726 = sld [smem:[#allocation11 + $0x47]]
        %v3727 = vstv %s3726
        %v3728 = vmul.f32 %v3727, %v3630
        %v3729 = vmul.f32 %v3727, %v3631
        %3732 = vrot.lane.b32.xlu0 %v3728, 126
        %v3733 = vpop.permute.xlu0 %3732
        %3734 = vrot.lane.b32.xlu0 %v3729, 126
        %v3735 = vpop.permute.xlu0 %3734
        %v3738 = vadd.f32 %v3682, %v3733
        %v3739 = vadd.f32 %v3683, %v3735
        %s3740 = sld [smem:[#allocation11 + $0x6b]]
        %v3741 = vstv %s3740
        %v3742 = vmul.f32 %v3741, %v3630
        %v3743 = vmul.f32 %v3741, %v3631
        %3746 = vrot.lane.b32.xlu0 %v3742, 126
        %v3747 = vpop.permute.xlu0 %3746
        %3748 = vrot.lane.b32.xlu0 %v3743, 126
        %v3749 = vpop.permute.xlu0 %3748
        %v3752 = vadd.f32 %v3696, %v3747
        %v3753 = vadd.f32 %v3697, %v3749
        %s3754 = sld [smem:[#allocation11 + $0x8f]]
        %v3755 = vstv %s3754
        %v3756 = vmul.f32 %v3755, %v3630
        %v3757 = vmul.f32 %v3755, %v3631
        %3760 = vrot.lane.b32.xlu0 %v3756, 126
        %v3761 = vpop.permute.xlu0 %3760
        %3762 = vrot.lane.b32.xlu0 %v3757, 126
        %v3763 = vpop.permute.xlu0 %3762
        %v3766 = vadd.f32 %v3710, %v3761
        %v3767 = vadd.f32 %v3711, %v3763
        %vm3768 = vcmask 130048
        %3769 = vst.msk [vmem:[%s294] sm:$0xff] %vm3768, %v3724
        %3770 = vst.msk [vmem:[%s294 + $0x8] sm:$0xff] %vm3768, %v3725
        %s3771 = scalar_lea.vmem %s294, 16 [#allocation14]
        %3772 = vst.msk [vmem:[%s3771] sm:$0xff] %vm3768, %v3738
        %3773 = vst.msk [vmem:[%s3771 + $0x8] sm:$0xff] %vm3768, %v3739
        %s3774 = scalar_lea.vmem %s294, 32 [#allocation14]
        %3775 = vst.msk [vmem:[%s3774] sm:$0xff] %vm3768, %v3752
        %3776 = vst.msk [vmem:[%s3774 + $0x8] sm:$0xff] %vm3768, %v3753
        %s3777 = scalar_lea.vmem %s294, 48 [#allocation14]
        %3778 = vst.msk [vmem:[%s3777] sm:$0xff] %vm3768, %v3766
        %3779 = vst.msk [vmem:[%s3777 + $0x8] sm:$0xff] %vm3768, %v3767
        %s3780 = sand.u32 %s143, 1
        %s3781 = scalar_lea.sflag [#allocation6], %s3780
        %s3782 = sand.u32 %s143, 1
        %s3783 = smul.addr %s3782, 64
        %s3784 = scalar_lea.vmem [#allocation14], %s3783
        // Predicated region
        $region61: #{tpu_custom_call.1} parent=39 // pred_check
          %p3785 = pneg %p153
        $region62: #{tpu_custom_call.1} parent=39 // pred_check_branch
          %3787 = sbr.rel (%p3785) target = $region64
        $region63: #{tpu_custom_call.1} parent=39 // pred_region
          %s3789 = ssub.s32 1024, 1024
          %3790 = vsyncadd %s3781, %s3789
          %s3791 = smul.addr %s25, 8
          %s3792 = smul.addr %s3791, 128
          %s3793 = scalar_lea.hbm %s5, %s3792
          %s3794 = sshll.u32 %s3784, 4
          %s3795 = int_to_ptr.vmem [resolvable:$true] %s3794
          %3800 = dma.vmem_to_hbm [thread:$0]  %s3795, 1024, %s3793, %s3781, 128, 128, 8
        $region64: #{tpu_custom_call.1} parent=39 // pred_fallthru
          _
      $region40: #{tpu_custom_call.1} parent=5 // pred_fallthru
        _
      %p3801 = scmp.le.s32.totalorder 2, %s20
      // Predicated region
      $region65: #{tpu_custom_call.1} parent=5 // pred_check
        %p3802 = pneg %p3801
      $region66: #{tpu_custom_call.1} parent=5 // pred_check_branch
        %3804 = sbr.rel (%p3802) target = $region68
      $region67: #{tpu_custom_call.1} parent=5 // pred_region
        %s3805 = ssub.s32 %s20, 2
        // Predicated region
        $region69: #{tpu_custom_call.1} parent=67 // pred_check
          %p3806 = pneg %p159
        $region70: #{tpu_custom_call.1} parent=67 // pred_check_branch
          %3808 = sbr.rel (%p3806) target = $region72
        $region71: #{tpu_custom_call.1} parent=67 // pred_region
          %s3809 = sand.u32 %s144, 1
          %s3810 = scalar_lea.sflag [#allocation6], %s3809
          %s3811 = sand.u32 %s144, 1
          %s3812 = smul.addr %s3811, 64
          %s3813 = scalar_lea.vmem [#allocation14], %s3812
          %3814 = dma.done %s3810, 1024
        $region72: #{tpu_custom_call.1} parent=67 // pred_fallthru
          _
      $region68: #{tpu_custom_call.1} parent=5 // pred_fallthru
        _
    $region6: #{tpu_custom_call.1} parent=1 // loop_footer
      %s24 = sadd.s32 1, %s20
    $region7: #{tpu_custom_call.1} parent=1 // loop_footer_branch
      %19 = sbr.rel target = $region3
    $region8: #{tpu_custom_call.1} parent=1 // loop_exit
      _
    %3815 = vsyncpa [#allocation5], 1
    %s3816 = scalar_lea.sflag [#allocation5], 1
    %3817 = vsyncpa %s3816, 1
    %3818 = vsyncpa [#allocation6], 1
    %s3819 = scalar_lea.sflag [#allocation6], 1
    %3820 = vsyncpa %s3819, 1
    %3821 = vsyncpa [#allocation7], 1
    %s3822 = scalar_lea.sflag [#allocation7], 1
    %3823 = vsyncpa %s3822, 1
    %3824 = vsyncpa [#allocation10], 1
    %3825 = vsyncpa [#allocation13], 1

</llo_original>
